<compile_context>
chip_gen: v5e
topology: v5e:2x2
jax: 0.10.0
libtpu: 0.0.40
codegen_flags: <defaults>
</compile_context>

<pallas_src>
import jax
import jax.numpy as jnp
from jax.experimental import pallas as pl
from jax.experimental.pallas import tpu as pltpu


def _round_up(x, m):
    return ((x + m - 1) // m) * m


def _pad2(x, rows, cols):
    return jnp.pad(x, ((0, rows - x.shape[0]), (0, cols - x.shape[1])))


def _pick_tile(n_pad, candidates):
    """Largest candidate tile that evenly divides n_pad (no over-padding)."""
    for t in candidates:
        if n_pad % t == 0:
            return t
    return candidates[-1]


# ---------------------------------------------------------------------------
# Pallas kernels
# ---------------------------------------------------------------------------
def conv_relu_pool_kernel(patches_ref, w_ref, b_ref, o_ref):
    """Fused conv (im2col matmul) + 2x2 max-pool + bias + ReLU for one row tile.

    patches_ref: (4, TN, Kp)  bf16 -- 4 = positions inside each 2x2 pool window
    w_ref:       (Kp, Cp)     bf16
    b_ref:       (1, Cp)      f32
    o_ref:       (TN, Cp)     f32
    """
    tn = o_ref.shape[0]
    kp = patches_ref.shape[2]
    # One large MXU matmul over all 4 pool positions (rows = 4*TN) instead of
    # 4 small ones -> amortizes MXU push/drain.
    x = patches_ref[...].reshape(4 * tn, kp)
    y = jnp.dot(x, w_ref[...], preferred_element_type=jnp.float32)   # (4*TN, Cp)
    # Pool-max over the 4 positions on the VPU (static, tile-aligned slices).
    m = jnp.maximum(jnp.maximum(y[0 * tn:1 * tn], y[1 * tn:2 * tn]),
                    jnp.maximum(y[2 * tn:3 * tn], y[3 * tn:4 * tn]))
    # Bias + ReLU hoisted after the max: max(relu(a+b), relu(c+b)) == relu(max(a,c)+b).
    o_ref[...] = jnp.maximum(m + b_ref[...], 0.0)


def mlp_kernel(x_ref, w1_ref, b1_ref, w2_ref, b2_ref, w3_ref, b3_ref, o_ref):
    """Fused fc1 -> relu -> fc2 -> relu -> fc3 for one batch-row tile."""
    h = jnp.dot(x_ref[...], w1_ref[...], preferred_element_type=jnp.float32)
    h = jnp.maximum(h + b1_ref[...], 0.0).astype(w2_ref.dtype)
    h = jnp.dot(h, w2_ref[...], preferred_element_type=jnp.float32)
    h = jnp.maximum(h + b2_ref[...], 0.0).astype(w3_ref.dtype)
    h = jnp.dot(h, w3_ref[...], preferred_element_type=jnp.float32)
    o_ref[...] = h + b3_ref[...]


# ---------------------------------------------------------------------------
# Pallas call wrappers (row-tiled, "parallel" grid axis)
# ---------------------------------------------------------------------------
def conv_relu_pool(patches, w_pad, b_pad, cout):
    """patches: (4, N, K) f32 -> (N, cout) f32 (conv + bias + relu + 2x2 max-pool)."""
    _, n, k = patches.shape
    k_pad, c_pad = w_pad.shape
    n_pad = _round_up(n, 128)
    tn = _pick_tile(n_pad, (512, 256, 128))   # 4*tn = up to 2048 matmul rows / step
    p = jnp.pad(patches, ((0, 0), (0, n_pad - n), (0, k_pad - k))).astype(jnp.bfloat16)

    out = pl.pallas_call(
        conv_relu_pool_kernel,
        out_shape=jax.ShapeDtypeStruct((n_pad, c_pad), jnp.float32),
        grid_spec=pltpu.PrefetchScalarGridSpec(
            num_scalar_prefetch=0,
            grid=(n_pad // tn,),
            in_specs=[
                pl.BlockSpec((4, tn, k_pad), lambda i: (0, i, 0)),
                pl.BlockSpec((k_pad, c_pad), lambda i: (0, 0)),
                pl.BlockSpec((1, c_pad), lambda i: (0, 0)),
            ],
            out_specs=pl.BlockSpec((tn, c_pad), lambda i: (i, 0)),
        ),
        compiler_params=pltpu.CompilerParams(
            dimension_semantics=("parallel",)),
    )(p, w_pad, b_pad)
    return out[:n, :cout]


def mlp(feat, w1, b1, w2, b2, w3, b3, out_dim):
    """feat: (B, F) f32 -> (B, out_dim) f32 logits (fc1->relu->fc2->relu->fc3)."""
    n, f = feat.shape
    f_pad = w1.shape[0]
    c_pad = w3.shape[1]
    n_pad = _round_up(n, 16)                  # bf16-tile-friendly row rounding
    tb = _pick_tile(n_pad, (512, 256, 128, 64, 32, 16))
    x = _pad2(feat, n_pad, f_pad).astype(jnp.bfloat16)

    out = pl.pallas_call(
        mlp_kernel,
        out_shape=jax.ShapeDtypeStruct((n_pad, c_pad), jnp.float32),
        grid_spec=pltpu.PrefetchScalarGridSpec(
            num_scalar_prefetch=0,
            grid=(n_pad // tb,),
            in_specs=[
                pl.BlockSpec((tb, f_pad), lambda i: (i, 0)),
                pl.BlockSpec(w1.shape, lambda i: (0, 0)),
                pl.BlockSpec(b1.shape, lambda i: (0, 0)),
                pl.BlockSpec(w2.shape, lambda i: (0, 0)),
                pl.BlockSpec(b2.shape, lambda i: (0, 0)),
                pl.BlockSpec(w3.shape, lambda i: (0, 0)),
                pl.BlockSpec(b3.shape, lambda i: (0, 0)),
            ],
            out_specs=pl.BlockSpec((tb, c_pad), lambda i: (i, 0)),
        ),
        compiler_params=pltpu.CompilerParams(
            dimension_semantics=("parallel",)),
    )(x, w1, b1, w2, b2, w3, b3)
    return out[:n, :out_dim]


# ---------------------------------------------------------------------------
# Glue: im2col arranged by 2x2 pool windows (pure JAX data plumbing)
# ---------------------------------------------------------------------------
def im2col_pooled(x, kh_sz, kw_sz):
    """x: (B, H, W, C) NHWC -> patches (4, B*PH*PW, KH*KW*C)."""
    b, h, w, c = x.shape
    oh, ow = h - kh_sz + 1, w - kw_sz + 1
    ph, pw = oh // 2, ow // 2
    cols = [x[:, kh:kh + oh, kw:kw + ow, :]
            for kh in range(kh_sz) for kw in range(kw_sz)]
    p = jnp.stack(cols, axis=3)                       # (B, OH, OW, KH*KW, C)
    p = p.reshape(b, oh, ow, kh_sz * kw_sz * c)       # K in (kh, kw, cin) order
    p = p.reshape(b, ph, 2, pw, 2, kh_sz * kw_sz * c)
    p = p.transpose(2, 4, 0, 1, 3, 5)                 # (2, 2, B, PH, PW, K)
    return p.reshape(4, b * ph * pw, kh_sz * kw_sz * c), (b, ph, pw)


# ---------------------------------------------------------------------------
# Parameter init (PyTorch-default-style uniform(-1/sqrt(fan_in))), padded & bf16
# ---------------------------------------------------------------------------
def init_params(key, l1=120, l2=84):
    ks = jax.random.split(key, 10)

    def u(k, shape, fan_in):
        bound = 1.0 / (fan_in ** 0.5)
        return jax.random.uniform(k, shape, jnp.float32, -bound, bound)

    # ----- logical (PyTorch-equivalent) parameters ---------------------------
    w_c1 = u(ks[0], (5, 5, 3, 6), 3 * 5 * 5).reshape(75, 6)     # (kh,kw,cin)->cout
    b_c1 = u(ks[1], (1, 6), 3 * 5 * 5)
    w_c2 = u(ks[2], (5, 5, 6, 16), 6 * 5 * 5).reshape(150, 16)
    b_c2 = u(ks[3], (1, 16), 6 * 5 * 5)
    w_f1 = u(ks[4], (16 * 5 * 5, l1), 16 * 5 * 5)               # rows in (c,h,w) order
    b_f1 = u(ks[5], (1, l1), 16 * 5 * 5)
    w_f2 = u(ks[6], (l1, l2), l1)
    b_f2 = u(ks[7], (1, l2), l1)
    w_f3 = u(ks[8], (l2, 10), l2)
    b_f3 = u(ks[9], (1, 10), l2)

    # Permute fc1 rows from PyTorch (c, h, w) flatten order to NHWC (h, w, c)
    # flatten order so net_forward needs no transpose/relayout before fc1.
    perm = jnp.arange(16 * 5 * 5).reshape(16, 5, 5).transpose(1, 2, 0).reshape(-1)
    w_f1 = w_f1[perm, :]

    l1p, l2p = _round_up(l1, 128), _round_up(l2, 128)

    def padw(w, rows, cols):                 # weights: zero-pad + bf16 for MXU
        return _pad2(w, rows, cols).astype(jnp.bfloat16)

    def padb(b, cols):                       # biases stay f32
        return _pad2(b, 1, cols)

    return dict(
        w_c1=padw(w_c1, 128, 128), b_c1=padb(b_c1, 128),
        w_c2=padw(w_c2, 256, 128), b_c2=padb(b_c2, 128),
        w_f1=padw(w_f1, 512, l1p), b_f1=padb(b_f1, l1p),
        w_f2=padw(w_f2, l1p, l2p), b_f2=padb(b_f2, l2p),
        w_f3=padw(w_f3, l2p, 128), b_f3=padb(b_f3, 128),
    )


# ---------------------------------------------------------------------------
# Forward pass
# ---------------------------------------------------------------------------
@jax.jit
def net_forward(x_nchw, params):
    b = x_nchw.shape[0]
    x = jnp.transpose(x_nchw, (0, 2, 3, 1)).astype(jnp.float32)    # NCHW -> NHWC

    # conv1(3->6, 5x5) + relu + maxpool(2,2)   : 32x32 -> 28x28 -> 14x14
    p1, (_, ph1, pw1) = im2col_pooled(x, 5, 5)                     # (4, B*196, 75)
    y1 = conv_relu_pool(p1, params["w_c1"], params["b_c1"], 6)     # (B*196, 6)
    x2 = y1.reshape(b, ph1, pw1, 6)

    # conv2(6->16, 5x5) + relu + maxpool(2,2)  : 14x14 -> 10x10 -> 5x5
    p2, (_, ph2, pw2) = im2col_pooled(x2, 5, 5)                    # (4, B*25, 150)
    y2 = conv_relu_pool(p2, params["w_c2"], params["b_c2"], 16)    # (B*25, 16)

    # NHWC (h, w, c) flatten; w_f1 rows were permuted at init time to match,
    # so this is PyTorch x.view(-1, 400)-equivalent with no relayout transpose.
    feat = y2.reshape(b, ph2 * pw2 * 16)

    # fc1 -> relu -> fc2 -> relu -> fc3 (fused Pallas kernel); slice padded logits.
    return mlp(feat,
               params["w_f1"], params["b_f1"],
               params["w_f2"], params["b_f2"],
               params["w_f3"], params["b_f3"], 10)


if __name__ == "__main__":
    key = jax.random.PRNGKey(0)
    k_x, k_p = jax.random.split(key)
    # Module implies 3x32x32 inputs (16*5*5 flatten). Small batch of 2.
    x = jax.random.normal(k_x, (2, 3, 32, 32), jnp.float32)
    params = init_params(k_p)

    out = net_forward(x, params)
    out = jax.block_until_ready(out)
    assert out.shape == (2, 10), out.shape
    assert bool(jnp.all(jnp.isfinite(out)))
    print("KERNEL_OK")
</pallas_src>

<mosaic_0001>
module attributes {stable_mosaic.version = 11 : i64} {
  func.func @conv_relu_pool_kernel(%arg0: i32, %arg1: memref<4x512x128xbf16, #tpu.memory_space<vmem>>, %arg2: memref<128x128xbf16, #tpu.memory_space<vmem>>, %arg3: memref<1x128xf32, #tpu.memory_space<vmem>>, %arg4: memref<512x128xf32, #tpu.memory_space<vmem>>) attributes {dimension_semantics = [#tpu.dimension_semantics<parallel>], iteration_bounds = array<i64: 1>, scalar_prefetch = 0 : i64, scratch_operands = 0 : i64, tpu.core_type = #tpu.core_type<tc>, window_params = [{transform_indices = @transform_0, window_bounds = array<i64: 4, 512, 128>}, {pipeline_mode = #tpu.pipeline_mode<synchronous>, transform_indices = @transform_1, window_bounds = array<i64: 128, 128>}, {pipeline_mode = #tpu.pipeline_mode<synchronous>, transform_indices = @transform_2, window_bounds = array<i64: 1, 128>}, {transform_indices = @transform_3, window_bounds = array<i64: 512, 128>}]} {
    %c0 = arith.constant 0 : index
    %c0_0 = arith.constant 0 : index
    %c0_1 = arith.constant 0 : index
    %0 = vector.load %arg1[%c0, %c0_0, %c0_1] : memref<4x512x128xbf16, #tpu.memory_space<vmem>>, vector<4x512x128xbf16>
    %1 = vector.shape_cast %0 : vector<4x512x128xbf16> to vector<2048x128xbf16>
    %c0_2 = arith.constant 0 : index
    %c0_3 = arith.constant 0 : index
    %2 = vector.load %arg2[%c0_2, %c0_3] : memref<128x128xbf16, #tpu.memory_space<vmem>>, vector<128x128xbf16>
    %cst = arith.constant dense<0.000000e+00> : vector<2048x128xf32>
    %3 = tpu.matmul %1, %2, %cst {dimension_numbers = #tpu.dot_dimension_numbers<[1], [0], [0], [1], [0, 0, 1, 1], [], []>} : vector<2048x128xbf16>, vector<128x128xbf16>, vector<2048x128xf32> -> vector<2048x128xf32>
    %4 = vector.extract_strided_slice %3 {offsets = [0, 0], sizes = [512, 128], strides = [1, 1]} : vector<2048x128xf32> to vector<512x128xf32>
    %5 = vector.extract_strided_slice %3 {offsets = [512, 0], sizes = [512, 128], strides = [1, 1]} : vector<2048x128xf32> to vector<512x128xf32>
    %6 = arith.maximumf %4, %5 : vector<512x128xf32>
    %7 = vector.extract_strided_slice %3 {offsets = [1024, 0], sizes = [512, 128], strides = [1, 1]} : vector<2048x128xf32> to vector<512x128xf32>
    %8 = vector.extract_strided_slice %3 {offsets = [1536, 0], sizes = [512, 128], strides = [1, 1]} : vector<2048x128xf32> to vector<512x128xf32>
    %9 = arith.maximumf %7, %8 : vector<512x128xf32>
    %10 = arith.maximumf %6, %9 : vector<512x128xf32>
    %c0_4 = arith.constant 0 : index
    %c0_5 = arith.constant 0 : index
    %11 = vector.load %arg3[%c0_4, %c0_5] : memref<1x128xf32, #tpu.memory_space<vmem>>, vector<1x128xf32>
    %12 = vector.broadcast %11 : vector<1x128xf32> to vector<512x128xf32>
    %13 = arith.addf %10, %12 : vector<512x128xf32>
    %cst_6 = arith.constant 0.000000e+00 : f32
    %14 = vector.broadcast %cst_6 : f32 to vector<512x128xf32>
    %15 = arith.maximumf %13, %14 : vector<512x128xf32>
    %c0_7 = arith.constant 0 : index
    %c0_8 = arith.constant 0 : index
    %16 = vector.load %arg4[%c0_7, %c0_8] : memref<512x128xf32, #tpu.memory_space<vmem>>, vector<512x128xf32>
    tpu.vector_store %arg4[%c0_7, %c0_8], %15 {strides = array<i32>} : memref<512x128xf32, #tpu.memory_space<vmem>>, vector<512x128xf32>,
    return
  }
  func.func @transform_0(%arg0: i32) -> (i32, i32, i32) {
    %c0_i32 = arith.constant 0 : i32
    %c0_i32_0 = arith.constant 0 : i32
    %c0_i32_1 = arith.constant 0 : i32
    return %c0_i32, %arg0, %c0_i32_0 : i32, i32, i32
  }
  func.func @transform_1(%arg0: i32) -> (i32, i32) {
    %c0_i32 = arith.constant 0 : i32
    %c0_i32_0 = arith.constant 0 : i32
    %c0_i32_1 = arith.constant 0 : i32
    return %c0_i32, %c0_i32_0 : i32, i32
  }
  func.func @transform_2(%arg0: i32) -> (i32, i32) {
    %c0_i32 = arith.constant 0 : i32
    %c0_i32_0 = arith.constant 0 : i32
    %c0_i32_1 = arith.constant 0 : i32
    return %c0_i32, %c0_i32_0 : i32, i32
  }
  func.func @transform_3(%arg0: i32) -> (i32, i32) {
    %c0_i32 = arith.constant 0 : i32
    %c0_i32_0 = arith.constant 0 : i32
    return %arg0, %c0_i32 : i32, i32
  }
}

module attributes {stable_mosaic.version = 11 : i64} {
  func.func @conv_relu_pool_kernel(%arg0: i32, %arg1: memref<4x128x256xbf16, #tpu.memory_space<vmem>>, %arg2: memref<256x128xbf16, #tpu.memory_space<vmem>>, %arg3: memref<1x128xf32, #tpu.memory_space<vmem>>, %arg4: memref<128x128xf32, #tpu.memory_space<vmem>>) attributes {dimension_semantics = [#tpu.dimension_semantics<parallel>], iteration_bounds = array<i64: 1>, scalar_prefetch = 0 : i64, scratch_operands = 0 : i64, tpu.core_type = #tpu.core_type<tc>, window_params = [{transform_indices = @transform_0, window_bounds = array<i64: 4, 128, 256>}, {pipeline_mode = #tpu.pipeline_mode<synchronous>, transform_indices = @transform_1, window_bounds = array<i64: 256, 128>}, {pipeline_mode = #tpu.pipeline_mode<synchronous>, transform_indices = @transform_2, window_bounds = array<i64: 1, 128>}, {transform_indices = @transform_3, window_bounds = array<i64: 128, 128>}]} {
    %c0 = arith.constant 0 : index
    %c0_0 = arith.constant 0 : index
    %c0_1 = arith.constant 0 : index
    %0 = vector.load %arg1[%c0, %c0_0, %c0_1] : memref<4x128x256xbf16, #tpu.memory_space<vmem>>, vector<4x128x256xbf16>
    %1 = vector.shape_cast %0 : vector<4x128x256xbf16> to vector<512x256xbf16>
    %c0_2 = arith.constant 0 : index
    %c0_3 = arith.constant 0 : index
    %2 = vector.load %arg2[%c0_2, %c0_3] : memref<256x128xbf16, #tpu.memory_space<vmem>>, vector<256x128xbf16>
    %cst = arith.constant dense<0.000000e+00> : vector<512x128xf32>
    %3 = tpu.matmul %1, %2, %cst {dimension_numbers = #tpu.dot_dimension_numbers<[1], [0], [0], [1], [0, 0, 1, 1], [], []>} : vector<512x256xbf16>, vector<256x128xbf16>, vector<512x128xf32> -> vector<512x128xf32>
    %4 = vector.extract_strided_slice %3 {offsets = [0, 0], sizes = [128, 128], strides = [1, 1]} : vector<512x128xf32> to vector<128x128xf32>
    %5 = vector.extract_strided_slice %3 {offsets = [128, 0], sizes = [128, 128], strides = [1, 1]} : vector<512x128xf32> to vector<128x128xf32>
    %6 = arith.maximumf %4, %5 : vector<128x128xf32>
    %7 = vector.extract_strided_slice %3 {offsets = [256, 0], sizes = [128, 128], strides = [1, 1]} : vector<512x128xf32> to vector<128x128xf32>
    %8 = vector.extract_strided_slice %3 {offsets = [384, 0], sizes = [128, 128], strides = [1, 1]} : vector<512x128xf32> to vector<128x128xf32>
    %9 = arith.maximumf %7, %8 : vector<128x128xf32>
    %10 = arith.maximumf %6, %9 : vector<128x128xf32>
    %c0_4 = arith.constant 0 : index
    %c0_5 = arith.constant 0 : index
    %11 = vector.load %arg3[%c0_4, %c0_5] : memref<1x128xf32, #tpu.memory_space<vmem>>, vector<1x128xf32>
    %12 = vector.broadcast %11 : vector<1x128xf32> to vector<128x128xf32>
    %13 = arith.addf %10, %12 : vector<128x128xf32>
    %cst_6 = arith.constant 0.000000e+00 : f32
    %14 = vector.broadcast %cst_6 : f32 to vector<128x128xf32>
    %15 = arith.maximumf %13, %14 : vector<128x128xf32>
    %c0_7 = arith.constant 0 : index
    %c0_8 = arith.constant 0 : index
    %16 = vector.load %arg4[%c0_7, %c0_8] : memref<128x128xf32, #tpu.memory_space<vmem>>, vector<128x128xf32>
    tpu.vector_store %arg4[%c0_7, %c0_8], %15 {strides = array<i32>} : memref<128x128xf32, #tpu.memory_space<vmem>>, vector<128x128xf32>,
    return
  }
  func.func @transform_0(%arg0: i32) -> (i32, i32, i32) {
    %c0_i32 = arith.constant 0 : i32
    %c0_i32_0 = arith.constant 0 : i32
    %c0_i32_1 = arith.constant 0 : i32
    return %c0_i32, %arg0, %c0_i32_0 : i32, i32, i32
  }
  func.func @transform_1(%arg0: i32) -> (i32, i32) {
    %c0_i32 = arith.constant 0 : i32
    %c0_i32_0 = arith.constant 0 : i32
    %c0_i32_1 = arith.constant 0 : i32
    return %c0_i32, %c0_i32_0 : i32, i32
  }
  func.func @transform_2(%arg0: i32) -> (i32, i32) {
    %c0_i32 = arith.constant 0 : i32
    %c0_i32_0 = arith.constant 0 : i32
    %c0_i32_1 = arith.constant 0 : i32
    return %c0_i32, %c0_i32_0 : i32, i32
  }
  func.func @transform_3(%arg0: i32) -> (i32, i32) {
    %c0_i32 = arith.constant 0 : i32
    %c0_i32_0 = arith.constant 0 : i32
    return %arg0, %c0_i32 : i32, i32
  }
}

module attributes {stable_mosaic.version = 11 : i64} {
  func.func @mlp_kernel(%arg0: i32, %arg1: memref<16x512xbf16, #tpu.memory_space<vmem>>, %arg2: memref<512x128xbf16, #tpu.memory_space<vmem>>, %arg3: memref<1x128xf32, #tpu.memory_space<vmem>>, %arg4: memref<128x128xbf16, #tpu.memory_space<vmem>>, %arg5: memref<1x128xf32, #tpu.memory_space<vmem>>, %arg6: memref<128x128xbf16, #tpu.memory_space<vmem>>, %arg7: memref<1x128xf32, #tpu.memory_space<vmem>>, %arg8: memref<16x128xf32, #tpu.memory_space<vmem>>) attributes {dimension_semantics = [#tpu.dimension_semantics<parallel>], iteration_bounds = array<i64: 1>, scalar_prefetch = 0 : i64, scratch_operands = 0 : i64, tpu.core_type = #tpu.core_type<tc>, window_params = [{transform_indices = @transform_0, window_bounds = array<i64: 16, 512>}, {pipeline_mode = #tpu.pipeline_mode<synchronous>, transform_indices = @transform_1, window_bounds = array<i64: 512, 128>}, {pipeline_mode = #tpu.pipeline_mode<synchronous>, transform_indices = @transform_2, window_bounds = array<i64: 1, 128>}, {pipeline_mode = #tpu.pipeline_mode<synchronous>, transform_indices = @transform_3, window_bounds = array<i64: 128, 128>}, {pipeline_mode = #tpu.pipeline_mode<synchronous>, transform_indices = @transform_4, window_bounds = array<i64: 1, 128>}, {pipeline_mode = #tpu.pipeline_mode<synchronous>, transform_indices = @transform_5, window_bounds = array<i64: 128, 128>}, {pipeline_mode = #tpu.pipeline_mode<synchronous>, transform_indices = @transform_6, window_bounds = array<i64: 1, 128>}, {transform_indices = @transform_7, window_bounds = array<i64: 16, 128>}]} {
    %c0 = arith.constant 0 : index
    %c0_0 = arith.constant 0 : index
    %0 = vector.load %arg1[%c0, %c0_0] : memref<16x512xbf16, #tpu.memory_space<vmem>>, vector<16x512xbf16>
    %c0_1 = arith.constant 0 : index
    %c0_2 = arith.constant 0 : index
    %1 = vector.load %arg2[%c0_1, %c0_2] : memref<512x128xbf16, #tpu.memory_space<vmem>>, vector<512x128xbf16>
    %cst = arith.constant dense<0.000000e+00> : vector<16x128xf32>
    %2 = tpu.matmul %0, %1, %cst {dimension_numbers = #tpu.dot_dimension_numbers<[1], [0], [0], [1], [0, 0, 1, 1], [], []>} : vector<16x512xbf16>, vector<512x128xbf16>, vector<16x128xf32> -> vector<16x128xf32>
    %c0_3 = arith.constant 0 : index
    %c0_4 = arith.constant 0 : index
    %3 = vector.load %arg3[%c0_3, %c0_4] : memref<1x128xf32, #tpu.memory_space<vmem>>, vector<1x128xf32>
    %4 = vector.broadcast %3 : vector<1x128xf32> to vector<16x128xf32>
    %5 = arith.addf %2, %4 : vector<16x128xf32>
    %cst_5 = arith.constant 0.000000e+00 : f32
    %6 = vector.broadcast %cst_5 : f32 to vector<16x128xf32>
    %7 = arith.maximumf %5, %6 : vector<16x128xf32>
    %8 = arith.truncf %7 : vector<16x128xf32> to vector<16x128xbf16>
    %c0_6 = arith.constant 0 : index
    %c0_7 = arith.constant 0 : index
    %9 = vector.load %arg4[%c0_6, %c0_7] : memref<128x128xbf16, #tpu.memory_space<vmem>>, vector<128x128xbf16>
    %cst_8 = arith.constant dense<0.000000e+00> : vector<16x128xf32>
    %10 = tpu.matmul %8, %9, %cst_8 {dimension_numbers = #tpu.dot_dimension_numbers<[1], [0], [0], [1], [0, 0, 1, 1], [], []>} : vector<16x128xbf16>, vector<128x128xbf16>, vector<16x128xf32> -> vector<16x128xf32>
    %c0_9 = arith.constant 0 : index
    %c0_10 = arith.constant 0 : index
    %11 = vector.load %arg5[%c0_9, %c0_10] : memref<1x128xf32, #tpu.memory_space<vmem>>, vector<1x128xf32>
    %12 = vector.broadcast %11 : vector<1x128xf32> to vector<16x128xf32>
    %13 = arith.addf %10, %12 : vector<16x128xf32>
    %cst_11 = arith.constant 0.000000e+00 : f32
    %14 = vector.broadcast %cst_11 : f32 to vector<16x128xf32>
    %15 = arith.maximumf %13, %14 : vector<16x128xf32>
    %16 = arith.truncf %15 : vector<16x128xf32> to vector<16x128xbf16>
    %c0_12 = arith.constant 0 : index
    %c0_13 = arith.constant 0 : index
    %17 = vector.load %arg6[%c0_12, %c0_13] : memref<128x128xbf16, #tpu.memory_space<vmem>>, vector<128x128xbf16>
    %cst_14 = arith.constant dense<0.000000e+00> : vector<16x128xf32>
    %18 = tpu.matmul %16, %17, %cst_14 {dimension_numbers = #tpu.dot_dimension_numbers<[1], [0], [0], [1], [0, 0, 1, 1], [], []>} : vector<16x128xbf16>, vector<128x128xbf16>, vector<16x128xf32> -> vector<16x128xf32>
    %c0_15 = arith.constant 0 : index
    %c0_16 = arith.constant 0 : index
    %19 = vector.load %arg7[%c0_15, %c0_16] : memref<1x128xf32, #tpu.memory_space<vmem>>, vector<1x128xf32>
    %20 = vector.broadcast %19 : vector<1x128xf32> to vector<16x128xf32>
    %21 = arith.addf %18, %20 : vector<16x128xf32>
    %c0_17 = arith.constant 0 : index
    %c0_18 = arith.constant 0 : index
    %22 = vector.load %arg8[%c0_17, %c0_18] : memref<16x128xf32, #tpu.memory_space<vmem>>, vector<16x128xf32>
    tpu.vector_store %arg8[%c0_17, %c0_18], %21 {strides = array<i32>} : memref<16x128xf32, #tpu.memory_space<vmem>>, vector<16x128xf32>,
    return
  }
  func.func @transform_0(%arg0: i32) -> (i32, i32) {
    %c0_i32 = arith.constant 0 : i32
    %c0_i32_0 = arith.constant 0 : i32
    return %arg0, %c0_i32 : i32, i32
  }
  func.func @transform_1(%arg0: i32) -> (i32, i32) {
    %c0_i32 = arith.constant 0 : i32
    %c0_i32_0 = arith.constant 0 : i32
    %c0_i32_1 = arith.constant 0 : i32
    return %c0_i32, %c0_i32_0 : i32, i32
  }
  func.func @transform_2(%arg0: i32) -> (i32, i32) {
    %c0_i32 = arith.constant 0 : i32
    %c0_i32_0 = arith.constant 0 : i32
    %c0_i32_1 = arith.constant 0 : i32
    return %c0_i32, %c0_i32_0 : i32, i32
  }
  func.func @transform_3(%arg0: i32) -> (i32, i32) {
    %c0_i32 = arith.constant 0 : i32
    %c0_i32_0 = arith.constant 0 : i32
    %c0_i32_1 = arith.constant 0 : i32
    return %c0_i32, %c0_i32_0 : i32, i32
  }
  func.func @transform_4(%arg0: i32) -> (i32, i32) {
    %c0_i32 = arith.constant 0 : i32
    %c0_i32_0 = arith.constant 0 : i32
    %c0_i32_1 = arith.constant 0 : i32
    return %c0_i32, %c0_i32_0 : i32, i32
  }
  func.func @transform_5(%arg0: i32) -> (i32, i32) {
    %c0_i32 = arith.constant 0 : i32
    %c0_i32_0 = arith.constant 0 : i32
    %c0_i32_1 = arith.constant 0 : i32
    return %c0_i32, %c0_i32_0 : i32, i32
  }
  func.func @transform_6(%arg0: i32) -> (i32, i32) {
    %c0_i32 = arith.constant 0 : i32
    %c0_i32_0 = arith.constant 0 : i32
    %c0_i32_1 = arith.constant 0 : i32
    return %c0_i32, %c0_i32_0 : i32, i32
  }
  func.func @transform_7(%arg0: i32) -> (i32, i32) {
    %c0_i32 = arith.constant 0 : i32
    %c0_i32_0 = arith.constant 0 : i32
    return %arg0, %c0_i32 : i32, i32
  }
}

</mosaic_0001>

<llo_original>
// kernel: net_forward.3
$region0: #{net_forward.3}
  #allocation0 [shape = 'u32[]', space=smem, size = 0x4, offset = 0x4, fixed_abs, tag = 'smem constant byte address 0x4 - core index']
  #allocation1 [shape = 'u32[72,128]{1,0:T(1,128)}', space=vmem, size = 0x9000, scoped, tag = 'internal scratch']
  %s0 = inlined_call_operand.vmem [shape: bf16[4,512,128], index: 0, kind: input, shape index: {}]
  %s1 = inlined_call_operand.vmem [shape: bf16[128,128], index: 1, kind: input, shape index: {}]
  %s2 = inlined_call_operand.vmem [shape: f32[1,128], index: 2, kind: input, shape index: {}]
  %s3 = inlined_call_operand.vmem [shape: f32[512,128], index: 3, kind: output, shape index: {}]
  %s4 = sld [smem:[#allocation0]]
  $region22: #{net_forward.3} parent=0
    _
  %s6 = ssub.s32 1, %s4
  %s7 = scalar_select 0, %s6, %s4
  // Predicated region
  $region2: #{net_forward.3} parent=0 // pred_check
    _
  $region3: #{net_forward.3} parent=0 // pred_check_branch
    %9 = sbr.rel (0) target = $region5
  $region4: #{net_forward.3} parent=0 // pred_region
    _
  $region5: #{net_forward.3} parent=0 // pred_fallthru
    _
  // Predicated region
  $region6: #{net_forward.3} parent=0 // pred_check
    _
  $region7: #{net_forward.3} parent=0 // pred_check_branch
    %11 = sbr.rel (0) target = $region9
  $region8: #{net_forward.3} parent=0 // pred_region
    _
  $region9: #{net_forward.3} parent=0 // pred_fallthru
    _
  // Predicated region
  $region10: #{net_forward.3} parent=0 // pred_check
    _
  $region11: #{net_forward.3} parent=0 // pred_check_branch
    %13 = sbr.rel (0) target = $region13
  $region12: #{net_forward.3} parent=0 // pred_region
    _
  $region13: #{net_forward.3} parent=0 // pred_fallthru
    _
  %v14 = vld [vmem:[%s0] sm:$0xf]
  %v15 = vld [vmem:[%s0 + $0x4] sm:$0xf]
  %v16 = vld [vmem:[%s0 + $0x8] sm:$0xf]
  %v17 = vld [vmem:[%s0 + $0xc] sm:$0xf]
  %v18 = vld [vmem:[%s0 + $0x10] sm:$0xf]
  %v19 = vld [vmem:[%s0 + $0x14] sm:$0xf]
  %v20 = vld [vmem:[%s0 + $0x18] sm:$0xf]
  %v21 = vld [vmem:[%s0 + $0x1c] sm:$0xf]
  %v22 = vld [vmem:[%s0 + $0x20] sm:$0xf]
  %v23 = vld [vmem:[%s0 + $0x24] sm:$0xf]
  %v24 = vld [vmem:[%s0 + $0x28] sm:$0xf]
  %v25 = vld [vmem:[%s0 + $0x2c] sm:$0xf]
  %v26 = vld [vmem:[%s0 + $0x30] sm:$0xf]
  %v27 = vld [vmem:[%s0 + $0x34] sm:$0xf]
  %v28 = vld [vmem:[%s0 + $0x38] sm:$0xf]
  %v29 = vld [vmem:[%s0 + $0x3c] sm:$0xf]
  %v30 = vld [vmem:[%s0 + $0x40] sm:$0xf]
  %v31 = vld [vmem:[%s0 + $0x44] sm:$0xf]
  %v32 = vld [vmem:[%s0 + $0x48] sm:$0xf]
  %v33 = vld [vmem:[%s0 + $0x4c] sm:$0xf]
  %v34 = vld [vmem:[%s0 + $0x50] sm:$0xf]
  %v35 = vld [vmem:[%s0 + $0x54] sm:$0xf]
  %v36 = vld [vmem:[%s0 + $0x58] sm:$0xf]
  %v37 = vld [vmem:[%s0 + $0x5c] sm:$0xf]
  %v38 = vld [vmem:[%s0 + $0x60] sm:$0xf]
  %v39 = vld [vmem:[%s0 + $0x64] sm:$0xf]
  %v40 = vld [vmem:[%s0 + $0x68] sm:$0xf]
  %v41 = vld [vmem:[%s0 + $0x6c] sm:$0xf]
  %v42 = vld [vmem:[%s0 + $0x70] sm:$0xf]
  %v43 = vld [vmem:[%s0 + $0x74] sm:$0xf]
  %v44 = vld [vmem:[%s0 + $0x78] sm:$0xf]
  %v45 = vld [vmem:[%s0 + $0x7c] sm:$0xf]
  %v46 = vld [vmem:[%s0 + $0x80] sm:$0xf]
  %v47 = vld [vmem:[%s0 + $0x84] sm:$0xf]
  %v48 = vld [vmem:[%s0 + $0x88] sm:$0xf]
  %v49 = vld [vmem:[%s0 + $0x8c] sm:$0xf]
  %v50 = vld [vmem:[%s0 + $0x90] sm:$0xf]
  %v51 = vld [vmem:[%s0 + $0x94] sm:$0xf]
  %v52 = vld [vmem:[%s0 + $0x98] sm:$0xf]
  %v53 = vld [vmem:[%s0 + $0x9c] sm:$0xf]
  %v54 = vld [vmem:[%s0 + $0xa0] sm:$0xf]
  %v55 = vld [vmem:[%s0 + $0xa4] sm:$0xf]
  %v56 = vld [vmem:[%s0 + $0xa8] sm:$0xf]
  %v57 = vld [vmem:[%s0 + $0xac] sm:$0xf]
  %v58 = vld [vmem:[%s0 + $0xb0] sm:$0xf]
  %v59 = vld [vmem:[%s0 + $0xb4] sm:$0xf]
  %v60 = vld [vmem:[%s0 + $0xb8] sm:$0xf]
  %v61 = vld [vmem:[%s0 + $0xbc] sm:$0xf]
  %v62 = vld [vmem:[%s0 + $0xc0] sm:$0xf]
  %v63 = vld [vmem:[%s0 + $0xc4] sm:$0xf]
  %v64 = vld [vmem:[%s0 + $0xc8] sm:$0xf]
  %v65 = vld [vmem:[%s0 + $0xcc] sm:$0xf]
  %v66 = vld [vmem:[%s0 + $0xd0] sm:$0xf]
  %v67 = vld [vmem:[%s0 + $0xd4] sm:$0xf]
  %v68 = vld [vmem:[%s0 + $0xd8] sm:$0xf]
  %v69 = vld [vmem:[%s0 + $0xdc] sm:$0xf]
  %v70 = vld [vmem:[%s0 + $0xe0] sm:$0xf]
  %v71 = vld [vmem:[%s0 + $0xe4] sm:$0xf]
  %v72 = vld [vmem:[%s0 + $0xe8] sm:$0xf]
  %v73 = vld [vmem:[%s0 + $0xec] sm:$0xf]
  %v74 = vld [vmem:[%s0 + $0xf0] sm:$0xf]
  %v75 = vld [vmem:[%s0 + $0xf4] sm:$0xf]
  %v76 = vld [vmem:[%s0 + $0xf8] sm:$0xf]
  %v77 = vld [vmem:[%s0 + $0xfc] sm:$0xf]
  %v78 = vld [vmem:[%s0 + $0x100] sm:$0xf]
  %v79 = vld [vmem:[%s0 + $0x104] sm:$0xf]
  %v80 = vld [vmem:[%s0 + $0x108] sm:$0xf]
  %v81 = vld [vmem:[%s0 + $0x10c] sm:$0xf]
  %v82 = vld [vmem:[%s0 + $0x110] sm:$0xf]
  %v83 = vld [vmem:[%s0 + $0x114] sm:$0xf]
  %v84 = vld [vmem:[%s0 + $0x118] sm:$0xf]
  %v85 = vld [vmem:[%s0 + $0x11c] sm:$0xf]
  %v86 = vld [vmem:[%s0 + $0x120] sm:$0xf]
  %v87 = vld [vmem:[%s0 + $0x124] sm:$0xf]
  %v88 = vld [vmem:[%s0 + $0x128] sm:$0xf]
  %v89 = vld [vmem:[%s0 + $0x12c] sm:$0xf]
  %v90 = vld [vmem:[%s0 + $0x130] sm:$0xf]
  %v91 = vld [vmem:[%s0 + $0x134] sm:$0xf]
  %v92 = vld [vmem:[%s0 + $0x138] sm:$0xf]
  %v93 = vld [vmem:[%s0 + $0x13c] sm:$0xf]
  %v94 = vld [vmem:[%s0 + $0x140] sm:$0xf]
  %v95 = vld [vmem:[%s0 + $0x144] sm:$0xf]
  %v96 = vld [vmem:[%s0 + $0x148] sm:$0xf]
  %v97 = vld [vmem:[%s0 + $0x14c] sm:$0xf]
  %v98 = vld [vmem:[%s0 + $0x150] sm:$0xf]
  %v99 = vld [vmem:[%s0 + $0x154] sm:$0xf]
  %v100 = vld [vmem:[%s0 + $0x158] sm:$0xf]
  %v101 = vld [vmem:[%s0 + $0x15c] sm:$0xf]
  %v102 = vld [vmem:[%s0 + $0x160] sm:$0xf]
  %v103 = vld [vmem:[%s0 + $0x164] sm:$0xf]
  %v104 = vld [vmem:[%s0 + $0x168] sm:$0xf]
  %v105 = vld [vmem:[%s0 + $0x16c] sm:$0xf]
  %v106 = vld [vmem:[%s0 + $0x170] sm:$0xf]
  %v107 = vld [vmem:[%s0 + $0x174] sm:$0xf]
  %v108 = vld [vmem:[%s0 + $0x178] sm:$0xf]
  %v109 = vld [vmem:[%s0 + $0x17c] sm:$0xf]
  %v110 = vld [vmem:[%s0 + $0x180] sm:$0xf]
  %v111 = vld [vmem:[%s0 + $0x184] sm:$0xf]
  %v112 = vld [vmem:[%s0 + $0x188] sm:$0xf]
  %v113 = vld [vmem:[%s0 + $0x18c] sm:$0xf]
  %v114 = vld [vmem:[%s0 + $0x190] sm:$0xf]
  %v115 = vld [vmem:[%s0 + $0x194] sm:$0xf]
  %v116 = vld [vmem:[%s0 + $0x198] sm:$0xf]
  %v117 = vld [vmem:[%s0 + $0x19c] sm:$0xf]
  %v118 = vld [vmem:[%s0 + $0x1a0] sm:$0xf]
  %v119 = vld [vmem:[%s0 + $0x1a4] sm:$0xf]
  %v120 = vld [vmem:[%s0 + $0x1a8] sm:$0xf]
  %v121 = vld [vmem:[%s0 + $0x1ac] sm:$0xf]
  %v122 = vld [vmem:[%s0 + $0x1b0] sm:$0xf]
  %v123 = vld [vmem:[%s0 + $0x1b4] sm:$0xf]
  %v124 = vld [vmem:[%s0 + $0x1b8] sm:$0xf]
  %v125 = vld [vmem:[%s0 + $0x1bc] sm:$0xf]
  %v126 = vld [vmem:[%s0 + $0x1c0] sm:$0xf]
  %v127 = vld [vmem:[%s0 + $0x1c4] sm:$0xf]
  %v128 = vld [vmem:[%s0 + $0x1c8] sm:$0xf]
  %v129 = vld [vmem:[%s0 + $0x1cc] sm:$0xf]
  %v130 = vld [vmem:[%s0 + $0x1d0] sm:$0xf]
  %v131 = vld [vmem:[%s0 + $0x1d4] sm:$0xf]
  %v132 = vld [vmem:[%s0 + $0x1d8] sm:$0xf]
  %v133 = vld [vmem:[%s0 + $0x1dc] sm:$0xf]
  %v134 = vld [vmem:[%s0 + $0x1e0] sm:$0xf]
  %v135 = vld [vmem:[%s0 + $0x1e4] sm:$0xf]
  %v136 = vld [vmem:[%s0 + $0x1e8] sm:$0xf]
  %v137 = vld [vmem:[%s0 + $0x1ec] sm:$0xf]
  %v138 = vld [vmem:[%s0 + $0x1f0] sm:$0xf]
  %v139 = vld [vmem:[%s0 + $0x1f4] sm:$0xf]
  %v140 = vld [vmem:[%s0 + $0x1f8] sm:$0xf]
  %v141 = vld [vmem:[%s0 + $0x1fc] sm:$0xf]
  %v142 = vld [vmem:[%s0 + $0x200] sm:$0xf]
  %v143 = vld [vmem:[%s0 + $0x204] sm:$0xf]
  %v144 = vld [vmem:[%s0 + $0x208] sm:$0xf]
  %v145 = vld [vmem:[%s0 + $0x20c] sm:$0xf]
  %v146 = vld [vmem:[%s0 + $0x210] sm:$0xf]
  %v147 = vld [vmem:[%s0 + $0x214] sm:$0xf]
  %v148 = vld [vmem:[%s0 + $0x218] sm:$0xf]
  %v149 = vld [vmem:[%s0 + $0x21c] sm:$0xf]
  %v150 = vld [vmem:[%s0 + $0x220] sm:$0xf]
  %v151 = vld [vmem:[%s0 + $0x224] sm:$0xf]
  %v152 = vld [vmem:[%s0 + $0x228] sm:$0xf]
  %v153 = vld [vmem:[%s0 + $0x22c] sm:$0xf]
  %v154 = vld [vmem:[%s0 + $0x230] sm:$0xf]
  %v155 = vld [vmem:[%s0 + $0x234] sm:$0xf]
  %v156 = vld [vmem:[%s0 + $0x238] sm:$0xf]
  %v157 = vld [vmem:[%s0 + $0x23c] sm:$0xf]
  %v158 = vld [vmem:[%s0 + $0x240] sm:$0xf]
  %v159 = vld [vmem:[%s0 + $0x244] sm:$0xf]
  %v160 = vld [vmem:[%s0 + $0x248] sm:$0xf]
  %v161 = vld [vmem:[%s0 + $0x24c] sm:$0xf]
  %v162 = vld [vmem:[%s0 + $0x250] sm:$0xf]
  %v163 = vld [vmem:[%s0 + $0x254] sm:$0xf]
  %v164 = vld [vmem:[%s0 + $0x258] sm:$0xf]
  %v165 = vld [vmem:[%s0 + $0x25c] sm:$0xf]
  %v166 = vld [vmem:[%s0 + $0x260] sm:$0xf]
  %v167 = vld [vmem:[%s0 + $0x264] sm:$0xf]
  %v168 = vld [vmem:[%s0 + $0x268] sm:$0xf]
  %v169 = vld [vmem:[%s0 + $0x26c] sm:$0xf]
  %v170 = vld [vmem:[%s0 + $0x270] sm:$0xf]
  %v171 = vld [vmem:[%s0 + $0x274] sm:$0xf]
  %v172 = vld [vmem:[%s0 + $0x278] sm:$0xf]
  %v173 = vld [vmem:[%s0 + $0x27c] sm:$0xf]
  %v174 = vld [vmem:[%s0 + $0x280] sm:$0xf]
  %v175 = vld [vmem:[%s0 + $0x284] sm:$0xf]
  %v176 = vld [vmem:[%s0 + $0x288] sm:$0xf]
  %v177 = vld [vmem:[%s0 + $0x28c] sm:$0xf]
  %v178 = vld [vmem:[%s0 + $0x290] sm:$0xf]
  %v179 = vld [vmem:[%s0 + $0x294] sm:$0xf]
  %v180 = vld [vmem:[%s0 + $0x298] sm:$0xf]
  %v181 = vld [vmem:[%s0 + $0x29c] sm:$0xf]
  %v182 = vld [vmem:[%s0 + $0x2a0] sm:$0xf]
  %v183 = vld [vmem:[%s0 + $0x2a4] sm:$0xf]
  %v184 = vld [vmem:[%s0 + $0x2a8] sm:$0xf]
  %v185 = vld [vmem:[%s0 + $0x2ac] sm:$0xf]
  %v186 = vld [vmem:[%s0 + $0x2b0] sm:$0xf]
  %v187 = vld [vmem:[%s0 + $0x2b4] sm:$0xf]
  %v188 = vld [vmem:[%s0 + $0x2b8] sm:$0xf]
  %v189 = vld [vmem:[%s0 + $0x2bc] sm:$0xf]
  %v190 = vld [vmem:[%s0 + $0x2c0] sm:$0xf]
  %v191 = vld [vmem:[%s0 + $0x2c4] sm:$0xf]
  %v192 = vld [vmem:[%s0 + $0x2c8] sm:$0xf]
  %v193 = vld [vmem:[%s0 + $0x2cc] sm:$0xf]
  %v194 = vld [vmem:[%s0 + $0x2d0] sm:$0xf]
  %v195 = vld [vmem:[%s0 + $0x2d4] sm:$0xf]
  %v196 = vld [vmem:[%s0 + $0x2d8] sm:$0xf]
  %v197 = vld [vmem:[%s0 + $0x2dc] sm:$0xf]
  %v198 = vld [vmem:[%s0 + $0x2e0] sm:$0xf]
  %v199 = vld [vmem:[%s0 + $0x2e4] sm:$0xf]
  %v200 = vld [vmem:[%s0 + $0x2e8] sm:$0xf]
  %v201 = vld [vmem:[%s0 + $0x2ec] sm:$0xf]
  %v202 = vld [vmem:[%s0 + $0x2f0] sm:$0xf]
  %v203 = vld [vmem:[%s0 + $0x2f4] sm:$0xf]
  %v204 = vld [vmem:[%s0 + $0x2f8] sm:$0xf]
  %v205 = vld [vmem:[%s0 + $0x2fc] sm:$0xf]
  %v206 = vld [vmem:[%s0 + $0x300] sm:$0xf]
  %v207 = vld [vmem:[%s0 + $0x304] sm:$0xf]
  %v208 = vld [vmem:[%s0 + $0x308] sm:$0xf]
  %v209 = vld [vmem:[%s0 + $0x30c] sm:$0xf]
  %v210 = vld [vmem:[%s0 + $0x310] sm:$0xf]
  %v211 = vld [vmem:[%s0 + $0x314] sm:$0xf]
  %v212 = vld [vmem:[%s0 + $0x318] sm:$0xf]
  %v213 = vld [vmem:[%s0 + $0x31c] sm:$0xf]
  %v214 = vld [vmem:[%s0 + $0x320] sm:$0xf]
  %v215 = vld [vmem:[%s0 + $0x324] sm:$0xf]
  %v216 = vld [vmem:[%s0 + $0x328] sm:$0xf]
  %v217 = vld [vmem:[%s0 + $0x32c] sm:$0xf]
  %v218 = vld [vmem:[%s0 + $0x330] sm:$0xf]
  %v219 = vld [vmem:[%s0 + $0x334] sm:$0xf]
  %v220 = vld [vmem:[%s0 + $0x338] sm:$0xf]
  %v221 = vld [vmem:[%s0 + $0x33c] sm:$0xf]
  %v222 = vld [vmem:[%s0 + $0x340] sm:$0xf]
  %v223 = vld [vmem:[%s0 + $0x344] sm:$0xf]
  %v224 = vld [vmem:[%s0 + $0x348] sm:$0xf]
  %v225 = vld [vmem:[%s0 + $0x34c] sm:$0xf]
  %v226 = vld [vmem:[%s0 + $0x350] sm:$0xf]
  %v227 = vld [vmem:[%s0 + $0x354] sm:$0xf]
  %v228 = vld [vmem:[%s0 + $0x358] sm:$0xf]
  %v229 = vld [vmem:[%s0 + $0x35c] sm:$0xf]
  %v230 = vld [vmem:[%s0 + $0x360] sm:$0xf]
  %v231 = vld [vmem:[%s0 + $0x364] sm:$0xf]
  %v232 = vld [vmem:[%s0 + $0x368] sm:$0xf]
  %v233 = vld [vmem:[%s0 + $0x36c] sm:$0xf]
  %v234 = vld [vmem:[%s0 + $0x370] sm:$0xf]
  %v235 = vld [vmem:[%s0 + $0x374] sm:$0xf]
  %v236 = vld [vmem:[%s0 + $0x378] sm:$0xf]
  %v237 = vld [vmem:[%s0 + $0x37c] sm:$0xf]
  %v238 = vld [vmem:[%s0 + $0x380] sm:$0xf]
  %v239 = vld [vmem:[%s0 + $0x384] sm:$0xf]
  %v240 = vld [vmem:[%s0 + $0x388] sm:$0xf]
  %v241 = vld [vmem:[%s0 + $0x38c] sm:$0xf]
  %v242 = vld [vmem:[%s0 + $0x390] sm:$0xf]
  %v243 = vld [vmem:[%s0 + $0x394] sm:$0xf]
  %v244 = vld [vmem:[%s0 + $0x398] sm:$0xf]
  %v245 = vld [vmem:[%s0 + $0x39c] sm:$0xf]
  %v246 = vld [vmem:[%s0 + $0x3a0] sm:$0xf]
  %v247 = vld [vmem:[%s0 + $0x3a4] sm:$0xf]
  %v248 = vld [vmem:[%s0 + $0x3a8] sm:$0xf]
  %v249 = vld [vmem:[%s0 + $0x3ac] sm:$0xf]
  %v250 = vld [vmem:[%s0 + $0x3b0] sm:$0xf]
  %v251 = vld [vmem:[%s0 + $0x3b4] sm:$0xf]
  %v252 = vld [vmem:[%s0 + $0x3b8] sm:$0xf]
  %v253 = vld [vmem:[%s0 + $0x3bc] sm:$0xf]
  %v254 = vld [vmem:[%s0 + $0x3c0] sm:$0xf]
  %v255 = vld [vmem:[%s0 + $0x3c4] sm:$0xf]
  %v256 = vld [vmem:[%s0 + $0x3c8] sm:$0xf]
  %v257 = vld [vmem:[%s0 + $0x3cc] sm:$0xf]
  %v258 = vld [vmem:[%s0 + $0x3d0] sm:$0xf]
  %v259 = vld [vmem:[%s0 + $0x3d4] sm:$0xf]
  %v260 = vld [vmem:[%s0 + $0x3d8] sm:$0xf]
  %v261 = vld [vmem:[%s0 + $0x3dc] sm:$0xf]
  %v262 = vld [vmem:[%s0 + $0x3e0] sm:$0xf]
  %v263 = vld [vmem:[%s0 + $0x3e4] sm:$0xf]
  %v264 = vld [vmem:[%s0 + $0x3e8] sm:$0xf]
  %v265 = vld [vmem:[%s0 + $0x3ec] sm:$0xf]
  %v266 = vld [vmem:[%s0 + $0x3f0] sm:$0xf]
  %v267 = vld [vmem:[%s0 + $0x3f4] sm:$0xf]
  %v268 = vld [vmem:[%s0 + $0x3f8] sm:$0xf]
  %v269 = vld [vmem:[%s0 + $0x3fc] sm:$0xf]
  %v270 = vld [vmem:[%s1] sm:$0xf]
  %v271 = vld [vmem:[%s1 + $0x4] sm:$0xf]
  %v272 = vld [vmem:[%s1 + $0x8] sm:$0xf]
  %v273 = vld [vmem:[%s1 + $0xc] sm:$0xf]
  %v274 = vld [vmem:[%s1 + $0x10] sm:$0xf]
  %v275 = vld [vmem:[%s1 + $0x14] sm:$0xf]
  %v276 = vld [vmem:[%s1 + $0x18] sm:$0xf]
  %v277 = vld [vmem:[%s1 + $0x1c] sm:$0xf]
  %v278 = vld [vmem:[%s1 + $0x20] sm:$0xf]
  %v279 = vld [vmem:[%s1 + $0x24] sm:$0xf]
  %v280 = vld [vmem:[%s1 + $0x28] sm:$0xf]
  %v281 = vld [vmem:[%s1 + $0x2c] sm:$0xf]
  %v282 = vld [vmem:[%s1 + $0x30] sm:$0xf]
  %v283 = vld [vmem:[%s1 + $0x34] sm:$0xf]
  %v284 = vld [vmem:[%s1 + $0x38] sm:$0xf]
  %v285 = vld [vmem:[%s1 + $0x3c] sm:$0xf]
  %v542 = vunpack.c.l.b16 %v14
  %v543 = vunpack.c.l.b16 %v15
  %v544 = vunpack.c.l.b16 %v16
  %v545 = vunpack.c.l.b16 %v17
  %v546 = vunpack.c.l.b16 %v18
  %v547 = vunpack.c.l.b16 %v19
  %v548 = vunpack.c.l.b16 %v20
  %v549 = vunpack.c.l.b16 %v21
  %v550 = vunpack.c.l.b16 %v22
  %v551 = vunpack.c.l.b16 %v23
  %v552 = vunpack.c.l.b16 %v24
  %v553 = vunpack.c.l.b16 %v25
  %v554 = vunpack.c.l.b16 %v26
  %v555 = vunpack.c.l.b16 %v27
  %v556 = vunpack.c.l.b16 %v28
  %v557 = vunpack.c.l.b16 %v29
  %v558 = vunpack.c.l.b16 %v30
  %v559 = vunpack.c.l.b16 %v31
  %v560 = vunpack.c.l.b16 %v32
  %v561 = vunpack.c.l.b16 %v33
  %v562 = vunpack.c.l.b16 %v34
  %v563 = vunpack.c.l.b16 %v35
  %v564 = vunpack.c.l.b16 %v36
  %v565 = vunpack.c.l.b16 %v37
  %v566 = vunpack.c.l.b16 %v38
  %v567 = vunpack.c.l.b16 %v39
  %v568 = vunpack.c.l.b16 %v40
  %v569 = vunpack.c.l.b16 %v41
  %v570 = vunpack.c.l.b16 %v42
  %v571 = vunpack.c.l.b16 %v43
  %v572 = vunpack.c.l.b16 %v44
  %v573 = vunpack.c.l.b16 %v45
  %v574 = vunpack.c.l.b16 %v46
  %v575 = vunpack.c.l.b16 %v47
  %v576 = vunpack.c.l.b16 %v48
  %v577 = vunpack.c.l.b16 %v49
  %v578 = vunpack.c.l.b16 %v50
  %v579 = vunpack.c.l.b16 %v51
  %v580 = vunpack.c.l.b16 %v52
  %v581 = vunpack.c.l.b16 %v53
  %v582 = vunpack.c.l.b16 %v54
  %v583 = vunpack.c.l.b16 %v55
  %v584 = vunpack.c.l.b16 %v56
  %v585 = vunpack.c.l.b16 %v57
  %v586 = vunpack.c.l.b16 %v58
  %v587 = vunpack.c.l.b16 %v59
  %v588 = vunpack.c.l.b16 %v60
  %v589 = vunpack.c.l.b16 %v61
  %v590 = vunpack.c.l.b16 %v62
  %v591 = vunpack.c.l.b16 %v63
  %v592 = vunpack.c.l.b16 %v64
  %v593 = vunpack.c.l.b16 %v65
  %v594 = vunpack.c.l.b16 %v66
  %v595 = vunpack.c.l.b16 %v67
  %v596 = vunpack.c.l.b16 %v68
  %v597 = vunpack.c.l.b16 %v69
  %v598 = vunpack.c.l.b16 %v70
  %v599 = vunpack.c.l.b16 %v71
  %v600 = vunpack.c.l.b16 %v72
  %v601 = vunpack.c.l.b16 %v73
  %v602 = vunpack.c.l.b16 %v74
  %v603 = vunpack.c.l.b16 %v75
  %v604 = vunpack.c.l.b16 %v76
  %v605 = vunpack.c.l.b16 %v77
  %v606 = vunpack.c.l.b16 %v78
  %v607 = vunpack.c.l.b16 %v79
  %v608 = vunpack.c.l.b16 %v80
  %v609 = vunpack.c.l.b16 %v81
  %v610 = vunpack.c.l.b16 %v82
  %v611 = vunpack.c.l.b16 %v83
  %v612 = vunpack.c.l.b16 %v84
  %v613 = vunpack.c.l.b16 %v85
  %v614 = vunpack.c.l.b16 %v86
  %v615 = vunpack.c.l.b16 %v87
  %v616 = vunpack.c.l.b16 %v88
  %v617 = vunpack.c.l.b16 %v89
  %v618 = vunpack.c.l.b16 %v90
  %v619 = vunpack.c.l.b16 %v91
  %v620 = vunpack.c.l.b16 %v92
  %v621 = vunpack.c.l.b16 %v93
  %v622 = vunpack.c.l.b16 %v94
  %v623 = vunpack.c.l.b16 %v95
  %v624 = vunpack.c.l.b16 %v96
  %v625 = vunpack.c.l.b16 %v97
  %v626 = vunpack.c.l.b16 %v98
  %v627 = vunpack.c.l.b16 %v99
  %v628 = vunpack.c.l.b16 %v100
  %v629 = vunpack.c.l.b16 %v101
  %v630 = vunpack.c.l.b16 %v102
  %v631 = vunpack.c.l.b16 %v103
  %v632 = vunpack.c.l.b16 %v104
  %v633 = vunpack.c.l.b16 %v105
  %v634 = vunpack.c.l.b16 %v106
  %v635 = vunpack.c.l.b16 %v107
  %v636 = vunpack.c.l.b16 %v108
  %v637 = vunpack.c.l.b16 %v109
  %v638 = vunpack.c.l.b16 %v110
  %v639 = vunpack.c.l.b16 %v111
  %v640 = vunpack.c.l.b16 %v112
  %v641 = vunpack.c.l.b16 %v113
  %v642 = vunpack.c.l.b16 %v114
  %v643 = vunpack.c.l.b16 %v115
  %v644 = vunpack.c.l.b16 %v116
  %v645 = vunpack.c.l.b16 %v117
  %v646 = vunpack.c.l.b16 %v118
  %v647 = vunpack.c.l.b16 %v119
  %v648 = vunpack.c.l.b16 %v120
  %v649 = vunpack.c.l.b16 %v121
  %v650 = vunpack.c.l.b16 %v122
  %v651 = vunpack.c.l.b16 %v123
  %v652 = vunpack.c.l.b16 %v124
  %v653 = vunpack.c.l.b16 %v125
  %v654 = vunpack.c.l.b16 %v126
  %v655 = vunpack.c.l.b16 %v127
  %v656 = vunpack.c.l.b16 %v128
  %v657 = vunpack.c.l.b16 %v129
  %v658 = vunpack.c.l.b16 %v130
  %v659 = vunpack.c.l.b16 %v131
  %v660 = vunpack.c.l.b16 %v132
  %v661 = vunpack.c.l.b16 %v133
  %v662 = vunpack.c.l.b16 %v134
  %v663 = vunpack.c.l.b16 %v135
  %v664 = vunpack.c.l.b16 %v136
  %v665 = vunpack.c.l.b16 %v137
  %v666 = vunpack.c.l.b16 %v138
  %v667 = vunpack.c.l.b16 %v139
  %v668 = vunpack.c.l.b16 %v140
  %v669 = vunpack.c.l.b16 %v141
  %v670 = vunpack.c.l.b16 %v142
  %v671 = vunpack.c.l.b16 %v143
  %v672 = vunpack.c.l.b16 %v144
  %v673 = vunpack.c.l.b16 %v145
  %v674 = vunpack.c.l.b16 %v146
  %v675 = vunpack.c.l.b16 %v147
  %v676 = vunpack.c.l.b16 %v148
  %v677 = vunpack.c.l.b16 %v149
  %v678 = vunpack.c.l.b16 %v150
  %v679 = vunpack.c.l.b16 %v151
  %v680 = vunpack.c.l.b16 %v152
  %v681 = vunpack.c.l.b16 %v153
  %v682 = vunpack.c.l.b16 %v154
  %v683 = vunpack.c.l.b16 %v155
  %v684 = vunpack.c.l.b16 %v156
  %v685 = vunpack.c.l.b16 %v157
  %v686 = vunpack.c.l.b16 %v158
  %v687 = vunpack.c.l.b16 %v159
  %v688 = vunpack.c.l.b16 %v160
  %v689 = vunpack.c.l.b16 %v161
  %v690 = vunpack.c.l.b16 %v162
  %v691 = vunpack.c.l.b16 %v163
  %v692 = vunpack.c.l.b16 %v164
  %v693 = vunpack.c.l.b16 %v165
  %v694 = vunpack.c.l.b16 %v166
  %v695 = vunpack.c.l.b16 %v167
  %v696 = vunpack.c.l.b16 %v168
  %v697 = vunpack.c.l.b16 %v169
  %v698 = vunpack.c.l.b16 %v170
  %v699 = vunpack.c.l.b16 %v171
  %v700 = vunpack.c.l.b16 %v172
  %v701 = vunpack.c.l.b16 %v173
  %v702 = vunpack.c.l.b16 %v174
  %v703 = vunpack.c.l.b16 %v175
  %v704 = vunpack.c.l.b16 %v176
  %v705 = vunpack.c.l.b16 %v177
  %v706 = vunpack.c.l.b16 %v178
  %v707 = vunpack.c.l.b16 %v179
  %v708 = vunpack.c.l.b16 %v180
  %v709 = vunpack.c.l.b16 %v181
  %v710 = vunpack.c.l.b16 %v182
  %v711 = vunpack.c.l.b16 %v183
  %v712 = vunpack.c.l.b16 %v184
  %v713 = vunpack.c.l.b16 %v185
  %v714 = vunpack.c.l.b16 %v186
  %v715 = vunpack.c.l.b16 %v187
  %v716 = vunpack.c.l.b16 %v188
  %v717 = vunpack.c.l.b16 %v189
  %v718 = vunpack.c.l.b16 %v190
  %v719 = vunpack.c.l.b16 %v191
  %v720 = vunpack.c.l.b16 %v192
  %v721 = vunpack.c.l.b16 %v193
  %v722 = vunpack.c.l.b16 %v194
  %v723 = vunpack.c.l.b16 %v195
  %v724 = vunpack.c.l.b16 %v196
  %v725 = vunpack.c.l.b16 %v197
  %v726 = vunpack.c.l.b16 %v198
  %v727 = vunpack.c.l.b16 %v199
  %v728 = vunpack.c.l.b16 %v200
  %v729 = vunpack.c.l.b16 %v201
  %v730 = vunpack.c.l.b16 %v202
  %v731 = vunpack.c.l.b16 %v203
  %v732 = vunpack.c.l.b16 %v204
  %v733 = vunpack.c.l.b16 %v205
  %v734 = vunpack.c.l.b16 %v206
  %v735 = vunpack.c.l.b16 %v207
  %v736 = vunpack.c.l.b16 %v208
  %v737 = vunpack.c.l.b16 %v209
  %v738 = vunpack.c.l.b16 %v210
  %v739 = vunpack.c.l.b16 %v211
  %v740 = vunpack.c.l.b16 %v212
  %v741 = vunpack.c.l.b16 %v213
  %v742 = vunpack.c.l.b16 %v214
  %v743 = vunpack.c.l.b16 %v215
  %v744 = vunpack.c.l.b16 %v216
  %v745 = vunpack.c.l.b16 %v217
  %v746 = vunpack.c.l.b16 %v218
  %v747 = vunpack.c.l.b16 %v219
  %v748 = vunpack.c.l.b16 %v220
  %v749 = vunpack.c.l.b16 %v221
  %v750 = vunpack.c.l.b16 %v222
  %v751 = vunpack.c.l.b16 %v223
  %v752 = vunpack.c.l.b16 %v224
  %v753 = vunpack.c.l.b16 %v225
  %v754 = vunpack.c.l.b16 %v226
  %v755 = vunpack.c.l.b16 %v227
  %v756 = vunpack.c.l.b16 %v228
  %v757 = vunpack.c.l.b16 %v229
  %v758 = vunpack.c.l.b16 %v230
  %v759 = vunpack.c.l.b16 %v231
  %v760 = vunpack.c.l.b16 %v232
  %v761 = vunpack.c.l.b16 %v233
  %v762 = vunpack.c.l.b16 %v234
  %v763 = vunpack.c.l.b16 %v235
  %v764 = vunpack.c.l.b16 %v236
  %v765 = vunpack.c.l.b16 %v237
  %v766 = vunpack.c.l.b16 %v238
  %v767 = vunpack.c.l.b16 %v239
  %v768 = vunpack.c.l.b16 %v240
  %v769 = vunpack.c.l.b16 %v241
  %v770 = vunpack.c.l.b16 %v242
  %v771 = vunpack.c.l.b16 %v243
  %v772 = vunpack.c.l.b16 %v244
  %v773 = vunpack.c.l.b16 %v245
  %v774 = vunpack.c.l.b16 %v246
  %v775 = vunpack.c.l.b16 %v247
  %v776 = vunpack.c.l.b16 %v248
  %v777 = vunpack.c.l.b16 %v249
  %v778 = vunpack.c.l.b16 %v250
  %v779 = vunpack.c.l.b16 %v251
  %v780 = vunpack.c.l.b16 %v252
  %v781 = vunpack.c.l.b16 %v253
  %v782 = vunpack.c.l.b16 %v254
  %v783 = vunpack.c.l.b16 %v255
  %v784 = vunpack.c.l.b16 %v256
  %v785 = vunpack.c.l.b16 %v257
  %v786 = vunpack.c.l.b16 %v258
  %v787 = vunpack.c.l.b16 %v259
  %v788 = vunpack.c.l.b16 %v260
  %v789 = vunpack.c.l.b16 %v261
  %v790 = vunpack.c.l.b16 %v262
  %v791 = vunpack.c.l.b16 %v263
  %v792 = vunpack.c.l.b16 %v264
  %v793 = vunpack.c.l.b16 %v265
  %v794 = vunpack.c.l.b16 %v266
  %v795 = vunpack.c.l.b16 %v267
  %v796 = vunpack.c.l.b16 %v268
  %v797 = vunpack.c.l.b16 %v269
  %v798 = vpack.c.b16 %v543, %v542
  %v799 = vpack.c.b16 %v545, %v544
  %v800 = vpack.c.b16 %v547, %v546
  %v801 = vpack.c.b16 %v549, %v548
  %v802 = vpack.c.b16 %v551, %v550
  %v803 = vpack.c.b16 %v553, %v552
  %v804 = vpack.c.b16 %v555, %v554
  %v805 = vpack.c.b16 %v557, %v556
  %v806 = vpack.c.b16 %v559, %v558
  %v807 = vpack.c.b16 %v561, %v560
  %v808 = vpack.c.b16 %v563, %v562
  %v809 = vpack.c.b16 %v565, %v564
  %v810 = vpack.c.b16 %v567, %v566
  %v811 = vpack.c.b16 %v569, %v568
  %v812 = vpack.c.b16 %v571, %v570
  %v813 = vpack.c.b16 %v573, %v572
  %v814 = vpack.c.b16 %v575, %v574
  %v815 = vpack.c.b16 %v577, %v576
  %v816 = vpack.c.b16 %v579, %v578
  %v817 = vpack.c.b16 %v581, %v580
  %v818 = vpack.c.b16 %v583, %v582
  %v819 = vpack.c.b16 %v585, %v584
  %v820 = vpack.c.b16 %v587, %v586
  %v821 = vpack.c.b16 %v589, %v588
  %v822 = vpack.c.b16 %v591, %v590
  %v823 = vpack.c.b16 %v593, %v592
  %v824 = vpack.c.b16 %v595, %v594
  %v825 = vpack.c.b16 %v597, %v596
  %v826 = vpack.c.b16 %v599, %v598
  %v827 = vpack.c.b16 %v601, %v600
  %v828 = vpack.c.b16 %v603, %v602
  %v829 = vpack.c.b16 %v605, %v604
  %v830 = vpack.c.b16 %v607, %v606
  %v831 = vpack.c.b16 %v609, %v608
  %v832 = vpack.c.b16 %v611, %v610
  %v833 = vpack.c.b16 %v613, %v612
  %v834 = vpack.c.b16 %v615, %v614
  %v835 = vpack.c.b16 %v617, %v616
  %v836 = vpack.c.b16 %v619, %v618
  %v837 = vpack.c.b16 %v621, %v620
  %v838 = vpack.c.b16 %v623, %v622
  %v839 = vpack.c.b16 %v625, %v624
  %v840 = vpack.c.b16 %v627, %v626
  %v841 = vpack.c.b16 %v629, %v628
  %v842 = vpack.c.b16 %v631, %v630
  %v843 = vpack.c.b16 %v633, %v632
  %v844 = vpack.c.b16 %v635, %v634
  %v845 = vpack.c.b16 %v637, %v636
  %v846 = vpack.c.b16 %v639, %v638
  %v847 = vpack.c.b16 %v641, %v640
  %v848 = vpack.c.b16 %v643, %v642
  %v849 = vpack.c.b16 %v645, %v644
  %v850 = vpack.c.b16 %v647, %v646
  %v851 = vpack.c.b16 %v649, %v648
  %v852 = vpack.c.b16 %v651, %v650
  %v853 = vpack.c.b16 %v653, %v652
  %v854 = vpack.c.b16 %v655, %v654
  %v855 = vpack.c.b16 %v657, %v656
  %v856 = vpack.c.b16 %v659, %v658
  %v857 = vpack.c.b16 %v661, %v660
  %v858 = vpack.c.b16 %v663, %v662
  %v859 = vpack.c.b16 %v665, %v664
  %v860 = vpack.c.b16 %v667, %v666
  %v861 = vpack.c.b16 %v669, %v668
  %v862 = vpack.c.b16 %v671, %v670
  %v863 = vpack.c.b16 %v673, %v672
  %v864 = vpack.c.b16 %v675, %v674
  %v865 = vpack.c.b16 %v677, %v676
  %v866 = vpack.c.b16 %v679, %v678
  %v867 = vpack.c.b16 %v681, %v680
  %v868 = vpack.c.b16 %v683, %v682
  %v869 = vpack.c.b16 %v685, %v684
  %v870 = vpack.c.b16 %v687, %v686
  %v871 = vpack.c.b16 %v689, %v688
  %v872 = vpack.c.b16 %v691, %v690
  %v873 = vpack.c.b16 %v693, %v692
  %v874 = vpack.c.b16 %v695, %v694
  %v875 = vpack.c.b16 %v697, %v696
  %v876 = vpack.c.b16 %v699, %v698
  %v877 = vpack.c.b16 %v701, %v700
  %v878 = vpack.c.b16 %v703, %v702
  %v879 = vpack.c.b16 %v705, %v704
  %v880 = vpack.c.b16 %v707, %v706
  %v881 = vpack.c.b16 %v709, %v708
  %v882 = vpack.c.b16 %v711, %v710
  %v883 = vpack.c.b16 %v713, %v712
  %v884 = vpack.c.b16 %v715, %v714
  %v885 = vpack.c.b16 %v717, %v716
  %v886 = vpack.c.b16 %v719, %v718
  %v887 = vpack.c.b16 %v721, %v720
  %v888 = vpack.c.b16 %v723, %v722
  %v889 = vpack.c.b16 %v725, %v724
  %v890 = vpack.c.b16 %v727, %v726
  %v891 = vpack.c.b16 %v729, %v728
  %v892 = vpack.c.b16 %v731, %v730
  %v893 = vpack.c.b16 %v733, %v732
  %v894 = vpack.c.b16 %v735, %v734
  %v895 = vpack.c.b16 %v737, %v736
  %v896 = vpack.c.b16 %v739, %v738
  %v897 = vpack.c.b16 %v741, %v740
  %v898 = vpack.c.b16 %v743, %v742
  %v899 = vpack.c.b16 %v745, %v744
  %v900 = vpack.c.b16 %v747, %v746
  %v901 = vpack.c.b16 %v749, %v748
  %v902 = vpack.c.b16 %v751, %v750
  %v903 = vpack.c.b16 %v753, %v752
  %v904 = vpack.c.b16 %v755, %v754
  %v905 = vpack.c.b16 %v757, %v756
  %v906 = vpack.c.b16 %v759, %v758
  %v907 = vpack.c.b16 %v761, %v760
  %v908 = vpack.c.b16 %v763, %v762
  %v909 = vpack.c.b16 %v765, %v764
  %v910 = vpack.c.b16 %v767, %v766
  %v911 = vpack.c.b16 %v769, %v768
  %v912 = vpack.c.b16 %v771, %v770
  %v913 = vpack.c.b16 %v773, %v772
  %v914 = vpack.c.b16 %v775, %v774
  %v915 = vpack.c.b16 %v777, %v776
  %v916 = vpack.c.b16 %v779, %v778
  %v917 = vpack.c.b16 %v781, %v780
  %v918 = vpack.c.b16 %v783, %v782
  %v919 = vpack.c.b16 %v785, %v784
  %v920 = vpack.c.b16 %v787, %v786
  %v921 = vpack.c.b16 %v789, %v788
  %v922 = vpack.c.b16 %v791, %v790
  %v923 = vpack.c.b16 %v793, %v792
  %v924 = vpack.c.b16 %v795, %v794
  %v925 = vpack.c.b16 %v797, %v796
  %v1070 = vunpack.c.l.b16 %v270
  %v1071 = vunpack.c.l.b16 %v271
  %v1072 = vunpack.c.l.b16 %v272
  %v1073 = vunpack.c.l.b16 %v273
  %v1074 = vunpack.c.l.b16 %v274
  %v1075 = vunpack.c.l.b16 %v275
  %v1076 = vunpack.c.l.b16 %v276
  %v1077 = vunpack.c.l.b16 %v277
  %v1078 = vunpack.c.l.b16 %v278
  %v1079 = vunpack.c.l.b16 %v279
  %v1080 = vunpack.c.l.b16 %v280
  %v1081 = vunpack.c.l.b16 %v281
  %v1082 = vunpack.c.l.b16 %v282
  %v1083 = vunpack.c.l.b16 %v283
  %v1084 = vunpack.c.l.b16 %v284
  %v1085 = vunpack.c.l.b16 %v285
  %v1086 = vpack.c.b16 %v1071, %v1070
  %v1087 = vpack.c.b16 %v1073, %v1072
  %v1088 = vpack.c.b16 %v1075, %v1074
  %v1089 = vpack.c.b16 %v1077, %v1076
  %v1090 = vpack.c.b16 %v1079, %v1078
  %v1091 = vpack.c.b16 %v1081, %v1080
  %v1092 = vpack.c.b16 %v1083, %v1082
  %v1093 = vpack.c.b16 %v1085, %v1084
  %1102 = vmatpush.bf16.msra.mxu0 %v1093
  %1103 = vmatpush.bf16.msra.mxu0 %v1092
  %1104 = vmatpush.bf16.msra.mxu0 %v1091
  %1105 = vmatpush.bf16.msra.mxu0 %v1090
  %1106 = vmatpush.bf16.msra.mxu0 %v1089
  %1107 = vmatpush.bf16.msra.mxu0 %v1088
  %1108 = vmatpush.bf16.msra.mxu0 %v1087
  %1109 = vmatpush.bf16.msra.mxu0 %v1086
  %1110 = vmatmul.bf16.gmra.mxu0 %v798
  %v1111 = vpop.f32.mrf.mxu0
  %v1112 = vadd.f32 0.0, %v1111
  %v1113 = vpop.f32.mrf.mxu0
  %v1114 = vadd.f32 0.0, %v1113
  %1115 = vmatmul.bf16.gmra.mxu0 %v799
  %v1116 = vpop.f32.mrf.mxu0
  %v1117 = vadd.f32 0.0, %v1116
  %v1118 = vpop.f32.mrf.mxu0
  %v1119 = vadd.f32 0.0, %v1118
  %1120 = vmatmul.bf16.gmra.mxu0 %v800
  %v1121 = vpop.f32.mrf.mxu0
  %v1122 = vadd.f32 0.0, %v1121
  %v1123 = vpop.f32.mrf.mxu0
  %v1124 = vadd.f32 0.0, %v1123
  %1125 = vmatmul.bf16.gmra.mxu0 %v801
  %v1126 = vpop.f32.mrf.mxu0
  %v1127 = vadd.f32 0.0, %v1126
  %v1128 = vpop.f32.mrf.mxu0
  %v1129 = vadd.f32 0.0, %v1128
  %1130 = vmatmul.bf16.gmra.mxu0 %v802
  %v1131 = vpop.f32.mrf.mxu0
  %v1132 = vadd.f32 0.0, %v1131
  %v1133 = vpop.f32.mrf.mxu0
  %v1134 = vadd.f32 0.0, %v1133
  %1135 = vmatmul.bf16.gmra.mxu0 %v803
  %v1136 = vpop.f32.mrf.mxu0
  %v1137 = vadd.f32 0.0, %v1136
  %v1138 = vpop.f32.mrf.mxu0
  %v1139 = vadd.f32 0.0, %v1138
  %1140 = vmatmul.bf16.gmra.mxu0 %v804
  %v1141 = vpop.f32.mrf.mxu0
  %v1142 = vadd.f32 0.0, %v1141
  %v1143 = vpop.f32.mrf.mxu0
  %v1144 = vadd.f32 0.0, %v1143
  %1145 = vmatmul.bf16.gmra.mxu0 %v805
  %v1146 = vpop.f32.mrf.mxu0
  %v1147 = vadd.f32 0.0, %v1146
  %v1148 = vpop.f32.mrf.mxu0
  %v1149 = vadd.f32 0.0, %v1148
  %1150 = vmatmul.bf16.gmra.mxu0 %v806
  %v1151 = vpop.f32.mrf.mxu0
  %v1152 = vadd.f32 0.0, %v1151
  %v1153 = vpop.f32.mrf.mxu0
  %v1154 = vadd.f32 0.0, %v1153
  %1155 = vmatmul.bf16.gmra.mxu0 %v807
  %v1156 = vpop.f32.mrf.mxu0
  %v1157 = vadd.f32 0.0, %v1156
  %v1158 = vpop.f32.mrf.mxu0
  %v1159 = vadd.f32 0.0, %v1158
  %1160 = vmatmul.bf16.gmra.mxu0 %v808
  %v1161 = vpop.f32.mrf.mxu0
  %v1162 = vadd.f32 0.0, %v1161
  %v1163 = vpop.f32.mrf.mxu0
  %v1164 = vadd.f32 0.0, %v1163
  %1165 = vmatmul.bf16.gmra.mxu0 %v809
  %v1166 = vpop.f32.mrf.mxu0
  %v1167 = vadd.f32 0.0, %v1166
  %v1168 = vpop.f32.mrf.mxu0
  %v1169 = vadd.f32 0.0, %v1168
  %1170 = vmatmul.bf16.gmra.mxu0 %v810
  %v1171 = vpop.f32.mrf.mxu0
  %v1172 = vadd.f32 0.0, %v1171
  %v1173 = vpop.f32.mrf.mxu0
  %v1174 = vadd.f32 0.0, %v1173
  %1175 = vmatmul.bf16.gmra.mxu0 %v811
  %v1176 = vpop.f32.mrf.mxu0
  %v1177 = vadd.f32 0.0, %v1176
  %v1178 = vpop.f32.mrf.mxu0
  %v1179 = vadd.f32 0.0, %v1178
  %1180 = vmatmul.bf16.gmra.mxu0 %v812
  %v1181 = vpop.f32.mrf.mxu0
  %v1182 = vadd.f32 0.0, %v1181
  %v1183 = vpop.f32.mrf.mxu0
  %v1184 = vadd.f32 0.0, %v1183
  %1185 = vmatmul.bf16.gmra.mxu0 %v813
  %v1186 = vpop.f32.mrf.mxu0
  %v1187 = vadd.f32 0.0, %v1186
  %v1188 = vpop.f32.mrf.mxu0
  %v1189 = vadd.f32 0.0, %v1188
  %1190 = vmatmul.bf16.gmra.mxu0 %v814
  %v1191 = vpop.f32.mrf.mxu0
  %v1192 = vadd.f32 0.0, %v1191
  %v1193 = vpop.f32.mrf.mxu0
  %v1194 = vadd.f32 0.0, %v1193
  %1195 = vmatmul.bf16.gmra.mxu0 %v815
  %v1196 = vpop.f32.mrf.mxu0
  %v1197 = vadd.f32 0.0, %v1196
  %v1198 = vpop.f32.mrf.mxu0
  %v1199 = vadd.f32 0.0, %v1198
  %1200 = vmatmul.bf16.gmra.mxu0 %v816
  %v1201 = vpop.f32.mrf.mxu0
  %v1202 = vadd.f32 0.0, %v1201
  %v1203 = vpop.f32.mrf.mxu0
  %v1204 = vadd.f32 0.0, %v1203
  %1205 = vmatmul.bf16.gmra.mxu0 %v817
  %v1206 = vpop.f32.mrf.mxu0
  %v1207 = vadd.f32 0.0, %v1206
  %v1208 = vpop.f32.mrf.mxu0
  %v1209 = vadd.f32 0.0, %v1208
  %1210 = vmatmul.bf16.gmra.mxu0 %v818
  %v1211 = vpop.f32.mrf.mxu0
  %v1212 = vadd.f32 0.0, %v1211
  %v1213 = vpop.f32.mrf.mxu0
  %v1214 = vadd.f32 0.0, %v1213
  %1215 = vmatmul.bf16.gmra.mxu0 %v819
  %v1216 = vpop.f32.mrf.mxu0
  %v1217 = vadd.f32 0.0, %v1216
  %v1218 = vpop.f32.mrf.mxu0
  %v1219 = vadd.f32 0.0, %v1218
  %1220 = vmatmul.bf16.gmra.mxu0 %v820
  %v1221 = vpop.f32.mrf.mxu0
  %v1222 = vadd.f32 0.0, %v1221
  %v1223 = vpop.f32.mrf.mxu0
  %v1224 = vadd.f32 0.0, %v1223
  %1225 = vmatmul.bf16.gmra.mxu0 %v821
  %v1226 = vpop.f32.mrf.mxu0
  %v1227 = vadd.f32 0.0, %v1226
  %v1228 = vpop.f32.mrf.mxu0
  %v1229 = vadd.f32 0.0, %v1228
  %1230 = vmatmul.bf16.gmra.mxu0 %v822
  %v1231 = vpop.f32.mrf.mxu0
  %v1232 = vadd.f32 0.0, %v1231
  %v1233 = vpop.f32.mrf.mxu0
  %v1234 = vadd.f32 0.0, %v1233
  %1235 = vmatmul.bf16.gmra.mxu0 %v823
  %v1236 = vpop.f32.mrf.mxu0
  %v1237 = vadd.f32 0.0, %v1236
  %v1238 = vpop.f32.mrf.mxu0
  %v1239 = vadd.f32 0.0, %v1238
  %1240 = vmatmul.bf16.gmra.mxu0 %v824
  %v1241 = vpop.f32.mrf.mxu0
  %v1242 = vadd.f32 0.0, %v1241
  %v1243 = vpop.f32.mrf.mxu0
  %v1244 = vadd.f32 0.0, %v1243
  %1245 = vmatmul.bf16.gmra.mxu0 %v825
  %v1246 = vpop.f32.mrf.mxu0
  %v1247 = vadd.f32 0.0, %v1246
  %v1248 = vpop.f32.mrf.mxu0
  %v1249 = vadd.f32 0.0, %v1248
  %1250 = vmatmul.bf16.gmra.mxu0 %v826
  %v1251 = vpop.f32.mrf.mxu0
  %v1252 = vadd.f32 0.0, %v1251
  %v1253 = vpop.f32.mrf.mxu0
  %v1254 = vadd.f32 0.0, %v1253
  %1255 = vmatmul.bf16.gmra.mxu0 %v827
  %v1256 = vpop.f32.mrf.mxu0
  %v1257 = vadd.f32 0.0, %v1256
  %v1258 = vpop.f32.mrf.mxu0
  %v1259 = vadd.f32 0.0, %v1258
  %1260 = vmatmul.bf16.gmra.mxu0 %v828
  %v1261 = vpop.f32.mrf.mxu0
  %v1262 = vadd.f32 0.0, %v1261
  %v1263 = vpop.f32.mrf.mxu0
  %v1264 = vadd.f32 0.0, %v1263
  %1265 = vmatmul.bf16.gmra.mxu0 %v829
  %v1266 = vpop.f32.mrf.mxu0
  %v1267 = vadd.f32 0.0, %v1266
  %v1268 = vpop.f32.mrf.mxu0
  %v1269 = vadd.f32 0.0, %v1268
  %1270 = vmatmul.bf16.gmra.mxu0 %v830
  %v1271 = vpop.f32.mrf.mxu0
  %v1272 = vadd.f32 0.0, %v1271
  %v1273 = vpop.f32.mrf.mxu0
  %v1274 = vadd.f32 0.0, %v1273
  %1275 = vmatmul.bf16.gmra.mxu0 %v831
  %v1276 = vpop.f32.mrf.mxu0
  %v1277 = vadd.f32 0.0, %v1276
  %v1278 = vpop.f32.mrf.mxu0
  %v1279 = vadd.f32 0.0, %v1278
  %1280 = vmatmul.bf16.gmra.mxu0 %v832
  %v1281 = vpop.f32.mrf.mxu0
  %v1282 = vadd.f32 0.0, %v1281
  %v1283 = vpop.f32.mrf.mxu0
  %v1284 = vadd.f32 0.0, %v1283
  %1285 = vmatmul.bf16.gmra.mxu0 %v833
  %v1286 = vpop.f32.mrf.mxu0
  %v1287 = vadd.f32 0.0, %v1286
  %v1288 = vpop.f32.mrf.mxu0
  %v1289 = vadd.f32 0.0, %v1288
  %1290 = vmatmul.bf16.gmra.mxu0 %v834
  %v1291 = vpop.f32.mrf.mxu0
  %v1292 = vadd.f32 0.0, %v1291
  %v1293 = vpop.f32.mrf.mxu0
  %v1294 = vadd.f32 0.0, %v1293
  %1295 = vmatmul.bf16.gmra.mxu0 %v835
  %v1296 = vpop.f32.mrf.mxu0
  %v1297 = vadd.f32 0.0, %v1296
  %v1298 = vpop.f32.mrf.mxu0
  %v1299 = vadd.f32 0.0, %v1298
  %1300 = vmatmul.bf16.gmra.mxu0 %v836
  %v1301 = vpop.f32.mrf.mxu0
  %v1302 = vadd.f32 0.0, %v1301
  %v1303 = vpop.f32.mrf.mxu0
  %v1304 = vadd.f32 0.0, %v1303
  %1305 = vmatmul.bf16.gmra.mxu0 %v837
  %v1306 = vpop.f32.mrf.mxu0
  %v1307 = vadd.f32 0.0, %v1306
  %v1308 = vpop.f32.mrf.mxu0
  %v1309 = vadd.f32 0.0, %v1308
  %1310 = vmatmul.bf16.gmra.mxu0 %v838
  %v1311 = vpop.f32.mrf.mxu0
  %v1312 = vadd.f32 0.0, %v1311
  %v1313 = vpop.f32.mrf.mxu0
  %v1314 = vadd.f32 0.0, %v1313
  %1315 = vmatmul.bf16.gmra.mxu0 %v839
  %v1316 = vpop.f32.mrf.mxu0
  %v1317 = vadd.f32 0.0, %v1316
  %v1318 = vpop.f32.mrf.mxu0
  %v1319 = vadd.f32 0.0, %v1318
  %1320 = vmatmul.bf16.gmra.mxu0 %v840
  %v1321 = vpop.f32.mrf.mxu0
  %v1322 = vadd.f32 0.0, %v1321
  %v1323 = vpop.f32.mrf.mxu0
  %v1324 = vadd.f32 0.0, %v1323
  %1325 = vmatmul.bf16.gmra.mxu0 %v841
  %v1326 = vpop.f32.mrf.mxu0
  %v1327 = vadd.f32 0.0, %v1326
  %v1328 = vpop.f32.mrf.mxu0
  %v1329 = vadd.f32 0.0, %v1328
  %1330 = vmatmul.bf16.gmra.mxu0 %v842
  %v1331 = vpop.f32.mrf.mxu0
  %v1332 = vadd.f32 0.0, %v1331
  %v1333 = vpop.f32.mrf.mxu0
  %v1334 = vadd.f32 0.0, %v1333
  %1335 = vmatmul.bf16.gmra.mxu0 %v843
  %v1336 = vpop.f32.mrf.mxu0
  %v1337 = vadd.f32 0.0, %v1336
  %v1338 = vpop.f32.mrf.mxu0
  %v1339 = vadd.f32 0.0, %v1338
  %1340 = vmatmul.bf16.gmra.mxu0 %v844
  %v1341 = vpop.f32.mrf.mxu0
  %v1342 = vadd.f32 0.0, %v1341
  %v1343 = vpop.f32.mrf.mxu0
  %v1344 = vadd.f32 0.0, %v1343
  %1345 = vmatmul.bf16.gmra.mxu0 %v845
  %v1346 = vpop.f32.mrf.mxu0
  %v1347 = vadd.f32 0.0, %v1346
  %v1348 = vpop.f32.mrf.mxu0
  %v1349 = vadd.f32 0.0, %v1348
  %1350 = vmatmul.bf16.gmra.mxu0 %v846
  %v1351 = vpop.f32.mrf.mxu0
  %v1352 = vadd.f32 0.0, %v1351
  %v1353 = vpop.f32.mrf.mxu0
  %v1354 = vadd.f32 0.0, %v1353
  %1355 = vmatmul.bf16.gmra.mxu0 %v847
  %v1356 = vpop.f32.mrf.mxu0
  %v1357 = vadd.f32 0.0, %v1356
  %v1358 = vpop.f32.mrf.mxu0
  %v1359 = vadd.f32 0.0, %v1358
  %1360 = vmatmul.bf16.gmra.mxu0 %v848
  %v1361 = vpop.f32.mrf.mxu0
  %v1362 = vadd.f32 0.0, %v1361
  %v1363 = vpop.f32.mrf.mxu0
  %v1364 = vadd.f32 0.0, %v1363
  %1365 = vmatmul.bf16.gmra.mxu0 %v849
  %v1366 = vpop.f32.mrf.mxu0
  %v1367 = vadd.f32 0.0, %v1366
  %v1368 = vpop.f32.mrf.mxu0
  %v1369 = vadd.f32 0.0, %v1368
  %1370 = vmatmul.bf16.gmra.mxu0 %v850
  %v1371 = vpop.f32.mrf.mxu0
  %v1372 = vadd.f32 0.0, %v1371
  %v1373 = vpop.f32.mrf.mxu0
  %v1374 = vadd.f32 0.0, %v1373
  %1375 = vmatmul.bf16.gmra.mxu0 %v851
  %v1376 = vpop.f32.mrf.mxu0
  %v1377 = vadd.f32 0.0, %v1376
  %v1378 = vpop.f32.mrf.mxu0
  %v1379 = vadd.f32 0.0, %v1378
  %1380 = vmatmul.bf16.gmra.mxu0 %v852
  %v1381 = vpop.f32.mrf.mxu0
  %v1382 = vadd.f32 0.0, %v1381
  %v1383 = vpop.f32.mrf.mxu0
  %v1384 = vadd.f32 0.0, %v1383
  %1385 = vmatmul.bf16.gmra.mxu0 %v853
  %v1386 = vpop.f32.mrf.mxu0
  %v1387 = vadd.f32 0.0, %v1386
  %v1388 = vpop.f32.mrf.mxu0
  %v1389 = vadd.f32 0.0, %v1388
  %1390 = vmatmul.bf16.gmra.mxu0 %v854
  %v1391 = vpop.f32.mrf.mxu0
  %v1392 = vadd.f32 0.0, %v1391
  %v1393 = vpop.f32.mrf.mxu0
  %v1394 = vadd.f32 0.0, %v1393
  %1395 = vmatmul.bf16.gmra.mxu0 %v855
  %v1396 = vpop.f32.mrf.mxu0
  %v1397 = vadd.f32 0.0, %v1396
  %v1398 = vpop.f32.mrf.mxu0
  %v1399 = vadd.f32 0.0, %v1398
  %1400 = vmatmul.bf16.gmra.mxu0 %v856
  %v1401 = vpop.f32.mrf.mxu0
  %v1402 = vadd.f32 0.0, %v1401
  %v1403 = vpop.f32.mrf.mxu0
  %v1404 = vadd.f32 0.0, %v1403
  %1405 = vmatmul.bf16.gmra.mxu0 %v857
  %v1406 = vpop.f32.mrf.mxu0
  %v1407 = vadd.f32 0.0, %v1406
  %v1408 = vpop.f32.mrf.mxu0
  %v1409 = vadd.f32 0.0, %v1408
  %1410 = vmatmul.bf16.gmra.mxu0 %v858
  %v1411 = vpop.f32.mrf.mxu0
  %v1412 = vadd.f32 0.0, %v1411
  %v1413 = vpop.f32.mrf.mxu0
  %v1414 = vadd.f32 0.0, %v1413
  %1415 = vmatmul.bf16.gmra.mxu0 %v859
  %v1416 = vpop.f32.mrf.mxu0
  %v1417 = vadd.f32 0.0, %v1416
  %v1418 = vpop.f32.mrf.mxu0
  %v1419 = vadd.f32 0.0, %v1418
  %1420 = vmatmul.bf16.gmra.mxu0 %v860
  %v1421 = vpop.f32.mrf.mxu0
  %v1422 = vadd.f32 0.0, %v1421
  %v1423 = vpop.f32.mrf.mxu0
  %v1424 = vadd.f32 0.0, %v1423
  %1425 = vmatmul.bf16.gmra.mxu0 %v861
  %v1426 = vpop.f32.mrf.mxu0
  %v1427 = vadd.f32 0.0, %v1426
  %v1428 = vpop.f32.mrf.mxu0
  %v1429 = vadd.f32 0.0, %v1428
  %1430 = vmatmul.bf16.gmra.mxu0 %v862
  %v1431 = vpop.f32.mrf.mxu0
  %v1432 = vadd.f32 0.0, %v1431
  %v1433 = vpop.f32.mrf.mxu0
  %v1434 = vadd.f32 0.0, %v1433
  %1435 = vmatmul.bf16.gmra.mxu0 %v863
  %v1436 = vpop.f32.mrf.mxu0
  %v1437 = vadd.f32 0.0, %v1436
  %v1438 = vpop.f32.mrf.mxu0
  %v1439 = vadd.f32 0.0, %v1438
  %1440 = vmatmul.bf16.gmra.mxu0 %v864
  %v1441 = vpop.f32.mrf.mxu0
  %v1442 = vadd.f32 0.0, %v1441
  %v1443 = vpop.f32.mrf.mxu0
  %v1444 = vadd.f32 0.0, %v1443
  %1445 = vmatmul.bf16.gmra.mxu0 %v865
  %v1446 = vpop.f32.mrf.mxu0
  %v1447 = vadd.f32 0.0, %v1446
  %v1448 = vpop.f32.mrf.mxu0
  %v1449 = vadd.f32 0.0, %v1448
  %1450 = vmatmul.bf16.gmra.mxu0 %v866
  %v1451 = vpop.f32.mrf.mxu0
  %v1452 = vadd.f32 0.0, %v1451
  %v1453 = vpop.f32.mrf.mxu0
  %v1454 = vadd.f32 0.0, %v1453
  %1455 = vmatmul.bf16.gmra.mxu0 %v867
  %v1456 = vpop.f32.mrf.mxu0
  %v1457 = vadd.f32 0.0, %v1456
  %v1458 = vpop.f32.mrf.mxu0
  %v1459 = vadd.f32 0.0, %v1458
  %1460 = vmatmul.bf16.gmra.mxu0 %v868
  %v1461 = vpop.f32.mrf.mxu0
  %v1462 = vadd.f32 0.0, %v1461
  %v1463 = vpop.f32.mrf.mxu0
  %v1464 = vadd.f32 0.0, %v1463
  %1465 = vmatmul.bf16.gmra.mxu0 %v869
  %v1466 = vpop.f32.mrf.mxu0
  %v1467 = vadd.f32 0.0, %v1466
  %v1468 = vpop.f32.mrf.mxu0
  %v1469 = vadd.f32 0.0, %v1468
  %1470 = vmatmul.bf16.gmra.mxu0 %v870
  %v1471 = vpop.f32.mrf.mxu0
  %v1472 = vadd.f32 0.0, %v1471
  %v1473 = vpop.f32.mrf.mxu0
  %v1474 = vadd.f32 0.0, %v1473
  %1475 = vmatmul.bf16.gmra.mxu0 %v871
  %v1476 = vpop.f32.mrf.mxu0
  %v1477 = vadd.f32 0.0, %v1476
  %v1478 = vpop.f32.mrf.mxu0
  %v1479 = vadd.f32 0.0, %v1478
  %1480 = vmatmul.bf16.gmra.mxu0 %v872
  %v1481 = vpop.f32.mrf.mxu0
  %v1482 = vadd.f32 0.0, %v1481
  %v1483 = vpop.f32.mrf.mxu0
  %v1484 = vadd.f32 0.0, %v1483
  %1485 = vmatmul.bf16.gmra.mxu0 %v873
  %v1486 = vpop.f32.mrf.mxu0
  %v1487 = vadd.f32 0.0, %v1486
  %v1488 = vpop.f32.mrf.mxu0
  %v1489 = vadd.f32 0.0, %v1488
  %1490 = vmatmul.bf16.gmra.mxu0 %v874
  %v1491 = vpop.f32.mrf.mxu0
  %v1492 = vadd.f32 0.0, %v1491
  %v1493 = vpop.f32.mrf.mxu0
  %v1494 = vadd.f32 0.0, %v1493
  %1495 = vmatmul.bf16.gmra.mxu0 %v875
  %v1496 = vpop.f32.mrf.mxu0
  %v1497 = vadd.f32 0.0, %v1496
  %v1498 = vpop.f32.mrf.mxu0
  %v1499 = vadd.f32 0.0, %v1498
  %1500 = vmatmul.bf16.gmra.mxu0 %v876
  %v1501 = vpop.f32.mrf.mxu0
  %v1502 = vadd.f32 0.0, %v1501
  %v1503 = vpop.f32.mrf.mxu0
  %v1504 = vadd.f32 0.0, %v1503
  %1505 = vmatmul.bf16.gmra.mxu0 %v877
  %v1506 = vpop.f32.mrf.mxu0
  %v1507 = vadd.f32 0.0, %v1506
  %v1508 = vpop.f32.mrf.mxu0
  %v1509 = vadd.f32 0.0, %v1508
  %1510 = vmatmul.bf16.gmra.mxu0 %v878
  %v1511 = vpop.f32.mrf.mxu0
  %v1512 = vadd.f32 0.0, %v1511
  %v1513 = vpop.f32.mrf.mxu0
  %v1514 = vadd.f32 0.0, %v1513
  %1515 = vmatmul.bf16.gmra.mxu0 %v879
  %v1516 = vpop.f32.mrf.mxu0
  %v1517 = vadd.f32 0.0, %v1516
  %v1518 = vpop.f32.mrf.mxu0
  %v1519 = vadd.f32 0.0, %v1518
  %1520 = vmatmul.bf16.gmra.mxu0 %v880
  %v1521 = vpop.f32.mrf.mxu0
  %v1522 = vadd.f32 0.0, %v1521
  %v1523 = vpop.f32.mrf.mxu0
  %v1524 = vadd.f32 0.0, %v1523
  %1525 = vmatmul.bf16.gmra.mxu0 %v881
  %v1526 = vpop.f32.mrf.mxu0
  %v1527 = vadd.f32 0.0, %v1526
  %v1528 = vpop.f32.mrf.mxu0
  %v1529 = vadd.f32 0.0, %v1528
  %1530 = vmatmul.bf16.gmra.mxu0 %v882
  %v1531 = vpop.f32.mrf.mxu0
  %v1532 = vadd.f32 0.0, %v1531
  %v1533 = vpop.f32.mrf.mxu0
  %v1534 = vadd.f32 0.0, %v1533
  %1535 = vmatmul.bf16.gmra.mxu0 %v883
  %v1536 = vpop.f32.mrf.mxu0
  %v1537 = vadd.f32 0.0, %v1536
  %v1538 = vpop.f32.mrf.mxu0
  %v1539 = vadd.f32 0.0, %v1538
  %1540 = vmatmul.bf16.gmra.mxu0 %v884
  %v1541 = vpop.f32.mrf.mxu0
  %v1542 = vadd.f32 0.0, %v1541
  %v1543 = vpop.f32.mrf.mxu0
  %v1544 = vadd.f32 0.0, %v1543
  %1545 = vmatmul.bf16.gmra.mxu0 %v885
  %v1546 = vpop.f32.mrf.mxu0
  %v1547 = vadd.f32 0.0, %v1546
  %v1548 = vpop.f32.mrf.mxu0
  %v1549 = vadd.f32 0.0, %v1548
  %1550 = vmatmul.bf16.gmra.mxu0 %v886
  %v1551 = vpop.f32.mrf.mxu0
  %v1552 = vadd.f32 0.0, %v1551
  %v1553 = vpop.f32.mrf.mxu0
  %v1554 = vadd.f32 0.0, %v1553
  %1555 = vmatmul.bf16.gmra.mxu0 %v887
  %v1556 = vpop.f32.mrf.mxu0
  %v1557 = vadd.f32 0.0, %v1556
  %v1558 = vpop.f32.mrf.mxu0
  %v1559 = vadd.f32 0.0, %v1558
  %1560 = vmatmul.bf16.gmra.mxu0 %v888
  %v1561 = vpop.f32.mrf.mxu0
  %v1562 = vadd.f32 0.0, %v1561
  %v1563 = vpop.f32.mrf.mxu0
  %v1564 = vadd.f32 0.0, %v1563
  %1565 = vmatmul.bf16.gmra.mxu0 %v889
  %v1566 = vpop.f32.mrf.mxu0
  %v1567 = vadd.f32 0.0, %v1566
  %v1568 = vpop.f32.mrf.mxu0
  %v1569 = vadd.f32 0.0, %v1568
  %1570 = vmatmul.bf16.gmra.mxu0 %v890
  %v1571 = vpop.f32.mrf.mxu0
  %v1572 = vadd.f32 0.0, %v1571
  %v1573 = vpop.f32.mrf.mxu0
  %v1574 = vadd.f32 0.0, %v1573
  %1575 = vmatmul.bf16.gmra.mxu0 %v891
  %v1576 = vpop.f32.mrf.mxu0
  %v1577 = vadd.f32 0.0, %v1576
  %v1578 = vpop.f32.mrf.mxu0
  %v1579 = vadd.f32 0.0, %v1578
  %1580 = vmatmul.bf16.gmra.mxu0 %v892
  %v1581 = vpop.f32.mrf.mxu0
  %v1582 = vadd.f32 0.0, %v1581
  %v1583 = vpop.f32.mrf.mxu0
  %v1584 = vadd.f32 0.0, %v1583
  %1585 = vmatmul.bf16.gmra.mxu0 %v893
  %v1586 = vpop.f32.mrf.mxu0
  %v1587 = vadd.f32 0.0, %v1586
  %v1588 = vpop.f32.mrf.mxu0
  %v1589 = vadd.f32 0.0, %v1588
  %1590 = vmatmul.bf16.gmra.mxu0 %v894
  %v1591 = vpop.f32.mrf.mxu0
  %v1592 = vadd.f32 0.0, %v1591
  %v1593 = vpop.f32.mrf.mxu0
  %v1594 = vadd.f32 0.0, %v1593
  %1595 = vmatmul.bf16.gmra.mxu0 %v895
  %v1596 = vpop.f32.mrf.mxu0
  %v1597 = vadd.f32 0.0, %v1596
  %v1598 = vpop.f32.mrf.mxu0
  %v1599 = vadd.f32 0.0, %v1598
  %1600 = vmatmul.bf16.gmra.mxu0 %v896
  %v1601 = vpop.f32.mrf.mxu0
  %v1602 = vadd.f32 0.0, %v1601
  %v1603 = vpop.f32.mrf.mxu0
  %v1604 = vadd.f32 0.0, %v1603
  %1605 = vmatmul.bf16.gmra.mxu0 %v897
  %v1606 = vpop.f32.mrf.mxu0
  %v1607 = vadd.f32 0.0, %v1606
  %v1608 = vpop.f32.mrf.mxu0
  %v1609 = vadd.f32 0.0, %v1608
  %1610 = vmatmul.bf16.gmra.mxu0 %v898
  %v1611 = vpop.f32.mrf.mxu0
  %v1612 = vadd.f32 0.0, %v1611
  %v1613 = vpop.f32.mrf.mxu0
  %v1614 = vadd.f32 0.0, %v1613
  %1615 = vmatmul.bf16.gmra.mxu0 %v899
  %v1616 = vpop.f32.mrf.mxu0
  %v1617 = vadd.f32 0.0, %v1616
  %v1618 = vpop.f32.mrf.mxu0
  %v1619 = vadd.f32 0.0, %v1618
  %1620 = vmatmul.bf16.gmra.mxu0 %v900
  %v1621 = vpop.f32.mrf.mxu0
  %v1622 = vadd.f32 0.0, %v1621
  %v1623 = vpop.f32.mrf.mxu0
  %v1624 = vadd.f32 0.0, %v1623
  %1625 = vmatmul.bf16.gmra.mxu0 %v901
  %v1626 = vpop.f32.mrf.mxu0
  %v1627 = vadd.f32 0.0, %v1626
  %v1628 = vpop.f32.mrf.mxu0
  %v1629 = vadd.f32 0.0, %v1628
  %1630 = vmatmul.bf16.gmra.mxu0 %v902
  %v1631 = vpop.f32.mrf.mxu0
  %v1632 = vadd.f32 0.0, %v1631
  %v1633 = vpop.f32.mrf.mxu0
  %v1634 = vadd.f32 0.0, %v1633
  %1635 = vmatmul.bf16.gmra.mxu0 %v903
  %v1636 = vpop.f32.mrf.mxu0
  %v1637 = vadd.f32 0.0, %v1636
  %v1638 = vpop.f32.mrf.mxu0
  %v1639 = vadd.f32 0.0, %v1638
  %1640 = vmatmul.bf16.gmra.mxu0 %v904
  %v1641 = vpop.f32.mrf.mxu0
  %v1642 = vadd.f32 0.0, %v1641
  %v1643 = vpop.f32.mrf.mxu0
  %v1644 = vadd.f32 0.0, %v1643
  %1645 = vmatmul.bf16.gmra.mxu0 %v905
  %v1646 = vpop.f32.mrf.mxu0
  %v1647 = vadd.f32 0.0, %v1646
  %v1648 = vpop.f32.mrf.mxu0
  %v1649 = vadd.f32 0.0, %v1648
  %1650 = vmatmul.bf16.gmra.mxu0 %v906
  %v1651 = vpop.f32.mrf.mxu0
  %v1652 = vadd.f32 0.0, %v1651
  %v1653 = vpop.f32.mrf.mxu0
  %v1654 = vadd.f32 0.0, %v1653
  %1655 = vmatmul.bf16.gmra.mxu0 %v907
  %v1656 = vpop.f32.mrf.mxu0
  %v1657 = vadd.f32 0.0, %v1656
  %v1658 = vpop.f32.mrf.mxu0
  %v1659 = vadd.f32 0.0, %v1658
  %1660 = vmatmul.bf16.gmra.mxu0 %v908
  %v1661 = vpop.f32.mrf.mxu0
  %v1662 = vadd.f32 0.0, %v1661
  %v1663 = vpop.f32.mrf.mxu0
  %v1664 = vadd.f32 0.0, %v1663
  %1665 = vmatmul.bf16.gmra.mxu0 %v909
  %v1666 = vpop.f32.mrf.mxu0
  %v1667 = vadd.f32 0.0, %v1666
  %v1668 = vpop.f32.mrf.mxu0
  %v1669 = vadd.f32 0.0, %v1668
  %1670 = vmatmul.bf16.gmra.mxu0 %v910
  %v1671 = vpop.f32.mrf.mxu0
  %v1672 = vadd.f32 0.0, %v1671
  %v1673 = vpop.f32.mrf.mxu0
  %v1674 = vadd.f32 0.0, %v1673
  %1675 = vmatmul.bf16.gmra.mxu0 %v911
  %v1676 = vpop.f32.mrf.mxu0
  %v1677 = vadd.f32 0.0, %v1676
  %v1678 = vpop.f32.mrf.mxu0
  %v1679 = vadd.f32 0.0, %v1678
  %1680 = vmatmul.bf16.gmra.mxu0 %v912
  %v1681 = vpop.f32.mrf.mxu0
  %v1682 = vadd.f32 0.0, %v1681
  %v1683 = vpop.f32.mrf.mxu0
  %v1684 = vadd.f32 0.0, %v1683
  %1685 = vmatmul.bf16.gmra.mxu0 %v913
  %v1686 = vpop.f32.mrf.mxu0
  %v1687 = vadd.f32 0.0, %v1686
  %v1688 = vpop.f32.mrf.mxu0
  %v1689 = vadd.f32 0.0, %v1688
  %1690 = vmatmul.bf16.gmra.mxu0 %v914
  %v1691 = vpop.f32.mrf.mxu0
  %v1692 = vadd.f32 0.0, %v1691
  %v1693 = vpop.f32.mrf.mxu0
  %v1694 = vadd.f32 0.0, %v1693
  %1695 = vmatmul.bf16.gmra.mxu0 %v915
  %v1696 = vpop.f32.mrf.mxu0
  %v1697 = vadd.f32 0.0, %v1696
  %v1698 = vpop.f32.mrf.mxu0
  %v1699 = vadd.f32 0.0, %v1698
  %1700 = vmatmul.bf16.gmra.mxu0 %v916
  %v1701 = vpop.f32.mrf.mxu0
  %v1702 = vadd.f32 0.0, %v1701
  %v1703 = vpop.f32.mrf.mxu0
  %v1704 = vadd.f32 0.0, %v1703
  %1705 = vmatmul.bf16.gmra.mxu0 %v917
  %v1706 = vpop.f32.mrf.mxu0
  %v1707 = vadd.f32 0.0, %v1706
  %v1708 = vpop.f32.mrf.mxu0
  %v1709 = vadd.f32 0.0, %v1708
  %1710 = vmatmul.bf16.gmra.mxu0 %v918
  %v1711 = vpop.f32.mrf.mxu0
  %v1712 = vadd.f32 0.0, %v1711
  %v1713 = vpop.f32.mrf.mxu0
  %v1714 = vadd.f32 0.0, %v1713
  %1715 = vmatmul.bf16.gmra.mxu0 %v919
  %v1716 = vpop.f32.mrf.mxu0
  %v1717 = vadd.f32 0.0, %v1716
  %v1718 = vpop.f32.mrf.mxu0
  %v1719 = vadd.f32 0.0, %v1718
  %1720 = vmatmul.bf16.gmra.mxu0 %v920
  %v1721 = vpop.f32.mrf.mxu0
  %v1722 = vadd.f32 0.0, %v1721
  %v1723 = vpop.f32.mrf.mxu0
  %v1724 = vadd.f32 0.0, %v1723
  %1725 = vmatmul.bf16.gmra.mxu0 %v921
  %v1726 = vpop.f32.mrf.mxu0
  %v1727 = vadd.f32 0.0, %v1726
  %v1728 = vpop.f32.mrf.mxu0
  %v1729 = vadd.f32 0.0, %v1728
  %1730 = vmatmul.bf16.gmra.mxu0 %v922
  %v1731 = vpop.f32.mrf.mxu0
  %v1732 = vadd.f32 0.0, %v1731
  %v1733 = vpop.f32.mrf.mxu0
  %v1734 = vadd.f32 0.0, %v1733
  %1735 = vmatmul.bf16.gmra.mxu0 %v923
  %v1736 = vpop.f32.mrf.mxu0
  %v1737 = vadd.f32 0.0, %v1736
  %v1738 = vpop.f32.mrf.mxu0
  %v1739 = vadd.f32 0.0, %v1738
  %1740 = vmatmul.bf16.gmra.mxu0 %v924
  %v1741 = vpop.f32.mrf.mxu0
  %v1742 = vadd.f32 0.0, %v1741
  %v1743 = vpop.f32.mrf.mxu0
  %v1744 = vadd.f32 0.0, %v1743
  %1745 = vmatmul.bf16.gmra.mxu0 %v925
  %v1746 = vpop.f32.mrf.mxu0
  %v1747 = vadd.f32 0.0, %v1746
  %v1748 = vpop.f32.mrf.mxu0
  %v1749 = vadd.f32 0.0, %v1748
  %1750 = vdwg.mxu0
  %v1751 = vmax.f32 %v1112, %v1272
  %v1752 = vmax.f32 %v1114, %v1274
  %v1753 = vmax.f32 %v1117, %v1277
  %v1754 = vmax.f32 %v1119, %v1279
  %v1755 = vmax.f32 %v1122, %v1282
  %v1756 = vmax.f32 %v1124, %v1284
  %v1757 = vmax.f32 %v1127, %v1287
  %v1758 = vmax.f32 %v1129, %v1289
  %v1759 = vmax.f32 %v1132, %v1292
  %v1760 = vmax.f32 %v1134, %v1294
  %v1761 = vmax.f32 %v1137, %v1297
  %v1762 = vmax.f32 %v1139, %v1299
  %v1763 = vmax.f32 %v1142, %v1302
  %v1764 = vmax.f32 %v1144, %v1304
  %v1765 = vmax.f32 %v1147, %v1307
  %v1766 = vmax.f32 %v1149, %v1309
  %v1767 = vmax.f32 %v1152, %v1312
  %v1768 = vmax.f32 %v1154, %v1314
  %v1769 = vmax.f32 %v1157, %v1317
  %v1770 = vmax.f32 %v1159, %v1319
  %v1771 = vmax.f32 %v1162, %v1322
  %v1772 = vmax.f32 %v1164, %v1324
  %v1773 = vmax.f32 %v1167, %v1327
  %v1774 = vmax.f32 %v1169, %v1329
  %v1775 = vmax.f32 %v1172, %v1332
  %v1776 = vmax.f32 %v1174, %v1334
  %v1777 = vmax.f32 %v1177, %v1337
  %v1778 = vmax.f32 %v1179, %v1339
  %v1779 = vmax.f32 %v1182, %v1342
  %v1780 = vmax.f32 %v1184, %v1344
  %v1781 = vmax.f32 %v1187, %v1347
  %v1782 = vmax.f32 %v1189, %v1349
  %v1783 = vmax.f32 %v1192, %v1352
  %v1784 = vmax.f32 %v1194, %v1354
  %v1785 = vmax.f32 %v1197, %v1357
  %v1786 = vmax.f32 %v1199, %v1359
  %v1787 = vmax.f32 %v1202, %v1362
  %v1788 = vmax.f32 %v1204, %v1364
  %v1789 = vmax.f32 %v1207, %v1367
  %v1790 = vmax.f32 %v1209, %v1369
  %v1791 = vmax.f32 %v1212, %v1372
  %v1792 = vmax.f32 %v1214, %v1374
  %v1793 = vmax.f32 %v1217, %v1377
  %v1794 = vmax.f32 %v1219, %v1379
  %v1795 = vmax.f32 %v1222, %v1382
  %v1796 = vmax.f32 %v1224, %v1384
  %v1797 = vmax.f32 %v1227, %v1387
  %v1798 = vmax.f32 %v1229, %v1389
  %v1799 = vmax.f32 %v1232, %v1392
  %v1800 = vmax.f32 %v1234, %v1394
  %v1801 = vmax.f32 %v1237, %v1397
  %v1802 = vmax.f32 %v1239, %v1399
  %v1803 = vmax.f32 %v1242, %v1402
  %v1804 = vmax.f32 %v1244, %v1404
  %v1805 = vmax.f32 %v1247, %v1407
  %v1806 = vmax.f32 %v1249, %v1409
  %v1807 = vmax.f32 %v1252, %v1412
  %v1808 = vmax.f32 %v1254, %v1414
  %v1809 = vmax.f32 %v1257, %v1417
  %v1810 = vmax.f32 %v1259, %v1419
  %v1811 = vmax.f32 %v1262, %v1422
  %v1812 = vmax.f32 %v1264, %v1424
  %v1813 = vmax.f32 %v1267, %v1427
  %v1814 = vmax.f32 %v1269, %v1429
  %v1815 = vmax.f32 %v1432, %v1592
  %v1816 = vmax.f32 %v1434, %v1594
  %v1817 = vmax.f32 %v1437, %v1597
  %v1818 = vmax.f32 %v1439, %v1599
  %v1819 = vmax.f32 %v1442, %v1602
  %v1820 = vmax.f32 %v1444, %v1604
  %v1821 = vmax.f32 %v1447, %v1607
  %v1822 = vmax.f32 %v1449, %v1609
  %v1823 = vmax.f32 %v1452, %v1612
  %v1824 = vmax.f32 %v1454, %v1614
  %v1825 = vmax.f32 %v1457, %v1617
  %v1826 = vmax.f32 %v1459, %v1619
  %v1827 = vmax.f32 %v1462, %v1622
  %v1828 = vmax.f32 %v1464, %v1624
  %v1829 = vmax.f32 %v1467, %v1627
  %v1830 = vmax.f32 %v1469, %v1629
  %v1831 = vmax.f32 %v1472, %v1632
  %v1832 = vmax.f32 %v1474, %v1634
  %v1833 = vmax.f32 %v1477, %v1637
  %v1834 = vmax.f32 %v1479, %v1639
  %v1835 = vmax.f32 %v1482, %v1642
  %v1836 = vmax.f32 %v1484, %v1644
  %v1837 = vmax.f32 %v1487, %v1647
  %v1838 = vmax.f32 %v1489, %v1649
  %v1839 = vmax.f32 %v1492, %v1652
  %v1840 = vmax.f32 %v1494, %v1654
  %v1841 = vmax.f32 %v1497, %v1657
  %v1842 = vmax.f32 %v1499, %v1659
  %v1843 = vmax.f32 %v1502, %v1662
  %v1844 = vmax.f32 %v1504, %v1664
  %v1845 = vmax.f32 %v1507, %v1667
  %v1846 = vmax.f32 %v1509, %v1669
  %v1847 = vmax.f32 %v1512, %v1672
  %v1848 = vmax.f32 %v1514, %v1674
  %v1849 = vmax.f32 %v1517, %v1677
  %v1850 = vmax.f32 %v1519, %v1679
  %v1851 = vmax.f32 %v1522, %v1682
  %v1852 = vmax.f32 %v1524, %v1684
  %v1853 = vmax.f32 %v1527, %v1687
  %v1854 = vmax.f32 %v1529, %v1689
  %v1855 = vmax.f32 %v1532, %v1692
  %v1856 = vmax.f32 %v1534, %v1694
  %v1857 = vmax.f32 %v1537, %v1697
  %v1858 = vmax.f32 %v1539, %v1699
  %v1859 = vmax.f32 %v1542, %v1702
  %v1860 = vmax.f32 %v1544, %v1704
  %v1861 = vmax.f32 %v1547, %v1707
  %v1862 = vmax.f32 %v1549, %v1709
  %v1863 = vmax.f32 %v1552, %v1712
  %v1864 = vmax.f32 %v1554, %v1714
  %v1865 = vmax.f32 %v1557, %v1717
  %v1866 = vmax.f32 %v1559, %v1719
  %v1867 = vmax.f32 %v1562, %v1722
  %v1868 = vmax.f32 %v1564, %v1724
  %v1869 = vmax.f32 %v1567, %v1727
  %v1870 = vmax.f32 %v1569, %v1729
  %v1871 = vmax.f32 %v1572, %v1732
  %v1872 = vmax.f32 %v1574, %v1734
  %v1873 = vmax.f32 %v1577, %v1737
  %v1874 = vmax.f32 %v1579, %v1739
  %v1875 = vmax.f32 %v1582, %v1742
  %v1876 = vmax.f32 %v1584, %v1744
  %v1877 = vmax.f32 %v1587, %v1747
  %v1878 = vmax.f32 %v1589, %v1749
  %v1879 = vmax.f32 %v1751, %v1815
  %v1880 = vmax.f32 %v1752, %v1816
  %v1881 = vmax.f32 %v1753, %v1817
  %v1882 = vmax.f32 %v1754, %v1818
  %v1883 = vmax.f32 %v1755, %v1819
  %v1884 = vmax.f32 %v1756, %v1820
  %v1885 = vmax.f32 %v1757, %v1821
  %v1886 = vmax.f32 %v1758, %v1822
  %v1887 = vmax.f32 %v1759, %v1823
  %v1888 = vmax.f32 %v1760, %v1824
  %v1889 = vmax.f32 %v1761, %v1825
  %v1890 = vmax.f32 %v1762, %v1826
  %v1891 = vmax.f32 %v1763, %v1827
  %v1892 = vmax.f32 %v1764, %v1828
  %v1893 = vmax.f32 %v1765, %v1829
  %v1894 = vmax.f32 %v1766, %v1830
  %v1895 = vmax.f32 %v1767, %v1831
  %v1896 = vmax.f32 %v1768, %v1832
  %v1897 = vmax.f32 %v1769, %v1833
  %v1898 = vmax.f32 %v1770, %v1834
  %v1899 = vmax.f32 %v1771, %v1835
  %v1900 = vmax.f32 %v1772, %v1836
  %v1901 = vmax.f32 %v1773, %v1837
  %v1902 = vmax.f32 %v1774, %v1838
  %v1903 = vmax.f32 %v1775, %v1839
  %v1904 = vmax.f32 %v1776, %v1840
  %v1905 = vmax.f32 %v1777, %v1841
  %v1906 = vmax.f32 %v1778, %v1842
  %v1907 = vmax.f32 %v1779, %v1843
  %v1908 = vmax.f32 %v1780, %v1844
  %v1909 = vmax.f32 %v1781, %v1845
  %v1910 = vmax.f32 %v1782, %v1846
  %v1911 = vmax.f32 %v1783, %v1847
  %v1912 = vmax.f32 %v1784, %v1848
  %v1913 = vmax.f32 %v1785, %v1849
  %v1914 = vmax.f32 %v1786, %v1850
  %v1915 = vmax.f32 %v1787, %v1851
  %v1916 = vmax.f32 %v1788, %v1852
  %v1917 = vmax.f32 %v1789, %v1853
  %v1918 = vmax.f32 %v1790, %v1854
  %v1919 = vmax.f32 %v1791, %v1855
  %v1920 = vmax.f32 %v1792, %v1856
  %v1921 = vmax.f32 %v1793, %v1857
  %v1922 = vmax.f32 %v1794, %v1858
  %v1923 = vmax.f32 %v1795, %v1859
  %v1924 = vmax.f32 %v1796, %v1860
  %v1925 = vmax.f32 %v1797, %v1861
  %v1926 = vmax.f32 %v1798, %v1862
  %v1927 = vmax.f32 %v1799, %v1863
  %v1928 = vmax.f32 %v1800, %v1864
  %v1929 = vmax.f32 %v1801, %v1865
  %v1930 = vmax.f32 %v1802, %v1866
  %v1931 = vmax.f32 %v1803, %v1867
  %v1932 = vmax.f32 %v1804, %v1868
  %v1933 = vmax.f32 %v1805, %v1869
  %v1934 = vmax.f32 %v1806, %v1870
  %v1935 = vmax.f32 %v1807, %v1871
  %v1936 = vmax.f32 %v1808, %v1872
  %v1937 = vmax.f32 %v1809, %v1873
  %v1938 = vmax.f32 %v1810, %v1874
  %v1939 = vmax.f32 %v1811, %v1875
  %v1940 = vmax.f32 %v1812, %v1876
  %v1941 = vmax.f32 %v1813, %v1877
  %v1942 = vmax.f32 %v1814, %v1878
  %v1943 = vld [vmem:[%s2] sm:$0x1]
  %v1945 = vperm.slane %v1943, 0
  %v1947 = vadd.f32 %v1879, %v1945
  %v1948 = vadd.f32 %v1880, %v1945
  %v1949 = vadd.f32 %v1881, %v1945
  %v1950 = vadd.f32 %v1882, %v1945
  %v1951 = vadd.f32 %v1883, %v1945
  %v1952 = vadd.f32 %v1884, %v1945
  %v1953 = vadd.f32 %v1885, %v1945
  %v1954 = vadd.f32 %v1886, %v1945
  %v1955 = vadd.f32 %v1887, %v1945
  %v1956 = vadd.f32 %v1888, %v1945
  %v1957 = vadd.f32 %v1889, %v1945
  %v1958 = vadd.f32 %v1890, %v1945
  %v1959 = vadd.f32 %v1891, %v1945
  %v1960 = vadd.f32 %v1892, %v1945
  %v1961 = vadd.f32 %v1893, %v1945
  %v1962 = vadd.f32 %v1894, %v1945
  %v1963 = vadd.f32 %v1895, %v1945
  %v1964 = vadd.f32 %v1896, %v1945
  %v1965 = vadd.f32 %v1897, %v1945
  %v1966 = vadd.f32 %v1898, %v1945
  %v1967 = vadd.f32 %v1899, %v1945
  %v1968 = vadd.f32 %v1900, %v1945
  %v1969 = vadd.f32 %v1901, %v1945
  %v1970 = vadd.f32 %v1902, %v1945
  %v1971 = vadd.f32 %v1903, %v1945
  %v1972 = vadd.f32 %v1904, %v1945
  %v1973 = vadd.f32 %v1905, %v1945
  %v1974 = vadd.f32 %v1906, %v1945
  %v1975 = vadd.f32 %v1907, %v1945
  %v1976 = vadd.f32 %v1908, %v1945
  %v1977 = vadd.f32 %v1909, %v1945
  %v1978 = vadd.f32 %v1910, %v1945
  %v1979 = vadd.f32 %v1911, %v1945
  %v1980 = vadd.f32 %v1912, %v1945
  %v1981 = vadd.f32 %v1913, %v1945
  %v1982 = vadd.f32 %v1914, %v1945
  %v1983 = vadd.f32 %v1915, %v1945
  %v1984 = vadd.f32 %v1916, %v1945
  %v1985 = vadd.f32 %v1917, %v1945
  %v1986 = vadd.f32 %v1918, %v1945
  %v1987 = vadd.f32 %v1919, %v1945
  %v1988 = vadd.f32 %v1920, %v1945
  %v1989 = vadd.f32 %v1921, %v1945
  %v1990 = vadd.f32 %v1922, %v1945
  %v1991 = vadd.f32 %v1923, %v1945
  %v1992 = vadd.f32 %v1924, %v1945
  %v1993 = vadd.f32 %v1925, %v1945
  %v1994 = vadd.f32 %v1926, %v1945
  %v1995 = vadd.f32 %v1927, %v1945
  %v1996 = vadd.f32 %v1928, %v1945
  %v1997 = vadd.f32 %v1929, %v1945
  %v1998 = vadd.f32 %v1930, %v1945
  %v1999 = vadd.f32 %v1931, %v1945
  %v2000 = vadd.f32 %v1932, %v1945
  %v2001 = vadd.f32 %v1933, %v1945
  %v2002 = vadd.f32 %v1934, %v1945
  %v2003 = vadd.f32 %v1935, %v1945
  %v2004 = vadd.f32 %v1936, %v1945
  %v2005 = vadd.f32 %v1937, %v1945
  %v2006 = vadd.f32 %v1938, %v1945
  %v2007 = vadd.f32 %v1939, %v1945
  %v2008 = vadd.f32 %v1940, %v1945
  %v2009 = vadd.f32 %v1941, %v1945
  %v2010 = vadd.f32 %v1942, %v1945
  %v2011 = vmax.f32 %v1947, 0.0
  %v2012 = vmax.f32 %v1948, 0.0
  %v2013 = vmax.f32 %v1949, 0.0
  %v2014 = vmax.f32 %v1950, 0.0
  %v2015 = vmax.f32 %v1951, 0.0
  %v2016 = vmax.f32 %v1952, 0.0
  %v2017 = vmax.f32 %v1953, 0.0
  %v2018 = vmax.f32 %v1954, 0.0
  %v2019 = vmax.f32 %v1955, 0.0
  %v2020 = vmax.f32 %v1956, 0.0
  %v2021 = vmax.f32 %v1957, 0.0
  %v2022 = vmax.f32 %v1958, 0.0
  %v2023 = vmax.f32 %v1959, 0.0
  %v2024 = vmax.f32 %v1960, 0.0
  %v2025 = vmax.f32 %v1961, 0.0
  %v2026 = vmax.f32 %v1962, 0.0
  %v2027 = vmax.f32 %v1963, 0.0
  %v2028 = vmax.f32 %v1964, 0.0
  %v2029 = vmax.f32 %v1965, 0.0
  %v2030 = vmax.f32 %v1966, 0.0
  %v2031 = vmax.f32 %v1967, 0.0
  %v2032 = vmax.f32 %v1968, 0.0
  %v2033 = vmax.f32 %v1969, 0.0
  %v2034 = vmax.f32 %v1970, 0.0
  %v2035 = vmax.f32 %v1971, 0.0
  %v2036 = vmax.f32 %v1972, 0.0
  %v2037 = vmax.f32 %v1973, 0.0
  %v2038 = vmax.f32 %v1974, 0.0
  %v2039 = vmax.f32 %v1975, 0.0
  %v2040 = vmax.f32 %v1976, 0.0
  %v2041 = vmax.f32 %v1977, 0.0
  %v2042 = vmax.f32 %v1978, 0.0
  %v2043 = vmax.f32 %v1979, 0.0
  %v2044 = vmax.f32 %v1980, 0.0
  %v2045 = vmax.f32 %v1981, 0.0
  %v2046 = vmax.f32 %v1982, 0.0
  %v2047 = vmax.f32 %v1983, 0.0
  %v2048 = vmax.f32 %v1984, 0.0
  %v2049 = vmax.f32 %v1985, 0.0
  %v2050 = vmax.f32 %v1986, 0.0
  %v2051 = vmax.f32 %v1987, 0.0
  %v2052 = vmax.f32 %v1988, 0.0
  %v2053 = vmax.f32 %v1989, 0.0
  %v2054 = vmax.f32 %v1990, 0.0
  %v2055 = vmax.f32 %v1991, 0.0
  %v2056 = vmax.f32 %v1992, 0.0
  %v2057 = vmax.f32 %v1993, 0.0
  %v2058 = vmax.f32 %v1994, 0.0
  %v2059 = vmax.f32 %v1995, 0.0
  %v2060 = vmax.f32 %v1996, 0.0
  %v2061 = vmax.f32 %v1997, 0.0
  %v2062 = vmax.f32 %v1998, 0.0
  %v2063 = vmax.f32 %v1999, 0.0
  %v2064 = vmax.f32 %v2000, 0.0
  %v2065 = vmax.f32 %v2001, 0.0
  %v2066 = vmax.f32 %v2002, 0.0
  %v2067 = vmax.f32 %v2003, 0.0
  %v2068 = vmax.f32 %v2004, 0.0
  %v2069 = vmax.f32 %v2005, 0.0
  %v2070 = vmax.f32 %v2006, 0.0
  %v2071 = vmax.f32 %v2007, 0.0
  %v2072 = vmax.f32 %v2008, 0.0
  %v2073 = vmax.f32 %v2009, 0.0
  %v2074 = vmax.f32 %v2010, 0.0
  %2075 = vst [vmem:[%s3] sm:$0xff] %v2011
  %2076 = vst [vmem:[%s3 + $0x8] sm:$0xff] %v2012
  %2077 = vst [vmem:[%s3 + $0x10] sm:$0xff] %v2013
  %2078 = vst [vmem:[%s3 + $0x18] sm:$0xff] %v2014
  %2079 = vst [vmem:[%s3 + $0x20] sm:$0xff] %v2015
  %2080 = vst [vmem:[%s3 + $0x28] sm:$0xff] %v2016
  %2081 = vst [vmem:[%s3 + $0x30] sm:$0xff] %v2017
  %2082 = vst [vmem:[%s3 + $0x38] sm:$0xff] %v2018
  %2083 = vst [vmem:[%s3 + $0x40] sm:$0xff] %v2019
  %2084 = vst [vmem:[%s3 + $0x48] sm:$0xff] %v2020
  %2085 = vst [vmem:[%s3 + $0x50] sm:$0xff] %v2021
  %2086 = vst [vmem:[%s3 + $0x58] sm:$0xff] %v2022
  %2087 = vst [vmem:[%s3 + $0x60] sm:$0xff] %v2023
  %2088 = vst [vmem:[%s3 + $0x68] sm:$0xff] %v2024
  %2089 = vst [vmem:[%s3 + $0x70] sm:$0xff] %v2025
  %2090 = vst [vmem:[%s3 + $0x78] sm:$0xff] %v2026
  %2091 = vst [vmem:[%s3 + $0x80] sm:$0xff] %v2027
  %2092 = vst [vmem:[%s3 + $0x88] sm:$0xff] %v2028
  %2093 = vst [vmem:[%s3 + $0x90] sm:$0xff] %v2029
  %2094 = vst [vmem:[%s3 + $0x98] sm:$0xff] %v2030
  %2095 = vst [vmem:[%s3 + $0xa0] sm:$0xff] %v2031
  %2096 = vst [vmem:[%s3 + $0xa8] sm:$0xff] %v2032
  %2097 = vst [vmem:[%s3 + $0xb0] sm:$0xff] %v2033
  %2098 = vst [vmem:[%s3 + $0xb8] sm:$0xff] %v2034
  %2099 = vst [vmem:[%s3 + $0xc0] sm:$0xff] %v2035
  %2100 = vst [vmem:[%s3 + $0xc8] sm:$0xff] %v2036
  %2101 = vst [vmem:[%s3 + $0xd0] sm:$0xff] %v2037
  %2102 = vst [vmem:[%s3 + $0xd8] sm:$0xff] %v2038
  %2103 = vst [vmem:[%s3 + $0xe0] sm:$0xff] %v2039
  %2104 = vst [vmem:[%s3 + $0xe8] sm:$0xff] %v2040
  %2105 = vst [vmem:[%s3 + $0xf0] sm:$0xff] %v2041
  %2106 = vst [vmem:[%s3 + $0xf8] sm:$0xff] %v2042
  %2107 = vst [vmem:[%s3 + $0x100] sm:$0xff] %v2043
  %2108 = vst [vmem:[%s3 + $0x108] sm:$0xff] %v2044
  %2109 = vst [vmem:[%s3 + $0x110] sm:$0xff] %v2045
  %2110 = vst [vmem:[%s3 + $0x118] sm:$0xff] %v2046
  %2111 = vst [vmem:[%s3 + $0x120] sm:$0xff] %v2047
  %2112 = vst [vmem:[%s3 + $0x128] sm:$0xff] %v2048
  %2113 = vst [vmem:[%s3 + $0x130] sm:$0xff] %v2049
  %2114 = vst [vmem:[%s3 + $0x138] sm:$0xff] %v2050
  %2115 = vst [vmem:[%s3 + $0x140] sm:$0xff] %v2051
  %2116 = vst [vmem:[%s3 + $0x148] sm:$0xff] %v2052
  %2117 = vst [vmem:[%s3 + $0x150] sm:$0xff] %v2053
  %2118 = vst [vmem:[%s3 + $0x158] sm:$0xff] %v2054
  %2119 = vst [vmem:[%s3 + $0x160] sm:$0xff] %v2055
  %2120 = vst [vmem:[%s3 + $0x168] sm:$0xff] %v2056
  %2121 = vst [vmem:[%s3 + $0x170] sm:$0xff] %v2057
  %2122 = vst [vmem:[%s3 + $0x178] sm:$0xff] %v2058
  %2123 = vst [vmem:[%s3 + $0x180] sm:$0xff] %v2059
  %2124 = vst [vmem:[%s3 + $0x188] sm:$0xff] %v2060
  %2125 = vst [vmem:[%s3 + $0x190] sm:$0xff] %v2061
  %2126 = vst [vmem:[%s3 + $0x198] sm:$0xff] %v2062
  %2127 = vst [vmem:[%s3 + $0x1a0] sm:$0xff] %v2063
  %2128 = vst [vmem:[%s3 + $0x1a8] sm:$0xff] %v2064
  %2129 = vst [vmem:[%s3 + $0x1b0] sm:$0xff] %v2065
  %2130 = vst [vmem:[%s3 + $0x1b8] sm:$0xff] %v2066
  %2131 = vst [vmem:[%s3 + $0x1c0] sm:$0xff] %v2067
  %2132 = vst [vmem:[%s3 + $0x1c8] sm:$0xff] %v2068
  %2133 = vst [vmem:[%s3 + $0x1d0] sm:$0xff] %v2069
  %2134 = vst [vmem:[%s3 + $0x1d8] sm:$0xff] %v2070
  %2135 = vst [vmem:[%s3 + $0x1e0] sm:$0xff] %v2071
  %2136 = vst [vmem:[%s3 + $0x1e8] sm:$0xff] %v2072
  %2137 = vst [vmem:[%s3 + $0x1f0] sm:$0xff] %v2073
  %2138 = vst [vmem:[%s3 + $0x1f8] sm:$0xff] %v2074
  // Predicated region
  $region14: #{net_forward.3} parent=0 // pred_check
    _
  $region15: #{net_forward.3} parent=0 // pred_check_branch
    %2140 = sbr.rel (0) target = $region17
  $region16: #{net_forward.3} parent=0 // pred_region
    _
  $region17: #{net_forward.3} parent=0 // pred_fallthru
    _
  // Predicated region
  $region18: #{net_forward.3} parent=0 // pred_check
    _
  $region19: #{net_forward.3} parent=0 // pred_check_branch
    %2142 = sbr.rel (0) target = $region21
  $region20: #{net_forward.3} parent=0 // pred_region
    _
  $region21: #{net_forward.3} parent=0 // pred_fallthru
    _

// kernel: net_forward.4
$region0: #{net_forward.4}
  #allocation0 [shape = 'u32[]', space=smem, size = 0x4, offset = 0x4, fixed_abs, tag = 'smem constant byte address 0x4 - core index']
  #allocation1 [shape = 'u32[72,128]{1,0:T(1,128)}', space=vmem, size = 0x9000, scoped, tag = 'internal scratch']
  %s0 = inlined_call_operand.vmem [shape: bf16[4,128,256], index: 0, kind: input, shape index: {}]
  %s1 = inlined_call_operand.vmem [shape: bf16[256,128], index: 1, kind: input, shape index: {}]
  %s2 = inlined_call_operand.vmem [shape: f32[1,128], index: 2, kind: input, shape index: {}]
  %s3 = inlined_call_operand.vmem [shape: f32[128,128], index: 3, kind: output, shape index: {}]
  %s4 = sld [smem:[#allocation0]]
  $region22: #{net_forward.4} parent=0
    _
  %s6 = ssub.s32 1, %s4
  %s7 = scalar_select 0, %s6, %s4
  // Predicated region
  $region2: #{net_forward.4} parent=0 // pred_check
    _
  $region3: #{net_forward.4} parent=0 // pred_check_branch
    %9 = sbr.rel (0) target = $region5
  $region4: #{net_forward.4} parent=0 // pred_region
    _
  $region5: #{net_forward.4} parent=0 // pred_fallthru
    _
  // Predicated region
  $region6: #{net_forward.4} parent=0 // pred_check
    _
  $region7: #{net_forward.4} parent=0 // pred_check_branch
    %11 = sbr.rel (0) target = $region9
  $region8: #{net_forward.4} parent=0 // pred_region
    _
  $region9: #{net_forward.4} parent=0 // pred_fallthru
    _
  // Predicated region
  $region10: #{net_forward.4} parent=0 // pred_check
    _
  $region11: #{net_forward.4} parent=0 // pred_check_branch
    %13 = sbr.rel (0) target = $region13
  $region12: #{net_forward.4} parent=0 // pred_region
    _
  $region13: #{net_forward.4} parent=0 // pred_fallthru
    _
  %v14 = vld [vmem:[%s0] sm:$0xff]
  %v15 = vld [vmem:[%s0 + $0x8] sm:$0xff]
  %v16 = vld [vmem:[%s0 + $0x10] sm:$0xff]
  %v17 = vld [vmem:[%s0 + $0x18] sm:$0xff]
  %v18 = vld [vmem:[%s0 + $0x20] sm:$0xff]
  %v19 = vld [vmem:[%s0 + $0x28] sm:$0xff]
  %v20 = vld [vmem:[%s0 + $0x30] sm:$0xff]
  %v21 = vld [vmem:[%s0 + $0x38] sm:$0xff]
  %v22 = vld [vmem:[%s0 + $0x40] sm:$0xff]
  %v23 = vld [vmem:[%s0 + $0x48] sm:$0xff]
  %v24 = vld [vmem:[%s0 + $0x50] sm:$0xff]
  %v25 = vld [vmem:[%s0 + $0x58] sm:$0xff]
  %v26 = vld [vmem:[%s0 + $0x60] sm:$0xff]
  %v27 = vld [vmem:[%s0 + $0x68] sm:$0xff]
  %v28 = vld [vmem:[%s0 + $0x70] sm:$0xff]
  %v29 = vld [vmem:[%s0 + $0x78] sm:$0xff]
  %v30 = vld [vmem:[%s0 + $0x80] sm:$0xff]
  %v31 = vld [vmem:[%s0 + $0x88] sm:$0xff]
  %v32 = vld [vmem:[%s0 + $0x90] sm:$0xff]
  %v33 = vld [vmem:[%s0 + $0x98] sm:$0xff]
  %v34 = vld [vmem:[%s0 + $0xa0] sm:$0xff]
  %v35 = vld [vmem:[%s0 + $0xa8] sm:$0xff]
  %v36 = vld [vmem:[%s0 + $0xb0] sm:$0xff]
  %v37 = vld [vmem:[%s0 + $0xb8] sm:$0xff]
  %v38 = vld [vmem:[%s0 + $0xc0] sm:$0xff]
  %v39 = vld [vmem:[%s0 + $0xc8] sm:$0xff]
  %v40 = vld [vmem:[%s0 + $0xd0] sm:$0xff]
  %v41 = vld [vmem:[%s0 + $0xd8] sm:$0xff]
  %v42 = vld [vmem:[%s0 + $0xe0] sm:$0xff]
  %v43 = vld [vmem:[%s0 + $0xe8] sm:$0xff]
  %v44 = vld [vmem:[%s0 + $0xf0] sm:$0xff]
  %v45 = vld [vmem:[%s0 + $0xf8] sm:$0xff]
  %v46 = vld [vmem:[%s0 + $0x100] sm:$0xff]
  %v47 = vld [vmem:[%s0 + $0x108] sm:$0xff]
  %v48 = vld [vmem:[%s0 + $0x110] sm:$0xff]
  %v49 = vld [vmem:[%s0 + $0x118] sm:$0xff]
  %v50 = vld [vmem:[%s0 + $0x120] sm:$0xff]
  %v51 = vld [vmem:[%s0 + $0x128] sm:$0xff]
  %v52 = vld [vmem:[%s0 + $0x130] sm:$0xff]
  %v53 = vld [vmem:[%s0 + $0x138] sm:$0xff]
  %v54 = vld [vmem:[%s0 + $0x140] sm:$0xff]
  %v55 = vld [vmem:[%s0 + $0x148] sm:$0xff]
  %v56 = vld [vmem:[%s0 + $0x150] sm:$0xff]
  %v57 = vld [vmem:[%s0 + $0x158] sm:$0xff]
  %v58 = vld [vmem:[%s0 + $0x160] sm:$0xff]
  %v59 = vld [vmem:[%s0 + $0x168] sm:$0xff]
  %v60 = vld [vmem:[%s0 + $0x170] sm:$0xff]
  %v61 = vld [vmem:[%s0 + $0x178] sm:$0xff]
  %v62 = vld [vmem:[%s0 + $0x180] sm:$0xff]
  %v63 = vld [vmem:[%s0 + $0x188] sm:$0xff]
  %v64 = vld [vmem:[%s0 + $0x190] sm:$0xff]
  %v65 = vld [vmem:[%s0 + $0x198] sm:$0xff]
  %v66 = vld [vmem:[%s0 + $0x1a0] sm:$0xff]
  %v67 = vld [vmem:[%s0 + $0x1a8] sm:$0xff]
  %v68 = vld [vmem:[%s0 + $0x1b0] sm:$0xff]
  %v69 = vld [vmem:[%s0 + $0x1b8] sm:$0xff]
  %v70 = vld [vmem:[%s0 + $0x1c0] sm:$0xff]
  %v71 = vld [vmem:[%s0 + $0x1c8] sm:$0xff]
  %v72 = vld [vmem:[%s0 + $0x1d0] sm:$0xff]
  %v73 = vld [vmem:[%s0 + $0x1d8] sm:$0xff]
  %v74 = vld [vmem:[%s0 + $0x1e0] sm:$0xff]
  %v75 = vld [vmem:[%s0 + $0x1e8] sm:$0xff]
  %v76 = vld [vmem:[%s0 + $0x1f0] sm:$0xff]
  %v77 = vld [vmem:[%s0 + $0x1f8] sm:$0xff]
  %v78 = vld [vmem:[%s1] sm:$0xf]
  %v79 = vld [vmem:[%s1 + $0x4] sm:$0xf]
  %v80 = vld [vmem:[%s1 + $0x8] sm:$0xf]
  %v81 = vld [vmem:[%s1 + $0xc] sm:$0xf]
  %v82 = vld [vmem:[%s1 + $0x10] sm:$0xf]
  %v83 = vld [vmem:[%s1 + $0x14] sm:$0xf]
  %v84 = vld [vmem:[%s1 + $0x18] sm:$0xf]
  %v85 = vld [vmem:[%s1 + $0x1c] sm:$0xf]
  %v86 = vld [vmem:[%s1 + $0x20] sm:$0xf]
  %v87 = vld [vmem:[%s1 + $0x24] sm:$0xf]
  %v88 = vld [vmem:[%s1 + $0x28] sm:$0xf]
  %v89 = vld [vmem:[%s1 + $0x2c] sm:$0xf]
  %v90 = vld [vmem:[%s1 + $0x30] sm:$0xf]
  %v91 = vld [vmem:[%s1 + $0x34] sm:$0xf]
  %v92 = vld [vmem:[%s1 + $0x38] sm:$0xf]
  %v93 = vld [vmem:[%s1 + $0x3c] sm:$0xf]
  %v94 = vld [vmem:[%s1 + $0x40] sm:$0xf]
  %v95 = vld [vmem:[%s1 + $0x44] sm:$0xf]
  %v96 = vld [vmem:[%s1 + $0x48] sm:$0xf]
  %v97 = vld [vmem:[%s1 + $0x4c] sm:$0xf]
  %v98 = vld [vmem:[%s1 + $0x50] sm:$0xf]
  %v99 = vld [vmem:[%s1 + $0x54] sm:$0xf]
  %v100 = vld [vmem:[%s1 + $0x58] sm:$0xf]
  %v101 = vld [vmem:[%s1 + $0x5c] sm:$0xf]
  %v102 = vld [vmem:[%s1 + $0x60] sm:$0xf]
  %v103 = vld [vmem:[%s1 + $0x64] sm:$0xf]
  %v104 = vld [vmem:[%s1 + $0x68] sm:$0xf]
  %v105 = vld [vmem:[%s1 + $0x6c] sm:$0xf]
  %v106 = vld [vmem:[%s1 + $0x70] sm:$0xf]
  %v107 = vld [vmem:[%s1 + $0x74] sm:$0xf]
  %v108 = vld [vmem:[%s1 + $0x78] sm:$0xf]
  %v109 = vld [vmem:[%s1 + $0x7c] sm:$0xf]
  %v174 = vunpack.c.l.b16 %v14
  %v175 = vunpack.c.h.b16 %v14
  %v176 = vunpack.c.l.b16 %v15
  %v177 = vunpack.c.h.b16 %v15
  %v178 = vunpack.c.l.b16 %v16
  %v179 = vunpack.c.h.b16 %v16
  %v180 = vunpack.c.l.b16 %v17
  %v181 = vunpack.c.h.b16 %v17
  %v182 = vunpack.c.l.b16 %v18
  %v183 = vunpack.c.h.b16 %v18
  %v184 = vunpack.c.l.b16 %v19
  %v185 = vunpack.c.h.b16 %v19
  %v186 = vunpack.c.l.b16 %v20
  %v187 = vunpack.c.h.b16 %v20
  %v188 = vunpack.c.l.b16 %v21
  %v189 = vunpack.c.h.b16 %v21
  %v190 = vunpack.c.l.b16 %v22
  %v191 = vunpack.c.h.b16 %v22
  %v192 = vunpack.c.l.b16 %v23
  %v193 = vunpack.c.h.b16 %v23
  %v194 = vunpack.c.l.b16 %v24
  %v195 = vunpack.c.h.b16 %v24
  %v196 = vunpack.c.l.b16 %v25
  %v197 = vunpack.c.h.b16 %v25
  %v198 = vunpack.c.l.b16 %v26
  %v199 = vunpack.c.h.b16 %v26
  %v200 = vunpack.c.l.b16 %v27
  %v201 = vunpack.c.h.b16 %v27
  %v202 = vunpack.c.l.b16 %v28
  %v203 = vunpack.c.h.b16 %v28
  %v204 = vunpack.c.l.b16 %v29
  %v205 = vunpack.c.h.b16 %v29
  %v206 = vunpack.c.l.b16 %v30
  %v207 = vunpack.c.h.b16 %v30
  %v208 = vunpack.c.l.b16 %v31
  %v209 = vunpack.c.h.b16 %v31
  %v210 = vunpack.c.l.b16 %v32
  %v211 = vunpack.c.h.b16 %v32
  %v212 = vunpack.c.l.b16 %v33
  %v213 = vunpack.c.h.b16 %v33
  %v214 = vunpack.c.l.b16 %v34
  %v215 = vunpack.c.h.b16 %v34
  %v216 = vunpack.c.l.b16 %v35
  %v217 = vunpack.c.h.b16 %v35
  %v218 = vunpack.c.l.b16 %v36
  %v219 = vunpack.c.h.b16 %v36
  %v220 = vunpack.c.l.b16 %v37
  %v221 = vunpack.c.h.b16 %v37
  %v222 = vunpack.c.l.b16 %v38
  %v223 = vunpack.c.h.b16 %v38
  %v224 = vunpack.c.l.b16 %v39
  %v225 = vunpack.c.h.b16 %v39
  %v226 = vunpack.c.l.b16 %v40
  %v227 = vunpack.c.h.b16 %v40
  %v228 = vunpack.c.l.b16 %v41
  %v229 = vunpack.c.h.b16 %v41
  %v230 = vunpack.c.l.b16 %v42
  %v231 = vunpack.c.h.b16 %v42
  %v232 = vunpack.c.l.b16 %v43
  %v233 = vunpack.c.h.b16 %v43
  %v234 = vunpack.c.l.b16 %v44
  %v235 = vunpack.c.h.b16 %v44
  %v236 = vunpack.c.l.b16 %v45
  %v237 = vunpack.c.h.b16 %v45
  %v238 = vunpack.c.l.b16 %v46
  %v239 = vunpack.c.h.b16 %v46
  %v240 = vunpack.c.l.b16 %v47
  %v241 = vunpack.c.h.b16 %v47
  %v242 = vunpack.c.l.b16 %v48
  %v243 = vunpack.c.h.b16 %v48
  %v244 = vunpack.c.l.b16 %v49
  %v245 = vunpack.c.h.b16 %v49
  %v246 = vunpack.c.l.b16 %v50
  %v247 = vunpack.c.h.b16 %v50
  %v248 = vunpack.c.l.b16 %v51
  %v249 = vunpack.c.h.b16 %v51
  %v250 = vunpack.c.l.b16 %v52
  %v251 = vunpack.c.h.b16 %v52
  %v252 = vunpack.c.l.b16 %v53
  %v253 = vunpack.c.h.b16 %v53
  %v254 = vunpack.c.l.b16 %v54
  %v255 = vunpack.c.h.b16 %v54
  %v256 = vunpack.c.l.b16 %v55
  %v257 = vunpack.c.h.b16 %v55
  %v258 = vunpack.c.l.b16 %v56
  %v259 = vunpack.c.h.b16 %v56
  %v260 = vunpack.c.l.b16 %v57
  %v261 = vunpack.c.h.b16 %v57
  %v262 = vunpack.c.l.b16 %v58
  %v263 = vunpack.c.h.b16 %v58
  %v264 = vunpack.c.l.b16 %v59
  %v265 = vunpack.c.h.b16 %v59
  %v266 = vunpack.c.l.b16 %v60
  %v267 = vunpack.c.h.b16 %v60
  %v268 = vunpack.c.l.b16 %v61
  %v269 = vunpack.c.h.b16 %v61
  %v270 = vunpack.c.l.b16 %v62
  %v271 = vunpack.c.h.b16 %v62
  %v272 = vunpack.c.l.b16 %v63
  %v273 = vunpack.c.h.b16 %v63
  %v274 = vunpack.c.l.b16 %v64
  %v275 = vunpack.c.h.b16 %v64
  %v276 = vunpack.c.l.b16 %v65
  %v277 = vunpack.c.h.b16 %v65
  %v278 = vunpack.c.l.b16 %v66
  %v279 = vunpack.c.h.b16 %v66
  %v280 = vunpack.c.l.b16 %v67
  %v281 = vunpack.c.h.b16 %v67
  %v282 = vunpack.c.l.b16 %v68
  %v283 = vunpack.c.h.b16 %v68
  %v284 = vunpack.c.l.b16 %v69
  %v285 = vunpack.c.h.b16 %v69
  %v286 = vunpack.c.l.b16 %v70
  %v287 = vunpack.c.h.b16 %v70
  %v288 = vunpack.c.l.b16 %v71
  %v289 = vunpack.c.h.b16 %v71
  %v290 = vunpack.c.l.b16 %v72
  %v291 = vunpack.c.h.b16 %v72
  %v292 = vunpack.c.l.b16 %v73
  %v293 = vunpack.c.h.b16 %v73
  %v294 = vunpack.c.l.b16 %v74
  %v295 = vunpack.c.h.b16 %v74
  %v296 = vunpack.c.l.b16 %v75
  %v297 = vunpack.c.h.b16 %v75
  %v298 = vunpack.c.l.b16 %v76
  %v299 = vunpack.c.h.b16 %v76
  %v300 = vunpack.c.l.b16 %v77
  %v301 = vunpack.c.h.b16 %v77
  %v302 = vpack.c.b16 %v176, %v174
  %v303 = vpack.c.b16 %v177, %v175
  %v304 = vpack.c.b16 %v180, %v178
  %v305 = vpack.c.b16 %v181, %v179
  %v306 = vpack.c.b16 %v184, %v182
  %v307 = vpack.c.b16 %v185, %v183
  %v308 = vpack.c.b16 %v188, %v186
  %v309 = vpack.c.b16 %v189, %v187
  %v310 = vpack.c.b16 %v192, %v190
  %v311 = vpack.c.b16 %v193, %v191
  %v312 = vpack.c.b16 %v196, %v194
  %v313 = vpack.c.b16 %v197, %v195
  %v314 = vpack.c.b16 %v200, %v198
  %v315 = vpack.c.b16 %v201, %v199
  %v316 = vpack.c.b16 %v204, %v202
  %v317 = vpack.c.b16 %v205, %v203
  %v318 = vpack.c.b16 %v208, %v206
  %v319 = vpack.c.b16 %v209, %v207
  %v320 = vpack.c.b16 %v212, %v210
  %v321 = vpack.c.b16 %v213, %v211
  %v322 = vpack.c.b16 %v216, %v214
  %v323 = vpack.c.b16 %v217, %v215
  %v324 = vpack.c.b16 %v220, %v218
  %v325 = vpack.c.b16 %v221, %v219
  %v326 = vpack.c.b16 %v224, %v222
  %v327 = vpack.c.b16 %v225, %v223
  %v328 = vpack.c.b16 %v228, %v226
  %v329 = vpack.c.b16 %v229, %v227
  %v330 = vpack.c.b16 %v232, %v230
  %v331 = vpack.c.b16 %v233, %v231
  %v332 = vpack.c.b16 %v236, %v234
  %v333 = vpack.c.b16 %v237, %v235
  %v334 = vpack.c.b16 %v240, %v238
  %v335 = vpack.c.b16 %v241, %v239
  %v336 = vpack.c.b16 %v244, %v242
  %v337 = vpack.c.b16 %v245, %v243
  %v338 = vpack.c.b16 %v248, %v246
  %v339 = vpack.c.b16 %v249, %v247
  %v340 = vpack.c.b16 %v252, %v250
  %v341 = vpack.c.b16 %v253, %v251
  %v342 = vpack.c.b16 %v256, %v254
  %v343 = vpack.c.b16 %v257, %v255
  %v344 = vpack.c.b16 %v260, %v258
  %v345 = vpack.c.b16 %v261, %v259
  %v346 = vpack.c.b16 %v264, %v262
  %v347 = vpack.c.b16 %v265, %v263
  %v348 = vpack.c.b16 %v268, %v266
  %v349 = vpack.c.b16 %v269, %v267
  %v350 = vpack.c.b16 %v272, %v270
  %v351 = vpack.c.b16 %v273, %v271
  %v352 = vpack.c.b16 %v276, %v274
  %v353 = vpack.c.b16 %v277, %v275
  %v354 = vpack.c.b16 %v280, %v278
  %v355 = vpack.c.b16 %v281, %v279
  %v356 = vpack.c.b16 %v284, %v282
  %v357 = vpack.c.b16 %v285, %v283
  %v358 = vpack.c.b16 %v288, %v286
  %v359 = vpack.c.b16 %v289, %v287
  %v360 = vpack.c.b16 %v292, %v290
  %v361 = vpack.c.b16 %v293, %v291
  %v362 = vpack.c.b16 %v296, %v294
  %v363 = vpack.c.b16 %v297, %v295
  %v364 = vpack.c.b16 %v300, %v298
  %v365 = vpack.c.b16 %v301, %v299
  %v462 = vunpack.c.l.b16 %v78
  %v463 = vunpack.c.l.b16 %v79
  %v464 = vunpack.c.l.b16 %v80
  %v465 = vunpack.c.l.b16 %v81
  %v466 = vunpack.c.l.b16 %v82
  %v467 = vunpack.c.l.b16 %v83
  %v468 = vunpack.c.l.b16 %v84
  %v469 = vunpack.c.l.b16 %v85
  %v470 = vunpack.c.l.b16 %v86
  %v471 = vunpack.c.l.b16 %v87
  %v472 = vunpack.c.l.b16 %v88
  %v473 = vunpack.c.l.b16 %v89
  %v474 = vunpack.c.l.b16 %v90
  %v475 = vunpack.c.l.b16 %v91
  %v476 = vunpack.c.l.b16 %v92
  %v477 = vunpack.c.l.b16 %v93
  %v478 = vunpack.c.l.b16 %v94
  %v479 = vunpack.c.l.b16 %v95
  %v480 = vunpack.c.l.b16 %v96
  %v481 = vunpack.c.l.b16 %v97
  %v482 = vunpack.c.l.b16 %v98
  %v483 = vunpack.c.l.b16 %v99
  %v484 = vunpack.c.l.b16 %v100
  %v485 = vunpack.c.l.b16 %v101
  %v486 = vunpack.c.l.b16 %v102
  %v487 = vunpack.c.l.b16 %v103
  %v488 = vunpack.c.l.b16 %v104
  %v489 = vunpack.c.l.b16 %v105
  %v490 = vunpack.c.l.b16 %v106
  %v491 = vunpack.c.l.b16 %v107
  %v492 = vunpack.c.l.b16 %v108
  %v493 = vunpack.c.l.b16 %v109
  %v494 = vpack.c.b16 %v463, %v462
  %v495 = vpack.c.b16 %v465, %v464
  %v496 = vpack.c.b16 %v467, %v466
  %v497 = vpack.c.b16 %v469, %v468
  %v498 = vpack.c.b16 %v471, %v470
  %v499 = vpack.c.b16 %v473, %v472
  %v500 = vpack.c.b16 %v475, %v474
  %v501 = vpack.c.b16 %v477, %v476
  %v502 = vpack.c.b16 %v479, %v478
  %v503 = vpack.c.b16 %v481, %v480
  %v504 = vpack.c.b16 %v483, %v482
  %v505 = vpack.c.b16 %v485, %v484
  %v506 = vpack.c.b16 %v487, %v486
  %v507 = vpack.c.b16 %v489, %v488
  %v508 = vpack.c.b16 %v491, %v490
  %v509 = vpack.c.b16 %v493, %v492
  %526 = vmatpush.bf16.msra.mxu0 %v501
  %527 = vmatpush.bf16.msra.mxu0 %v500
  %528 = vmatpush.bf16.msra.mxu0 %v499
  %529 = vmatpush.bf16.msra.mxu0 %v498
  %530 = vmatpush.bf16.msra.mxu0 %v497
  %531 = vmatpush.bf16.msra.mxu0 %v496
  %532 = vmatpush.bf16.msra.mxu0 %v495
  %533 = vmatpush.bf16.msra.mxu0 %v494
  %534 = vmatmul.bf16.gmra.mxu0 %v302
  %v535 = vpop.f32.mrf.mxu0
  %v536 = vadd.f32 0.0, %v535
  %v537 = vpop.f32.mrf.mxu0
  %v538 = vadd.f32 0.0, %v537
  %539 = vmatmul.bf16.gmra.mxu0 %v304
  %v540 = vpop.f32.mrf.mxu0
  %v541 = vadd.f32 0.0, %v540
  %v542 = vpop.f32.mrf.mxu0
  %v543 = vadd.f32 0.0, %v542
  %544 = vmatmul.bf16.gmra.mxu0 %v306
  %v545 = vpop.f32.mrf.mxu0
  %v546 = vadd.f32 0.0, %v545
  %v547 = vpop.f32.mrf.mxu0
  %v548 = vadd.f32 0.0, %v547
  %549 = vmatmul.bf16.gmra.mxu0 %v308
  %v550 = vpop.f32.mrf.mxu0
  %v551 = vadd.f32 0.0, %v550
  %v552 = vpop.f32.mrf.mxu0
  %v553 = vadd.f32 0.0, %v552
  %554 = vmatmul.bf16.gmra.mxu0 %v310
  %v555 = vpop.f32.mrf.mxu0
  %v556 = vadd.f32 0.0, %v555
  %v557 = vpop.f32.mrf.mxu0
  %v558 = vadd.f32 0.0, %v557
  %559 = vmatmul.bf16.gmra.mxu0 %v312
  %v560 = vpop.f32.mrf.mxu0
  %v561 = vadd.f32 0.0, %v560
  %v562 = vpop.f32.mrf.mxu0
  %v563 = vadd.f32 0.0, %v562
  %564 = vmatmul.bf16.gmra.mxu0 %v314
  %v565 = vpop.f32.mrf.mxu0
  %v566 = vadd.f32 0.0, %v565
  %v567 = vpop.f32.mrf.mxu0
  %v568 = vadd.f32 0.0, %v567
  %569 = vmatmul.bf16.gmra.mxu0 %v316
  %v570 = vpop.f32.mrf.mxu0
  %v571 = vadd.f32 0.0, %v570
  %v572 = vpop.f32.mrf.mxu0
  %v573 = vadd.f32 0.0, %v572
  %574 = vmatmul.bf16.gmra.mxu0 %v318
  %v575 = vpop.f32.mrf.mxu0
  %v576 = vadd.f32 0.0, %v575
  %v577 = vpop.f32.mrf.mxu0
  %v578 = vadd.f32 0.0, %v577
  %579 = vmatmul.bf16.gmra.mxu0 %v320
  %v580 = vpop.f32.mrf.mxu0
  %v581 = vadd.f32 0.0, %v580
  %v582 = vpop.f32.mrf.mxu0
  %v583 = vadd.f32 0.0, %v582
  %584 = vmatmul.bf16.gmra.mxu0 %v322
  %v585 = vpop.f32.mrf.mxu0
  %v586 = vadd.f32 0.0, %v585
  %v587 = vpop.f32.mrf.mxu0
  %v588 = vadd.f32 0.0, %v587
  %589 = vmatmul.bf16.gmra.mxu0 %v324
  %v590 = vpop.f32.mrf.mxu0
  %v591 = vadd.f32 0.0, %v590
  %v592 = vpop.f32.mrf.mxu0
  %v593 = vadd.f32 0.0, %v592
  %594 = vmatmul.bf16.gmra.mxu0 %v326
  %v595 = vpop.f32.mrf.mxu0
  %v596 = vadd.f32 0.0, %v595
  %v597 = vpop.f32.mrf.mxu0
  %v598 = vadd.f32 0.0, %v597
  %599 = vmatmul.bf16.gmra.mxu0 %v328
  %v600 = vpop.f32.mrf.mxu0
  %v601 = vadd.f32 0.0, %v600
  %v602 = vpop.f32.mrf.mxu0
  %v603 = vadd.f32 0.0, %v602
  %604 = vmatmul.bf16.gmra.mxu0 %v330
  %v605 = vpop.f32.mrf.mxu0
  %v606 = vadd.f32 0.0, %v605
  %v607 = vpop.f32.mrf.mxu0
  %v608 = vadd.f32 0.0, %v607
  %609 = vmatmul.bf16.gmra.mxu0 %v332
  %v610 = vpop.f32.mrf.mxu0
  %v611 = vadd.f32 0.0, %v610
  %v612 = vpop.f32.mrf.mxu0
  %v613 = vadd.f32 0.0, %v612
  %614 = vmatmul.bf16.gmra.mxu0 %v334
  %v615 = vpop.f32.mrf.mxu0
  %v616 = vadd.f32 0.0, %v615
  %v617 = vpop.f32.mrf.mxu0
  %v618 = vadd.f32 0.0, %v617
  %619 = vmatmul.bf16.gmra.mxu0 %v336
  %v620 = vpop.f32.mrf.mxu0
  %v621 = vadd.f32 0.0, %v620
  %v622 = vpop.f32.mrf.mxu0
  %v623 = vadd.f32 0.0, %v622
  %624 = vmatmul.bf16.gmra.mxu0 %v338
  %v625 = vpop.f32.mrf.mxu0
  %v626 = vadd.f32 0.0, %v625
  %v627 = vpop.f32.mrf.mxu0
  %v628 = vadd.f32 0.0, %v627
  %629 = vmatmul.bf16.gmra.mxu0 %v340
  %v630 = vpop.f32.mrf.mxu0
  %v631 = vadd.f32 0.0, %v630
  %v632 = vpop.f32.mrf.mxu0
  %v633 = vadd.f32 0.0, %v632
  %634 = vmatmul.bf16.gmra.mxu0 %v342
  %v635 = vpop.f32.mrf.mxu0
  %v636 = vadd.f32 0.0, %v635
  %v637 = vpop.f32.mrf.mxu0
  %v638 = vadd.f32 0.0, %v637
  %639 = vmatmul.bf16.gmra.mxu0 %v344
  %v640 = vpop.f32.mrf.mxu0
  %v641 = vadd.f32 0.0, %v640
  %v642 = vpop.f32.mrf.mxu0
  %v643 = vadd.f32 0.0, %v642
  %644 = vmatmul.bf16.gmra.mxu0 %v346
  %v645 = vpop.f32.mrf.mxu0
  %v646 = vadd.f32 0.0, %v645
  %v647 = vpop.f32.mrf.mxu0
  %v648 = vadd.f32 0.0, %v647
  %649 = vmatmul.bf16.gmra.mxu0 %v348
  %v650 = vpop.f32.mrf.mxu0
  %v651 = vadd.f32 0.0, %v650
  %v652 = vpop.f32.mrf.mxu0
  %v653 = vadd.f32 0.0, %v652
  %654 = vmatmul.bf16.gmra.mxu0 %v350
  %v655 = vpop.f32.mrf.mxu0
  %v656 = vadd.f32 0.0, %v655
  %v657 = vpop.f32.mrf.mxu0
  %v658 = vadd.f32 0.0, %v657
  %659 = vmatmul.bf16.gmra.mxu0 %v352
  %v660 = vpop.f32.mrf.mxu0
  %v661 = vadd.f32 0.0, %v660
  %v662 = vpop.f32.mrf.mxu0
  %v663 = vadd.f32 0.0, %v662
  %664 = vmatmul.bf16.gmra.mxu0 %v354
  %v665 = vpop.f32.mrf.mxu0
  %v666 = vadd.f32 0.0, %v665
  %v667 = vpop.f32.mrf.mxu0
  %v668 = vadd.f32 0.0, %v667
  %669 = vmatmul.bf16.gmra.mxu0 %v356
  %v670 = vpop.f32.mrf.mxu0
  %v671 = vadd.f32 0.0, %v670
  %v672 = vpop.f32.mrf.mxu0
  %v673 = vadd.f32 0.0, %v672
  %674 = vmatmul.bf16.gmra.mxu0 %v358
  %v675 = vpop.f32.mrf.mxu0
  %v676 = vadd.f32 0.0, %v675
  %v677 = vpop.f32.mrf.mxu0
  %v678 = vadd.f32 0.0, %v677
  %679 = vmatmul.bf16.gmra.mxu0 %v360
  %v680 = vpop.f32.mrf.mxu0
  %v681 = vadd.f32 0.0, %v680
  %v682 = vpop.f32.mrf.mxu0
  %v683 = vadd.f32 0.0, %v682
  %684 = vmatmul.bf16.gmra.mxu0 %v362
  %v685 = vpop.f32.mrf.mxu0
  %v686 = vadd.f32 0.0, %v685
  %v687 = vpop.f32.mrf.mxu0
  %v688 = vadd.f32 0.0, %v687
  %689 = vmatmul.bf16.gmra.mxu0 %v364
  %v690 = vpop.f32.mrf.mxu0
  %v691 = vadd.f32 0.0, %v690
  %v692 = vpop.f32.mrf.mxu0
  %v693 = vadd.f32 0.0, %v692
  %694 = vdwg.mxu0
  %695 = vmatpush.bf16.msra.mxu0 %v509
  %696 = vmatpush.bf16.msra.mxu0 %v508
  %697 = vmatpush.bf16.msra.mxu0 %v507
  %698 = vmatpush.bf16.msra.mxu0 %v506
  %699 = vmatpush.bf16.msra.mxu0 %v505
  %700 = vmatpush.bf16.msra.mxu0 %v504
  %701 = vmatpush.bf16.msra.mxu0 %v503
  %702 = vmatpush.bf16.msra.mxu0 %v502
  %703 = vmatmul.bf16.gmra.mxu0 %v303
  %v704 = vpop.f32.mrf.mxu0
  %v705 = vadd.f32 %v536, %v704
  %v706 = vpop.f32.mrf.mxu0
  %v707 = vadd.f32 %v538, %v706
  %708 = vmatmul.bf16.gmra.mxu0 %v305
  %v709 = vpop.f32.mrf.mxu0
  %v710 = vadd.f32 %v541, %v709
  %v711 = vpop.f32.mrf.mxu0
  %v712 = vadd.f32 %v543, %v711
  %713 = vmatmul.bf16.gmra.mxu0 %v307
  %v714 = vpop.f32.mrf.mxu0
  %v715 = vadd.f32 %v546, %v714
  %v716 = vpop.f32.mrf.mxu0
  %v717 = vadd.f32 %v548, %v716
  %718 = vmatmul.bf16.gmra.mxu0 %v309
  %v719 = vpop.f32.mrf.mxu0
  %v720 = vadd.f32 %v551, %v719
  %v721 = vpop.f32.mrf.mxu0
  %v722 = vadd.f32 %v553, %v721
  %723 = vmatmul.bf16.gmra.mxu0 %v311
  %v724 = vpop.f32.mrf.mxu0
  %v725 = vadd.f32 %v556, %v724
  %v726 = vpop.f32.mrf.mxu0
  %v727 = vadd.f32 %v558, %v726
  %728 = vmatmul.bf16.gmra.mxu0 %v313
  %v729 = vpop.f32.mrf.mxu0
  %v730 = vadd.f32 %v561, %v729
  %v731 = vpop.f32.mrf.mxu0
  %v732 = vadd.f32 %v563, %v731
  %733 = vmatmul.bf16.gmra.mxu0 %v315
  %v734 = vpop.f32.mrf.mxu0
  %v735 = vadd.f32 %v566, %v734
  %v736 = vpop.f32.mrf.mxu0
  %v737 = vadd.f32 %v568, %v736
  %738 = vmatmul.bf16.gmra.mxu0 %v317
  %v739 = vpop.f32.mrf.mxu0
  %v740 = vadd.f32 %v571, %v739
  %v741 = vpop.f32.mrf.mxu0
  %v742 = vadd.f32 %v573, %v741
  %743 = vmatmul.bf16.gmra.mxu0 %v319
  %v744 = vpop.f32.mrf.mxu0
  %v745 = vadd.f32 %v576, %v744
  %v746 = vpop.f32.mrf.mxu0
  %v747 = vadd.f32 %v578, %v746
  %748 = vmatmul.bf16.gmra.mxu0 %v321
  %v749 = vpop.f32.mrf.mxu0
  %v750 = vadd.f32 %v581, %v749
  %v751 = vpop.f32.mrf.mxu0
  %v752 = vadd.f32 %v583, %v751
  %753 = vmatmul.bf16.gmra.mxu0 %v323
  %v754 = vpop.f32.mrf.mxu0
  %v755 = vadd.f32 %v586, %v754
  %v756 = vpop.f32.mrf.mxu0
  %v757 = vadd.f32 %v588, %v756
  %758 = vmatmul.bf16.gmra.mxu0 %v325
  %v759 = vpop.f32.mrf.mxu0
  %v760 = vadd.f32 %v591, %v759
  %v761 = vpop.f32.mrf.mxu0
  %v762 = vadd.f32 %v593, %v761
  %763 = vmatmul.bf16.gmra.mxu0 %v327
  %v764 = vpop.f32.mrf.mxu0
  %v765 = vadd.f32 %v596, %v764
  %v766 = vpop.f32.mrf.mxu0
  %v767 = vadd.f32 %v598, %v766
  %768 = vmatmul.bf16.gmra.mxu0 %v329
  %v769 = vpop.f32.mrf.mxu0
  %v770 = vadd.f32 %v601, %v769
  %v771 = vpop.f32.mrf.mxu0
  %v772 = vadd.f32 %v603, %v771
  %773 = vmatmul.bf16.gmra.mxu0 %v331
  %v774 = vpop.f32.mrf.mxu0
  %v775 = vadd.f32 %v606, %v774
  %v776 = vpop.f32.mrf.mxu0
  %v777 = vadd.f32 %v608, %v776
  %778 = vmatmul.bf16.gmra.mxu0 %v333
  %v779 = vpop.f32.mrf.mxu0
  %v780 = vadd.f32 %v611, %v779
  %v781 = vpop.f32.mrf.mxu0
  %v782 = vadd.f32 %v613, %v781
  %783 = vmatmul.bf16.gmra.mxu0 %v335
  %v784 = vpop.f32.mrf.mxu0
  %v785 = vadd.f32 %v616, %v784
  %v786 = vpop.f32.mrf.mxu0
  %v787 = vadd.f32 %v618, %v786
  %788 = vmatmul.bf16.gmra.mxu0 %v337
  %v789 = vpop.f32.mrf.mxu0
  %v790 = vadd.f32 %v621, %v789
  %v791 = vpop.f32.mrf.mxu0
  %v792 = vadd.f32 %v623, %v791
  %793 = vmatmul.bf16.gmra.mxu0 %v339
  %v794 = vpop.f32.mrf.mxu0
  %v795 = vadd.f32 %v626, %v794
  %v796 = vpop.f32.mrf.mxu0
  %v797 = vadd.f32 %v628, %v796
  %798 = vmatmul.bf16.gmra.mxu0 %v341
  %v799 = vpop.f32.mrf.mxu0
  %v800 = vadd.f32 %v631, %v799
  %v801 = vpop.f32.mrf.mxu0
  %v802 = vadd.f32 %v633, %v801
  %803 = vmatmul.bf16.gmra.mxu0 %v343
  %v804 = vpop.f32.mrf.mxu0
  %v805 = vadd.f32 %v636, %v804
  %v806 = vpop.f32.mrf.mxu0
  %v807 = vadd.f32 %v638, %v806
  %808 = vmatmul.bf16.gmra.mxu0 %v345
  %v809 = vpop.f32.mrf.mxu0
  %v810 = vadd.f32 %v641, %v809
  %v811 = vpop.f32.mrf.mxu0
  %v812 = vadd.f32 %v643, %v811
  %813 = vmatmul.bf16.gmra.mxu0 %v347
  %v814 = vpop.f32.mrf.mxu0
  %v815 = vadd.f32 %v646, %v814
  %v816 = vpop.f32.mrf.mxu0
  %v817 = vadd.f32 %v648, %v816
  %818 = vmatmul.bf16.gmra.mxu0 %v349
  %v819 = vpop.f32.mrf.mxu0
  %v820 = vadd.f32 %v651, %v819
  %v821 = vpop.f32.mrf.mxu0
  %v822 = vadd.f32 %v653, %v821
  %823 = vmatmul.bf16.gmra.mxu0 %v351
  %v824 = vpop.f32.mrf.mxu0
  %v825 = vadd.f32 %v656, %v824
  %v826 = vpop.f32.mrf.mxu0
  %v827 = vadd.f32 %v658, %v826
  %828 = vmatmul.bf16.gmra.mxu0 %v353
  %v829 = vpop.f32.mrf.mxu0
  %v830 = vadd.f32 %v661, %v829
  %v831 = vpop.f32.mrf.mxu0
  %v832 = vadd.f32 %v663, %v831
  %833 = vmatmul.bf16.gmra.mxu0 %v355
  %v834 = vpop.f32.mrf.mxu0
  %v835 = vadd.f32 %v666, %v834
  %v836 = vpop.f32.mrf.mxu0
  %v837 = vadd.f32 %v668, %v836
  %838 = vmatmul.bf16.gmra.mxu0 %v357
  %v839 = vpop.f32.mrf.mxu0
  %v840 = vadd.f32 %v671, %v839
  %v841 = vpop.f32.mrf.mxu0
  %v842 = vadd.f32 %v673, %v841
  %843 = vmatmul.bf16.gmra.mxu0 %v359
  %v844 = vpop.f32.mrf.mxu0
  %v845 = vadd.f32 %v676, %v844
  %v846 = vpop.f32.mrf.mxu0
  %v847 = vadd.f32 %v678, %v846
  %848 = vmatmul.bf16.gmra.mxu0 %v361
  %v849 = vpop.f32.mrf.mxu0
  %v850 = vadd.f32 %v681, %v849
  %v851 = vpop.f32.mrf.mxu0
  %v852 = vadd.f32 %v683, %v851
  %853 = vmatmul.bf16.gmra.mxu0 %v363
  %v854 = vpop.f32.mrf.mxu0
  %v855 = vadd.f32 %v686, %v854
  %v856 = vpop.f32.mrf.mxu0
  %v857 = vadd.f32 %v688, %v856
  %858 = vmatmul.bf16.gmra.mxu0 %v365
  %v859 = vpop.f32.mrf.mxu0
  %v860 = vadd.f32 %v691, %v859
  %v861 = vpop.f32.mrf.mxu0
  %v862 = vadd.f32 %v693, %v861
  %863 = vdwg.mxu0
  %v864 = vmax.f32 %v705, %v745
  %v865 = vmax.f32 %v707, %v747
  %v866 = vmax.f32 %v710, %v750
  %v867 = vmax.f32 %v712, %v752
  %v868 = vmax.f32 %v715, %v755
  %v869 = vmax.f32 %v717, %v757
  %v870 = vmax.f32 %v720, %v760
  %v871 = vmax.f32 %v722, %v762
  %v872 = vmax.f32 %v725, %v765
  %v873 = vmax.f32 %v727, %v767
  %v874 = vmax.f32 %v730, %v770
  %v875 = vmax.f32 %v732, %v772
  %v876 = vmax.f32 %v735, %v775
  %v877 = vmax.f32 %v737, %v777
  %v878 = vmax.f32 %v740, %v780
  %v879 = vmax.f32 %v742, %v782
  %v880 = vmax.f32 %v785, %v825
  %v881 = vmax.f32 %v787, %v827
  %v882 = vmax.f32 %v790, %v830
  %v883 = vmax.f32 %v792, %v832
  %v884 = vmax.f32 %v795, %v835
  %v885 = vmax.f32 %v797, %v837
  %v886 = vmax.f32 %v800, %v840
  %v887 = vmax.f32 %v802, %v842
  %v888 = vmax.f32 %v805, %v845
  %v889 = vmax.f32 %v807, %v847
  %v890 = vmax.f32 %v810, %v850
  %v891 = vmax.f32 %v812, %v852
  %v892 = vmax.f32 %v815, %v855
  %v893 = vmax.f32 %v817, %v857
  %v894 = vmax.f32 %v820, %v860
  %v895 = vmax.f32 %v822, %v862
  %v896 = vmax.f32 %v864, %v880
  %v897 = vmax.f32 %v865, %v881
  %v898 = vmax.f32 %v866, %v882
  %v899 = vmax.f32 %v867, %v883
  %v900 = vmax.f32 %v868, %v884
  %v901 = vmax.f32 %v869, %v885
  %v902 = vmax.f32 %v870, %v886
  %v903 = vmax.f32 %v871, %v887
  %v904 = vmax.f32 %v872, %v888
  %v905 = vmax.f32 %v873, %v889
  %v906 = vmax.f32 %v874, %v890
  %v907 = vmax.f32 %v875, %v891
  %v908 = vmax.f32 %v876, %v892
  %v909 = vmax.f32 %v877, %v893
  %v910 = vmax.f32 %v878, %v894
  %v911 = vmax.f32 %v879, %v895
  %v912 = vld [vmem:[%s2] sm:$0x1]
  %v914 = vperm.slane %v912, 0
  %v916 = vadd.f32 %v896, %v914
  %v917 = vadd.f32 %v897, %v914
  %v918 = vadd.f32 %v898, %v914
  %v919 = vadd.f32 %v899, %v914
  %v920 = vadd.f32 %v900, %v914
  %v921 = vadd.f32 %v901, %v914
  %v922 = vadd.f32 %v902, %v914
  %v923 = vadd.f32 %v903, %v914
  %v924 = vadd.f32 %v904, %v914
  %v925 = vadd.f32 %v905, %v914
  %v926 = vadd.f32 %v906, %v914
  %v927 = vadd.f32 %v907, %v914
  %v928 = vadd.f32 %v908, %v914
  %v929 = vadd.f32 %v909, %v914
  %v930 = vadd.f32 %v910, %v914
  %v931 = vadd.f32 %v911, %v914
  %v932 = vmax.f32 %v916, 0.0
  %v933 = vmax.f32 %v917, 0.0
  %v934 = vmax.f32 %v918, 0.0
  %v935 = vmax.f32 %v919, 0.0
  %v936 = vmax.f32 %v920, 0.0
  %v937 = vmax.f32 %v921, 0.0
  %v938 = vmax.f32 %v922, 0.0
  %v939 = vmax.f32 %v923, 0.0
  %v940 = vmax.f32 %v924, 0.0
  %v941 = vmax.f32 %v925, 0.0
  %v942 = vmax.f32 %v926, 0.0
  %v943 = vmax.f32 %v927, 0.0
  %v944 = vmax.f32 %v928, 0.0
  %v945 = vmax.f32 %v929, 0.0
  %v946 = vmax.f32 %v930, 0.0
  %v947 = vmax.f32 %v931, 0.0
  %948 = vst [vmem:[%s3] sm:$0xff] %v932
  %949 = vst [vmem:[%s3 + $0x8] sm:$0xff] %v933
  %950 = vst [vmem:[%s3 + $0x10] sm:$0xff] %v934
  %951 = vst [vmem:[%s3 + $0x18] sm:$0xff] %v935
  %952 = vst [vmem:[%s3 + $0x20] sm:$0xff] %v936
  %953 = vst [vmem:[%s3 + $0x28] sm:$0xff] %v937
  %954 = vst [vmem:[%s3 + $0x30] sm:$0xff] %v938
  %955 = vst [vmem:[%s3 + $0x38] sm:$0xff] %v939
  %956 = vst [vmem:[%s3 + $0x40] sm:$0xff] %v940
  %957 = vst [vmem:[%s3 + $0x48] sm:$0xff] %v941
  %958 = vst [vmem:[%s3 + $0x50] sm:$0xff] %v942
  %959 = vst [vmem:[%s3 + $0x58] sm:$0xff] %v943
  %960 = vst [vmem:[%s3 + $0x60] sm:$0xff] %v944
  %961 = vst [vmem:[%s3 + $0x68] sm:$0xff] %v945
  %962 = vst [vmem:[%s3 + $0x70] sm:$0xff] %v946
  %963 = vst [vmem:[%s3 + $0x78] sm:$0xff] %v947
  // Predicated region
  $region14: #{net_forward.4} parent=0 // pred_check
    _
  $region15: #{net_forward.4} parent=0 // pred_check_branch
    %965 = sbr.rel (0) target = $region17
  $region16: #{net_forward.4} parent=0 // pred_region
    _
  $region17: #{net_forward.4} parent=0 // pred_fallthru
    _
  // Predicated region
  $region18: #{net_forward.4} parent=0 // pred_check
    _
  $region19: #{net_forward.4} parent=0 // pred_check_branch
    %967 = sbr.rel (0) target = $region21
  $region20: #{net_forward.4} parent=0 // pred_region
    _
  $region21: #{net_forward.4} parent=0 // pred_fallthru
    _

// kernel: net_forward.5
$region0: #{net_forward.5}
  #allocation0 [shape = 'u32[]', space=smem, size = 0x4, offset = 0x4, fixed_abs, tag = 'smem constant byte address 0x4 - core index']
  #allocation1 [shape = 'u32[72,128]{1,0:T(1,128)}', space=vmem, size = 0x9000, scoped, tag = 'internal scratch']
  %s0 = inlined_call_operand.vmem [shape: bf16[16,512], index: 0, kind: input, shape index: {}]
  %s1 = inlined_call_operand.vmem [shape: bf16[512,128], index: 1, kind: input, shape index: {}]
  %s2 = inlined_call_operand.vmem [shape: f32[1,128], index: 2, kind: input, shape index: {}]
  %s3 = inlined_call_operand.vmem [shape: bf16[128,128], index: 3, kind: input, shape index: {}]
  %s4 = inlined_call_operand.vmem [shape: f32[1,128], index: 4, kind: input, shape index: {}]
  %s5 = inlined_call_operand.vmem [shape: bf16[128,128], index: 5, kind: input, shape index: {}]
  %s6 = inlined_call_operand.vmem [shape: f32[1,128], index: 6, kind: input, shape index: {}]
  %s7 = inlined_call_operand.vmem [shape: f32[16,128], index: 7, kind: output, shape index: {}]
  %s8 = sld [smem:[#allocation0]]
  $region38: #{net_forward.5} parent=0
    _
  %s10 = ssub.s32 1, %s8
  %s11 = scalar_select 0, %s10, %s8
  // Predicated region
  $region2: #{net_forward.5} parent=0 // pred_check
    _
  $region3: #{net_forward.5} parent=0 // pred_check_branch
    %13 = sbr.rel (0) target = $region5
  $region4: #{net_forward.5} parent=0 // pred_region
    _
  $region5: #{net_forward.5} parent=0 // pred_fallthru
    _
  // Predicated region
  $region6: #{net_forward.5} parent=0 // pred_check
    _
  $region7: #{net_forward.5} parent=0 // pred_check_branch
    %15 = sbr.rel (0) target = $region9
  $region8: #{net_forward.5} parent=0 // pred_region
    _
  $region9: #{net_forward.5} parent=0 // pred_fallthru
    _
  // Predicated region
  $region10: #{net_forward.5} parent=0 // pred_check
    _
  $region11: #{net_forward.5} parent=0 // pred_check_branch
    %17 = sbr.rel (0) target = $region13
  $region12: #{net_forward.5} parent=0 // pred_region
    _
  $region13: #{net_forward.5} parent=0 // pred_fallthru
    _
  // Predicated region
  $region14: #{net_forward.5} parent=0 // pred_check
    _
  $region15: #{net_forward.5} parent=0 // pred_check_branch
    %19 = sbr.rel (0) target = $region17
  $region16: #{net_forward.5} parent=0 // pred_region
    _
  $region17: #{net_forward.5} parent=0 // pred_fallthru
    _
  // Predicated region
  $region18: #{net_forward.5} parent=0 // pred_check
    _
  $region19: #{net_forward.5} parent=0 // pred_check_branch
    %21 = sbr.rel (0) target = $region21
  $region20: #{net_forward.5} parent=0 // pred_region
    _
  $region21: #{net_forward.5} parent=0 // pred_fallthru
    _
  // Predicated region
  $region22: #{net_forward.5} parent=0 // pred_check
    _
  $region23: #{net_forward.5} parent=0 // pred_check_branch
    %23 = sbr.rel (0) target = $region25
  $region24: #{net_forward.5} parent=0 // pred_region
    _
  $region25: #{net_forward.5} parent=0 // pred_fallthru
    _
  // Predicated region
  $region26: #{net_forward.5} parent=0 // pred_check
    _
  $region27: #{net_forward.5} parent=0 // pred_check_branch
    %25 = sbr.rel (0) target = $region29
  $region28: #{net_forward.5} parent=0 // pred_region
    _
  $region29: #{net_forward.5} parent=0 // pred_fallthru
    _
  %v26 = vld [vmem:[%s0] sm:$0xff]
  %v27 = vld [vmem:[%s0 + $0x8] sm:$0xff]
  %v28 = vld [vmem:[%s0 + $0x10] sm:$0xff]
  %v29 = vld [vmem:[%s0 + $0x18] sm:$0xff]
  %v30 = vld [vmem:[%s1] sm:$0xf]
  %v31 = vld [vmem:[%s1 + $0x4] sm:$0xf]
  %v32 = vld [vmem:[%s1 + $0x8] sm:$0xf]
  %v33 = vld [vmem:[%s1 + $0xc] sm:$0xf]
  %v34 = vld [vmem:[%s1 + $0x10] sm:$0xf]
  %v35 = vld [vmem:[%s1 + $0x14] sm:$0xf]
  %v36 = vld [vmem:[%s1 + $0x18] sm:$0xf]
  %v37 = vld [vmem:[%s1 + $0x1c] sm:$0xf]
  %v38 = vld [vmem:[%s1 + $0x20] sm:$0xf]
  %v39 = vld [vmem:[%s1 + $0x24] sm:$0xf]
  %v40 = vld [vmem:[%s1 + $0x28] sm:$0xf]
  %v41 = vld [vmem:[%s1 + $0x2c] sm:$0xf]
  %v42 = vld [vmem:[%s1 + $0x30] sm:$0xf]
  %v43 = vld [vmem:[%s1 + $0x34] sm:$0xf]
  %v44 = vld [vmem:[%s1 + $0x38] sm:$0xf]
  %v45 = vld [vmem:[%s1 + $0x3c] sm:$0xf]
  %v46 = vld [vmem:[%s1 + $0x40] sm:$0xf]
  %v47 = vld [vmem:[%s1 + $0x44] sm:$0xf]
  %v48 = vld [vmem:[%s1 + $0x48] sm:$0xf]
  %v49 = vld [vmem:[%s1 + $0x4c] sm:$0xf]
  %v50 = vld [vmem:[%s1 + $0x50] sm:$0xf]
  %v51 = vld [vmem:[%s1 + $0x54] sm:$0xf]
  %v52 = vld [vmem:[%s1 + $0x58] sm:$0xf]
  %v53 = vld [vmem:[%s1 + $0x5c] sm:$0xf]
  %v54 = vld [vmem:[%s1 + $0x60] sm:$0xf]
  %v55 = vld [vmem:[%s1 + $0x64] sm:$0xf]
  %v56 = vld [vmem:[%s1 + $0x68] sm:$0xf]
  %v57 = vld [vmem:[%s1 + $0x6c] sm:$0xf]
  %v58 = vld [vmem:[%s1 + $0x70] sm:$0xf]
  %v59 = vld [vmem:[%s1 + $0x74] sm:$0xf]
  %v60 = vld [vmem:[%s1 + $0x78] sm:$0xf]
  %v61 = vld [vmem:[%s1 + $0x7c] sm:$0xf]
  %v62 = vld [vmem:[%s1 + $0x80] sm:$0xf]
  %v63 = vld [vmem:[%s1 + $0x84] sm:$0xf]
  %v64 = vld [vmem:[%s1 + $0x88] sm:$0xf]
  %v65 = vld [vmem:[%s1 + $0x8c] sm:$0xf]
  %v66 = vld [vmem:[%s1 + $0x90] sm:$0xf]
  %v67 = vld [vmem:[%s1 + $0x94] sm:$0xf]
  %v68 = vld [vmem:[%s1 + $0x98] sm:$0xf]
  %v69 = vld [vmem:[%s1 + $0x9c] sm:$0xf]
  %v70 = vld [vmem:[%s1 + $0xa0] sm:$0xf]
  %v71 = vld [vmem:[%s1 + $0xa4] sm:$0xf]
  %v72 = vld [vmem:[%s1 + $0xa8] sm:$0xf]
  %v73 = vld [vmem:[%s1 + $0xac] sm:$0xf]
  %v74 = vld [vmem:[%s1 + $0xb0] sm:$0xf]
  %v75 = vld [vmem:[%s1 + $0xb4] sm:$0xf]
  %v76 = vld [vmem:[%s1 + $0xb8] sm:$0xf]
  %v77 = vld [vmem:[%s1 + $0xbc] sm:$0xf]
  %v78 = vld [vmem:[%s1 + $0xc0] sm:$0xf]
  %v79 = vld [vmem:[%s1 + $0xc4] sm:$0xf]
  %v80 = vld [vmem:[%s1 + $0xc8] sm:$0xf]
  %v81 = vld [vmem:[%s1 + $0xcc] sm:$0xf]
  %v82 = vld [vmem:[%s1 + $0xd0] sm:$0xf]
  %v83 = vld [vmem:[%s1 + $0xd4] sm:$0xf]
  %v84 = vld [vmem:[%s1 + $0xd8] sm:$0xf]
  %v85 = vld [vmem:[%s1 + $0xdc] sm:$0xf]
  %v86 = vld [vmem:[%s1 + $0xe0] sm:$0xf]
  %v87 = vld [vmem:[%s1 + $0xe4] sm:$0xf]
  %v88 = vld [vmem:[%s1 + $0xe8] sm:$0xf]
  %v89 = vld [vmem:[%s1 + $0xec] sm:$0xf]
  %v90 = vld [vmem:[%s1 + $0xf0] sm:$0xf]
  %v91 = vld [vmem:[%s1 + $0xf4] sm:$0xf]
  %v92 = vld [vmem:[%s1 + $0xf8] sm:$0xf]
  %v93 = vld [vmem:[%s1 + $0xfc] sm:$0xf]
  %v94 = vld [vmem:[%s2] sm:$0x1]
  %v96 = vperm.slane %v94, 0
  %v102 = vunpack.c.l.b16 %v26
  %v103 = vunpack.c.h.b16 %v26
  %v104 = vunpack.c.l.b16 %v27
  %v105 = vunpack.c.h.b16 %v27
  %v106 = vunpack.c.l.b16 %v28
  %v107 = vunpack.c.h.b16 %v28
  %v108 = vunpack.c.l.b16 %v29
  %v109 = vunpack.c.h.b16 %v29
  %v110 = vpack.c.b16 %v106, %v102
  %v111 = vpack.c.b16 %v107, %v103
  %v112 = vpack.c.b16 %v108, %v104
  %v113 = vpack.c.b16 %v109, %v105
  %v182 = vunpack.c.l.b16 %v30
  %v183 = vunpack.c.l.b16 %v31
  %v184 = vunpack.c.l.b16 %v32
  %v185 = vunpack.c.l.b16 %v33
  %v186 = vunpack.c.l.b16 %v34
  %v187 = vunpack.c.l.b16 %v35
  %v188 = vunpack.c.l.b16 %v36
  %v189 = vunpack.c.l.b16 %v37
  %v190 = vunpack.c.l.b16 %v38
  %v191 = vunpack.c.l.b16 %v39
  %v192 = vunpack.c.l.b16 %v40
  %v193 = vunpack.c.l.b16 %v41
  %v194 = vunpack.c.l.b16 %v42
  %v195 = vunpack.c.l.b16 %v43
  %v196 = vunpack.c.l.b16 %v44
  %v197 = vunpack.c.l.b16 %v45
  %v198 = vunpack.c.l.b16 %v46
  %v199 = vunpack.c.l.b16 %v47
  %v200 = vunpack.c.l.b16 %v48
  %v201 = vunpack.c.l.b16 %v49
  %v202 = vunpack.c.l.b16 %v50
  %v203 = vunpack.c.l.b16 %v51
  %v204 = vunpack.c.l.b16 %v52
  %v205 = vunpack.c.l.b16 %v53
  %v206 = vunpack.c.l.b16 %v54
  %v207 = vunpack.c.l.b16 %v55
  %v208 = vunpack.c.l.b16 %v56
  %v209 = vunpack.c.l.b16 %v57
  %v210 = vunpack.c.l.b16 %v58
  %v211 = vunpack.c.l.b16 %v59
  %v212 = vunpack.c.l.b16 %v60
  %v213 = vunpack.c.l.b16 %v61
  %v214 = vunpack.c.l.b16 %v62
  %v215 = vunpack.c.l.b16 %v63
  %v216 = vunpack.c.l.b16 %v64
  %v217 = vunpack.c.l.b16 %v65
  %v218 = vunpack.c.l.b16 %v66
  %v219 = vunpack.c.l.b16 %v67
  %v220 = vunpack.c.l.b16 %v68
  %v221 = vunpack.c.l.b16 %v69
  %v222 = vunpack.c.l.b16 %v70
  %v223 = vunpack.c.l.b16 %v71
  %v224 = vunpack.c.l.b16 %v72
  %v225 = vunpack.c.l.b16 %v73
  %v226 = vunpack.c.l.b16 %v74
  %v227 = vunpack.c.l.b16 %v75
  %v228 = vunpack.c.l.b16 %v76
  %v229 = vunpack.c.l.b16 %v77
  %v230 = vunpack.c.l.b16 %v78
  %v231 = vunpack.c.l.b16 %v79
  %v232 = vunpack.c.l.b16 %v80
  %v233 = vunpack.c.l.b16 %v81
  %v234 = vunpack.c.l.b16 %v82
  %v235 = vunpack.c.l.b16 %v83
  %v236 = vunpack.c.l.b16 %v84
  %v237 = vunpack.c.l.b16 %v85
  %v238 = vunpack.c.l.b16 %v86
  %v239 = vunpack.c.l.b16 %v87
  %v240 = vunpack.c.l.b16 %v88
  %v241 = vunpack.c.l.b16 %v89
  %v242 = vunpack.c.l.b16 %v90
  %v243 = vunpack.c.l.b16 %v91
  %v244 = vunpack.c.l.b16 %v92
  %v245 = vunpack.c.l.b16 %v93
  %v246 = vpack.c.b16 %v183, %v182
  %v247 = vpack.c.b16 %v185, %v184
  %v248 = vpack.c.b16 %v187, %v186
  %v249 = vpack.c.b16 %v189, %v188
  %v250 = vpack.c.b16 %v191, %v190
  %v251 = vpack.c.b16 %v193, %v192
  %v252 = vpack.c.b16 %v195, %v194
  %v253 = vpack.c.b16 %v197, %v196
  %v254 = vpack.c.b16 %v199, %v198
  %v255 = vpack.c.b16 %v201, %v200
  %v256 = vpack.c.b16 %v203, %v202
  %v257 = vpack.c.b16 %v205, %v204
  %v258 = vpack.c.b16 %v207, %v206
  %v259 = vpack.c.b16 %v209, %v208
  %v260 = vpack.c.b16 %v211, %v210
  %v261 = vpack.c.b16 %v213, %v212
  %v262 = vpack.c.b16 %v215, %v214
  %v263 = vpack.c.b16 %v217, %v216
  %v264 = vpack.c.b16 %v219, %v218
  %v265 = vpack.c.b16 %v221, %v220
  %v266 = vpack.c.b16 %v223, %v222
  %v267 = vpack.c.b16 %v225, %v224
  %v268 = vpack.c.b16 %v227, %v226
  %v269 = vpack.c.b16 %v229, %v228
  %v270 = vpack.c.b16 %v231, %v230
  %v271 = vpack.c.b16 %v233, %v232
  %v272 = vpack.c.b16 %v235, %v234
  %v273 = vpack.c.b16 %v237, %v236
  %v274 = vpack.c.b16 %v239, %v238
  %v275 = vpack.c.b16 %v241, %v240
  %v276 = vpack.c.b16 %v243, %v242
  %v277 = vpack.c.b16 %v245, %v244
  %310 = vmatpush.bf16.msra.mxu0 %v253
  %311 = vmatpush.bf16.msra.mxu0 %v252
  %312 = vmatpush.bf16.msra.mxu0 %v251
  %313 = vmatpush.bf16.msra.mxu0 %v250
  %314 = vmatpush.bf16.msra.mxu0 %v249
  %315 = vmatpush.bf16.msra.mxu0 %v248
  %316 = vmatpush.bf16.msra.mxu0 %v247
  %317 = vmatpush.bf16.msra.mxu0 %v246
  %318 = vmatmul.bf16.gmra.mxu0 %v110
  %v319 = vpop.f32.mrf.mxu0
  %v320 = vadd.f32 %v96, %v319
  %v321 = vpop.f32.mrf.mxu0
  %v322 = vadd.f32 %v96, %v321
  %323 = vdwg.mxu0
  %324 = vmatpush.bf16.msra.mxu0 %v261
  %325 = vmatpush.bf16.msra.mxu0 %v260
  %326 = vmatpush.bf16.msra.mxu0 %v259
  %327 = vmatpush.bf16.msra.mxu0 %v258
  %328 = vmatpush.bf16.msra.mxu0 %v257
  %329 = vmatpush.bf16.msra.mxu0 %v256
  %330 = vmatpush.bf16.msra.mxu0 %v255
  %331 = vmatpush.bf16.msra.mxu0 %v254
  %332 = vmatmul.bf16.gmra.mxu0 %v111
  %v333 = vpop.f32.mrf.mxu0
  %v334 = vadd.f32 %v320, %v333
  %v335 = vpop.f32.mrf.mxu0
  %v336 = vadd.f32 %v322, %v335
  %337 = vdwg.mxu0
  %338 = vmatpush.bf16.msra.mxu0 %v269
  %339 = vmatpush.bf16.msra.mxu0 %v268
  %340 = vmatpush.bf16.msra.mxu0 %v267
  %341 = vmatpush.bf16.msra.mxu0 %v266
  %342 = vmatpush.bf16.msra.mxu0 %v265
  %343 = vmatpush.bf16.msra.mxu0 %v264
  %344 = vmatpush.bf16.msra.mxu0 %v263
  %345 = vmatpush.bf16.msra.mxu0 %v262
  %346 = vmatmul.bf16.gmra.mxu0 %v112
  %v347 = vpop.f32.mrf.mxu0
  %v348 = vadd.f32 %v334, %v347
  %v349 = vpop.f32.mrf.mxu0
  %v350 = vadd.f32 %v336, %v349
  %351 = vdwg.mxu0
  %352 = vmatpush.bf16.msra.mxu0 %v277
  %353 = vmatpush.bf16.msra.mxu0 %v276
  %354 = vmatpush.bf16.msra.mxu0 %v275
  %355 = vmatpush.bf16.msra.mxu0 %v274
  %356 = vmatpush.bf16.msra.mxu0 %v273
  %357 = vmatpush.bf16.msra.mxu0 %v272
  %358 = vmatpush.bf16.msra.mxu0 %v271
  %359 = vmatpush.bf16.msra.mxu0 %v270
  %360 = vmatmul.bf16.gmra.mxu0 %v113
  %v361 = vpop.f32.mrf.mxu0
  %v362 = vadd.f32 %v348, %v361
  %v363 = vpop.f32.mrf.mxu0
  %v364 = vadd.f32 %v350, %v363
  %365 = vdwg.mxu0
  %v366 = vmax.f32 %v362, 0.0
  %v367 = vmax.f32 %v364, 0.0
  %v368 = vpack.c.bf16 %v367, %v366
  %v369 = vld [vmem:[%s3] sm:$0xf]
  %v370 = vld [vmem:[%s3 + $0x4] sm:$0xf]
  %v371 = vld [vmem:[%s3 + $0x8] sm:$0xf]
  %v372 = vld [vmem:[%s3 + $0xc] sm:$0xf]
  %v373 = vld [vmem:[%s3 + $0x10] sm:$0xf]
  %v374 = vld [vmem:[%s3 + $0x14] sm:$0xf]
  %v375 = vld [vmem:[%s3 + $0x18] sm:$0xf]
  %v376 = vld [vmem:[%s3 + $0x1c] sm:$0xf]
  %v377 = vld [vmem:[%s3 + $0x20] sm:$0xf]
  %v378 = vld [vmem:[%s3 + $0x24] sm:$0xf]
  %v379 = vld [vmem:[%s3 + $0x28] sm:$0xf]
  %v380 = vld [vmem:[%s3 + $0x2c] sm:$0xf]
  %v381 = vld [vmem:[%s3 + $0x30] sm:$0xf]
  %v382 = vld [vmem:[%s3 + $0x34] sm:$0xf]
  %v383 = vld [vmem:[%s3 + $0x38] sm:$0xf]
  %v384 = vld [vmem:[%s3 + $0x3c] sm:$0xf]
  %v385 = vld [vmem:[%s4] sm:$0x1]
  %v387 = vperm.slane %v385, 0
  %v405 = vunpack.c.l.b16 %v369
  %v406 = vunpack.c.l.b16 %v370
  %v407 = vunpack.c.l.b16 %v371
  %v408 = vunpack.c.l.b16 %v372
  %v409 = vunpack.c.l.b16 %v373
  %v410 = vunpack.c.l.b16 %v374
  %v411 = vunpack.c.l.b16 %v375
  %v412 = vunpack.c.l.b16 %v376
  %v413 = vunpack.c.l.b16 %v377
  %v414 = vunpack.c.l.b16 %v378
  %v415 = vunpack.c.l.b16 %v379
  %v416 = vunpack.c.l.b16 %v380
  %v417 = vunpack.c.l.b16 %v381
  %v418 = vunpack.c.l.b16 %v382
  %v419 = vunpack.c.l.b16 %v383
  %v420 = vunpack.c.l.b16 %v384
  %v421 = vpack.c.b16 %v406, %v405
  %v422 = vpack.c.b16 %v408, %v407
  %v423 = vpack.c.b16 %v410, %v409
  %v424 = vpack.c.b16 %v412, %v411
  %v425 = vpack.c.b16 %v414, %v413
  %v426 = vpack.c.b16 %v416, %v415
  %v427 = vpack.c.b16 %v418, %v417
  %v428 = vpack.c.b16 %v420, %v419
  %437 = vmatpush.bf16.msra.mxu0 %v428
  %438 = vmatpush.bf16.msra.mxu0 %v427
  %439 = vmatpush.bf16.msra.mxu0 %v426
  %440 = vmatpush.bf16.msra.mxu0 %v425
  %441 = vmatpush.bf16.msra.mxu0 %v424
  %442 = vmatpush.bf16.msra.mxu0 %v423
  %443 = vmatpush.bf16.msra.mxu0 %v422
  %444 = vmatpush.bf16.msra.mxu0 %v421
  %445 = vmatmul.bf16.gmra.mxu0 %v368
  %v446 = vpop.f32.mrf.mxu0
  %v447 = vadd.f32 %v387, %v446
  %v448 = vpop.f32.mrf.mxu0
  %v449 = vadd.f32 %v387, %v448
  %450 = vdwg.mxu0
  %v451 = vmax.f32 %v447, 0.0
  %v452 = vmax.f32 %v449, 0.0
  %v453 = vpack.c.bf16 %v452, %v451
  %v454 = vld [vmem:[%s5] sm:$0xf]
  %v455 = vld [vmem:[%s5 + $0x4] sm:$0xf]
  %v456 = vld [vmem:[%s5 + $0x8] sm:$0xf]
  %v457 = vld [vmem:[%s5 + $0xc] sm:$0xf]
  %v458 = vld [vmem:[%s5 + $0x10] sm:$0xf]
  %v459 = vld [vmem:[%s5 + $0x14] sm:$0xf]
  %v460 = vld [vmem:[%s5 + $0x18] sm:$0xf]
  %v461 = vld [vmem:[%s5 + $0x1c] sm:$0xf]
  %v462 = vld [vmem:[%s5 + $0x20] sm:$0xf]
  %v463 = vld [vmem:[%s5 + $0x24] sm:$0xf]
  %v464 = vld [vmem:[%s5 + $0x28] sm:$0xf]
  %v465 = vld [vmem:[%s5 + $0x2c] sm:$0xf]
  %v466 = vld [vmem:[%s5 + $0x30] sm:$0xf]
  %v467 = vld [vmem:[%s5 + $0x34] sm:$0xf]
  %v468 = vld [vmem:[%s5 + $0x38] sm:$0xf]
  %v469 = vld [vmem:[%s5 + $0x3c] sm:$0xf]
  %v470 = vld [vmem:[%s6] sm:$0x1]
  %v472 = vperm.slane %v470, 0
  %v490 = vunpack.c.l.b16 %v454
  %v491 = vunpack.c.l.b16 %v455
  %v492 = vunpack.c.l.b16 %v456
  %v493 = vunpack.c.l.b16 %v457
  %v494 = vunpack.c.l.b16 %v458
  %v495 = vunpack.c.l.b16 %v459
  %v496 = vunpack.c.l.b16 %v460
  %v497 = vunpack.c.l.b16 %v461
  %v498 = vunpack.c.l.b16 %v462
  %v499 = vunpack.c.l.b16 %v463
  %v500 = vunpack.c.l.b16 %v464
  %v501 = vunpack.c.l.b16 %v465
  %v502 = vunpack.c.l.b16 %v466
  %v503 = vunpack.c.l.b16 %v467
  %v504 = vunpack.c.l.b16 %v468
  %v505 = vunpack.c.l.b16 %v469
  %v506 = vpack.c.b16 %v491, %v490
  %v507 = vpack.c.b16 %v493, %v492
  %v508 = vpack.c.b16 %v495, %v494
  %v509 = vpack.c.b16 %v497, %v496
  %v510 = vpack.c.b16 %v499, %v498
  %v511 = vpack.c.b16 %v501, %v500
  %v512 = vpack.c.b16 %v503, %v502
  %v513 = vpack.c.b16 %v505, %v504
  %522 = vmatpush.bf16.msra.mxu0 %v513
  %523 = vmatpush.bf16.msra.mxu0 %v512
  %524 = vmatpush.bf16.msra.mxu0 %v511
  %525 = vmatpush.bf16.msra.mxu0 %v510
  %526 = vmatpush.bf16.msra.mxu0 %v509
  %527 = vmatpush.bf16.msra.mxu0 %v508
  %528 = vmatpush.bf16.msra.mxu0 %v507
  %529 = vmatpush.bf16.msra.mxu0 %v506
  %530 = vmatmul.bf16.gmra.mxu0 %v453
  %v531 = vpop.f32.mrf.mxu0
  %v532 = vadd.f32 %v472, %v531
  %v533 = vpop.f32.mrf.mxu0
  %v534 = vadd.f32 %v472, %v533
  %535 = vdwg.mxu0
  %536 = vst [vmem:[%s7] sm:$0xff] %v532
  %537 = vst [vmem:[%s7 + $0x8] sm:$0xff] %v534
  // Predicated region
  $region30: #{net_forward.5} parent=0 // pred_check
    _
  $region31: #{net_forward.5} parent=0 // pred_check_branch
    %539 = sbr.rel (0) target = $region33
  $region32: #{net_forward.5} parent=0 // pred_region
    _
  $region33: #{net_forward.5} parent=0 // pred_fallthru
    _
  // Predicated region
  $region34: #{net_forward.5} parent=0 // pred_check
    _
  $region35: #{net_forward.5} parent=0 // pred_check_branch
    %541 = sbr.rel (0) target = $region37
  $region36: #{net_forward.5} parent=0 // pred_region
    _
  $region37: #{net_forward.5} parent=0 // pred_fallthru
    _

</llo_original>
